<compile_context>
chip_gen: v7x
topology: tpu7x:2x2x1
jax: 0.10.0
libtpu: 0.0.40
codegen_flags: <defaults>
</compile_context>

<pallas_src>
import functools

import jax
import jax.numpy as jnp
from jax import lax
from jax.experimental import pallas as pl
from jax.experimental.pallas import tpu as pltpu


def _num_tensorcores():
    """ncores=2 only on v7x (2 TensorCores/chip); v5e/v6e are single-TC."""
    try:
        kind = jax.devices()[0].device_kind.lower()
    except Exception:
        return 1
    return 2 if ("v7" in kind or "7x" in kind) else 1


def _make_kernel(B, P, S, fold_epilogue):
    """Kernel over grid (ncores, kh). Accumulates the K-folded NT matmul and,
    on the last K step, reduces the diagonal stripes back to (B, P)."""
    BS, PS = B * S, P * S
    shift = S.bit_length() - 1  # log2(S); S is a power of two

    def kernel(j_ref, w_ref, bias_ref, rel_ref, out_ref, acc_ref):
        k = pl.program_id(1)

        @pl.when(k == 0)
        def _():
            acc_ref[...] = jnp.zeros_like(acc_ref)

        # Folded partial projection: (BS, tk) . (PS, tk) contracting the lane
        # (K) dims -> (BS, PS), f32 MXU accumulation.  J is cast to bf16 on the
        # VMEM tile (no standalone HBM cast pass); W arrives bf16 from HBM.
        acc_ref[...] += lax.dot_general(
            j_ref[...].astype(jnp.bfloat16), w_ref[...],
            dimension_numbers=(((1,), (1,)), ((), ())),
            preferred_element_type=jnp.float32)

        @pl.when(k == pl.num_programs(1) - 1)
        def _():
            acc = acc_ref[...]                                     # (BS, PS) f32
            # proj[b, p] = sum_s acc[b*S + s, p*S + s]:
            #   1) zero the off-diagonal (s != t) cross terms,
            #   2) block-pool lanes PS -> P and sublanes BS -> B with tiny 0/1
            #      matmuls (no value reshapes / gathers needed).
            ii = lax.broadcasted_iota(jnp.int32, (BS, PS), 0)
            jj = lax.broadcasted_iota(jnp.int32, (BS, PS), 1)
            masked = jnp.where((ii & (S - 1)) == (jj & (S - 1)), acc, 0.0)

            rr = lax.broadcasted_iota(jnp.int32, (PS, P), 0)
            cc = lax.broadcasted_iota(jnp.int32, (PS, P), 1)
            pool_cols = ((rr >> shift) == cc).astype(jnp.float32)   # (PS, P)

            bb = lax.broadcasted_iota(jnp.int32, (B, BS), 0)
            ss = lax.broadcasted_iota(jnp.int32, (B, BS), 1)
            pool_rows = (bb == (ss >> shift)).astype(jnp.float32)   # (B, BS)

            tmp = jnp.dot(masked, pool_cols,
                          preferred_element_type=jnp.float32)       # (BS, P)
            proj = jnp.dot(pool_rows, tmp,
                           preferred_element_type=jnp.float32)      # (B, P)

            if fold_epilogue:
                # Full epilogue in-kernel: bias add, relevance subtraction,
                # sum of squares -> (1, 1) scalar.  Wrapper only does sqrt.
                diff = proj + bias_ref[...] - rel_ref[...]
                ssq = jnp.sum(diff * diff, axis=1, keepdims=True)
                out_ref[...] = jnp.sum(ssq, axis=0, keepdims=True)
            else:
                # Multi-core path: per-core F-partial projections; they must be
                # summed across cores before the nonlinear norm (wrapper).
                out_ref[...] = proj

    return kernel


def robustness_loss_pallas(j_yx, w_bf16, bias, relevances_flat, *,
                           fold=16, tk=None, ncores=None):
    """j_yx: (B, F) f32; w_bf16: (P, F) bf16 torch-layout weight (cast once at
    init); bias: (P,) f32; relevances_flat: (B, P) f32.  Returns the Frobenius
    norm of (J_yx @ W^T + bias - relevances)."""
    B, F = j_yx.shape
    P = w_bf16.shape[0]
    S = fold
    assert S & (S - 1) == 0, "fold factor must be a power of two"
    assert F % S == 0
    Fp = F // S

    if ncores is None:
        ncores = _num_tensorcores()
    if tk is None:
        tk = Fp // (ncores * 2)          # 2 large K steps per core
    assert Fp % (ncores * tk) == 0 and tk % 128 == 0
    kh = Fp // (ncores * tk)             # K steps per core

    # Pure contiguous (row-major) splits: zero extra HBM traffic.
    j2 = j_yx.reshape(B * S, Fp)                       # (32, 9216)  f32
    w2 = w_bf16.reshape(P * S, Fp)                     # (160, 9216) bf16
    bias2 = bias.reshape(1, P).astype(jnp.float32)
    rel2 = relevances_flat.reshape(B, P).astype(jnp.float32)

    fold_epilogue = (ncores == 1)
    kernel = _make_kernel(B, P, S, fold_epilogue)

    if fold_epilogue:
        out_shape = jax.ShapeDtypeStruct((1, 1), jnp.float32)
        out_specs = pl.BlockSpec((1, 1), lambda c, k: (0, 0))
    else:
        out_shape = jax.ShapeDtypeStruct((ncores, B, P), jnp.float32)
        out_specs = pl.BlockSpec((None, B, P), lambda c, k: (c, 0, 0))

    # TODO(synk): on v7x, verify in the trace that the leading "parallel" axis
    # actually shards across both TensorCores; if not, switch it to
    # pltpu.CORE_PARALLEL.
    sem0 = "parallel" if ncores > 1 else "arbitrary"

    out = pl.pallas_call(
        kernel,
        out_shape=out_shape,
        grid_spec=pltpu.PrefetchScalarGridSpec(
            num_scalar_prefetch=0,
            grid=(ncores, kh),
            in_specs=[
                # J K-tile: lane-dense (B*S, tk) f32
                pl.BlockSpec((B * S, tk), lambda c, k: (0, c * kh + k)),
                # W K-tile: lane-dense (P*S, tk) bf16, torch-native layout
                pl.BlockSpec((P * S, tk), lambda c, k: (0, c * kh + k)),
                # tiny constants, resident across the whole grid
                pl.BlockSpec((1, P), lambda c, k: (0, 0)),
                pl.BlockSpec((B, P), lambda c, k: (0, 0)),
            ],
            out_specs=out_specs,
            scratch_shapes=[pltpu.VMEM((B * S, P * S), jnp.float32)],
        ),
        compiler_params=pltpu.CompilerParams(
            dimension_semantics=(sem0, "arbitrary")),
    )(j2, w2, bias2, rel2)

    if fold_epilogue:
        return jnp.sqrt(out[0, 0])
    # v7x 2-core path: combine per-core F-partials, then the tiny epilogue.
    proj = out.sum(axis=0) + bias2
    diff = proj - rel2
    return jnp.sqrt(jnp.sum(diff * diff))


if __name__ == "__main__":
    B = 2
    NUM_CONCEPTS = 5
    NUM_CLASSES = 2
    NUM_FEATURES = 147456        # hard-coded in the torch module's __init__
    P = NUM_CONCEPTS * NUM_CLASSES

    key = jax.random.PRNGKey(0)
    kx, kw, kb, kr, ka = jax.random.split(key, 5)

    x = jax.random.normal(kx, (B, NUM_FEATURES), dtype=jnp.float32)

    # projection = nn.Linear(NUM_FEATURES, P): torch weight layout is (P, F).
    w = jax.random.normal(kw, (P, NUM_FEATURES), dtype=jnp.float32)
    bias = jax.random.normal(kb, (P,), dtype=jnp.float32) * 0.5
    relevances = jax.random.normal(
        kr, (B, NUM_CONCEPTS, NUM_CLASSES), dtype=jnp.float32)

    # TODO(synk): torch.autograd.grad(aggregates, x, grad_outputs=ones) depends
    # on the upstream graph that produced `aggregates`, which is external to
    # this module; we reproduce it with a synthetic linear aggregator + jax.vjp
    # in plain-JAX glue.  The Pallas kernel covers the projection-matmul hot
    # path (the only heavy op in this loss).
    w_agg = (jax.random.normal(ka, (NUM_FEATURES, NUM_CLASSES), dtype=jnp.float32)
             * (1.0 / jnp.sqrt(NUM_FEATURES)))

    def agg_fn(xx):
        return xx @ w_agg                              # (B, NUM_CLASSES)

    aggregates, vjp_fn = jax.vjp(agg_fn, x)
    grad_tensor = jnp.ones((B, NUM_CLASSES), dtype=jnp.float32)
    (j_yx,) = vjp_fn(grad_tensor)                      # (B, NUM_FEATURES) f32

    # torch does projected.view(B, n_concepts, n_classes) - relevances; the
    # Frobenius norm is reshape-invariant, so a row-major (B, P) flatten of
    # relevances matches exactly.
    relevances_flat = relevances.reshape(B, P)

    # Weight quantized to bf16 ONCE, at "init" time (outside the per-call path).
    w_bf = w.astype(jnp.bfloat16)

    loss_fn = jax.jit(robustness_loss_pallas)
    loss = jax.block_until_ready(loss_fn(j_yx, w_bf, bias, relevances_flat))

    # f32 reference at HIGHEST matmul precision against the same bf16 weights
    # (kernel rounds J to bf16 on-tile -> ~1e-3 relative error on the matmul).
    proj_ref = lax.dot_general(
        j_yx, w_bf.astype(jnp.float32),
        dimension_numbers=(((1,), (1,)), ((), ())),
        precision=lax.Precision.HIGHEST) + bias[None, :]
    ref = jnp.sqrt(jnp.sum((proj_ref - relevances_flat) ** 2))

    assert jnp.allclose(loss, ref, rtol=1e-2, atol=1e-2), (loss, ref)
    print("KERNEL_OK")
</pallas_src>

<mosaic_0001>
module attributes {stable_mosaic.version = 11 : i64} {
  func.func @kernel(%arg0: i32, %arg1: i32, %arg2: memref<32x4608xf32, #tpu.memory_space<vmem>>, %arg3: memref<160x4608xbf16, #tpu.memory_space<vmem>>, %arg4: memref<1x10xf32, #tpu.memory_space<vmem>>, %arg5: memref<2x10xf32, #tpu.memory_space<vmem>>, %arg6: memref<1x1xf32, #tpu.memory_space<vmem>>, %arg7: memref<32x160xf32, #tpu.memory_space<vmem>>) attributes {dimension_semantics = [#tpu.dimension_semantics<arbitrary>, #tpu.dimension_semantics<arbitrary>], iteration_bounds = array<i64: 1, 2>, scalar_prefetch = 0 : i64, scratch_operands = 1 : i64, tpu.core_type = #tpu.core_type<tc>, window_params = [{transform_indices = @transform_0, window_bounds = array<i64: 32, 4608>}, {transform_indices = @transform_1, window_bounds = array<i64: 160, 4608>}, {pipeline_mode = #tpu.pipeline_mode<synchronous>, transform_indices = @transform_2, window_bounds = array<i64: 1, 10>}, {pipeline_mode = #tpu.pipeline_mode<synchronous>, transform_indices = @transform_3, window_bounds = array<i64: 2, 10>}, {pipeline_mode = #tpu.pipeline_mode<synchronous>, transform_indices = @transform_4, window_bounds = array<i64: 1, 1>}]} {
    %c0_i32 = arith.constant 0 : i32
    %0 = arith.cmpi eq, %arg1, %c0_i32 : i32
    %1 = arith.extui %0 : i1 to i32
    %c0_i32_0 = arith.constant 0 : i32
    %2 = arith.cmpi ne, %1, %c0_i32_0 : i32
    scf.if %2 {
      %cst_9 = arith.constant 0.000000e+00 : f32
      %13 = vector.broadcast %cst_9 : f32 to vector<32x160xf32>
      %c0_10 = arith.constant 0 : index
      %c0_11 = arith.constant 0 : index
      %14 = vector.load %arg7[%c0_10, %c0_11] : memref<32x160xf32, #tpu.memory_space<vmem>>, vector<32x160xf32>
      tpu.vector_store %arg7[%c0_10, %c0_11], %13 {strides = array<i32>} : memref<32x160xf32, #tpu.memory_space<vmem>>, vector<32x160xf32>,
    } else {
    }
    %c0 = arith.constant 0 : index
    %c0_1 = arith.constant 0 : index
    %3 = vector.load %arg7[%c0, %c0_1] : memref<32x160xf32, #tpu.memory_space<vmem>>, vector<32x160xf32>
    %c0_2 = arith.constant 0 : index
    %c0_3 = arith.constant 0 : index
    %4 = vector.load %arg2[%c0_2, %c0_3] : memref<32x4608xf32, #tpu.memory_space<vmem>>, vector<32x4608xf32>
    %5 = arith.truncf %4 : vector<32x4608xf32> to vector<32x4608xbf16>
    %c0_4 = arith.constant 0 : index
    %c0_5 = arith.constant 0 : index
    %6 = vector.load %arg3[%c0_4, %c0_5] : memref<160x4608xbf16, #tpu.memory_space<vmem>>, vector<160x4608xbf16>
    %cst = arith.constant dense<0.000000e+00> : vector<32x160xf32>
    %7 = tpu.matmul %5, %6, %cst {dimension_numbers = #tpu.dot_dimension_numbers<[1], [1], [0], [0], [0, 0, 1, 0], [], []>} : vector<32x4608xbf16>, vector<160x4608xbf16>, vector<32x160xf32> -> vector<32x160xf32>
    %8 = arith.addf %3, %7 : vector<32x160xf32>
    %c0_6 = arith.constant 0 : index
    %c0_7 = arith.constant 0 : index
    %9 = vector.load %arg7[%c0_6, %c0_7] : memref<32x160xf32, #tpu.memory_space<vmem>>, vector<32x160xf32>
    tpu.vector_store %arg7[%c0_6, %c0_7], %8 {strides = array<i32>} : memref<32x160xf32, #tpu.memory_space<vmem>>, vector<32x160xf32>,
    %c1_i32 = arith.constant 1 : i32
    %10 = arith.cmpi eq, %arg1, %c1_i32 : i32
    %11 = arith.extui %10 : i1 to i32
    %c0_i32_8 = arith.constant 0 : i32
    %12 = arith.cmpi ne, %11, %c0_i32_8 : i32
    scf.if %12 {
      %c0_9 = arith.constant 0 : index
      %c0_10 = arith.constant 0 : index
      %13 = vector.load %arg7[%c0_9, %c0_10] : memref<32x160xf32, #tpu.memory_space<vmem>>, vector<32x160xf32>
      %14 = tpu.iota {dimensions = array<i32: 0>} : vector<32x160xi32>
      %15 = tpu.iota {dimensions = array<i32: 1>} : vector<32x160xi32>
      %c15_i32 = arith.constant 15 : i32
      %16 = vector.broadcast %c15_i32 : i32 to vector<32x160xi32>
      %17 = arith.andi %14, %16 : vector<32x160xi32>
      %c15_i32_11 = arith.constant 15 : i32
      %18 = vector.broadcast %c15_i32_11 : i32 to vector<32x160xi32>
      %19 = arith.andi %15, %18 : vector<32x160xi32>
      %20 = arith.cmpi eq, %17, %19 : vector<32x160xi32>
      %cst_12 = arith.constant 0.000000e+00 : f32
      %21 = vector.broadcast %cst_12 : f32 to vector<32x160xf32>
      %22 = arith.select %20, %13, %21 : vector<32x160xi1>, vector<32x160xf32>
      %23 = tpu.iota {dimensions = array<i32: 0>} : vector<160x10xi32>
      %24 = tpu.iota {dimensions = array<i32: 1>} : vector<160x10xi32>
      %c4_i32 = arith.constant 4 : i32
      %25 = vector.broadcast %c4_i32 : i32 to vector<160x10xi32>
      %26 = arith.shrsi %23, %25 : vector<160x10xi32>
      %27 = arith.cmpi eq, %26, %24 : vector<160x10xi32>
      %28 = arith.extui %27 : vector<160x10xi1> to vector<160x10xi32>
      %29 = arith.sitofp %28 : vector<160x10xi32> to vector<160x10xf32>
      %30 = tpu.iota {dimensions = array<i32: 0>} : vector<2x32xi32>
      %31 = tpu.iota {dimensions = array<i32: 1>} : vector<2x32xi32>
      %c4_i32_13 = arith.constant 4 : i32
      %32 = vector.broadcast %c4_i32_13 : i32 to vector<2x32xi32>
      %33 = arith.shrsi %31, %32 : vector<2x32xi32>
      %34 = arith.cmpi eq, %30, %33 : vector<2x32xi32>
      %35 = arith.extui %34 : vector<2x32xi1> to vector<2x32xi32>
      %36 = arith.sitofp %35 : vector<2x32xi32> to vector<2x32xf32>
      %cst_14 = arith.constant dense<0.000000e+00> : vector<32x10xf32>
      %37 = tpu.matmul %22, %29, %cst_14 {dimension_numbers = #tpu.dot_dimension_numbers<[1], [0], [0], [1], [0, 0, 1, 1], [], []>} : vector<32x160xf32>, vector<160x10xf32>, vector<32x10xf32> -> vector<32x10xf32>
      %cst_15 = arith.constant dense<0.000000e+00> : vector<2x10xf32>
      %38 = tpu.matmul %36, %37, %cst_15 {dimension_numbers = #tpu.dot_dimension_numbers<[1], [0], [0], [1], [0, 0, 1, 1], [], []>} : vector<2x32xf32>, vector<32x10xf32>, vector<2x10xf32> -> vector<2x10xf32>
      %c0_16 = arith.constant 0 : index
      %c0_17 = arith.constant 0 : index
      %39 = vector.load %arg4[%c0_16, %c0_17] : memref<1x10xf32, #tpu.memory_space<vmem>>, vector<1x10xf32>
      %40 = vector.broadcast %39 : vector<1x10xf32> to vector<2x10xf32>
      %41 = arith.addf %38, %40 : vector<2x10xf32>
      %c0_18 = arith.constant 0 : index
      %c0_19 = arith.constant 0 : index
      %42 = vector.load %arg5[%c0_18, %c0_19] : memref<2x10xf32, #tpu.memory_space<vmem>>, vector<2x10xf32>
      %43 = arith.subf %41, %42 : vector<2x10xf32>
      %44 = arith.mulf %43, %43 : vector<2x10xf32>
      %cst_20 = arith.constant dense<0.000000e+00> : vector<2xf32>
      %45 = vector.multi_reduction <add>, %44, %cst_20 [1] : vector<2x10xf32> to vector<2xf32>
      %46 = vector.shape_cast %45 : vector<2xf32> to vector<2x1xf32>
      %cst_21 = arith.constant dense<0.000000e+00> : vector<1xf32>
      %47 = vector.multi_reduction <add>, %46, %cst_21 [0] : vector<2x1xf32> to vector<1xf32>
      %48 = vector.shape_cast %47 : vector<1xf32> to vector<1x1xf32>
      %c0_22 = arith.constant 0 : index
      %c0_23 = arith.constant 0 : index
      %49 = vector.load %arg6[%c0_22, %c0_23] : memref<1x1xf32, #tpu.memory_space<vmem>>, vector<1x1xf32>
      tpu.vector_store %arg6[%c0_22, %c0_23], %48 {strides = array<i32>} : memref<1x1xf32, #tpu.memory_space<vmem>>, vector<1x1xf32>,
    } else {
    }
    return
  }
  func.func @transform_0(%arg0: i32, %arg1: i32) -> (i32, i32) {
    %c2_i32 = arith.constant 2 : i32
    %0 = arith.muli %arg0, %c2_i32 : i32
    %1 = arith.addi %0, %arg1 : i32
    %c0_i32 = arith.constant 0 : i32
    %c0_i32_0 = arith.constant 0 : i32
    return %c0_i32, %1 : i32, i32
  }
  func.func @transform_1(%arg0: i32, %arg1: i32) -> (i32, i32) {
    %c2_i32 = arith.constant 2 : i32
    %0 = arith.muli %arg0, %c2_i32 : i32
    %1 = arith.addi %0, %arg1 : i32
    %c0_i32 = arith.constant 0 : i32
    %c0_i32_0 = arith.constant 0 : i32
    return %c0_i32, %1 : i32, i32
  }
  func.func @transform_2(%arg0: i32, %arg1: i32) -> (i32, i32) {
    %c0_i32 = arith.constant 0 : i32
    %c0_i32_0 = arith.constant 0 : i32
    %c0_i32_1 = arith.constant 0 : i32
    return %c0_i32, %c0_i32_0 : i32, i32
  }
  func.func @transform_3(%arg0: i32, %arg1: i32) -> (i32, i32) {
    %c0_i32 = arith.constant 0 : i32
    %c0_i32_0 = arith.constant 0 : i32
    %c0_i32_1 = arith.constant 0 : i32
    return %c0_i32, %c0_i32_0 : i32, i32
  }
  func.func @transform_4(%arg0: i32, %arg1: i32) -> (i32, i32) {
    %c0_i32 = arith.constant 0 : i32
    %c0_i32_0 = arith.constant 0 : i32
    %c0_i32_1 = arith.constant 0 : i32
    return %c0_i32, %c0_i32_0 : i32, i32
  }
}

</mosaic_0001>

<llo_original>
// kernel: robustness_loss_pallas.1
$region0: #{robustness_loss_pallas.1}
  #allocation0 [shape = 'u32[]', space=smem, size = 0x4, offset = 0x4, fixed_abs, tag = 'smem constant byte address 0x4 - core index']
  #allocation1 [shape = 'u32[144,128]{1,0:T(1,128)}', space=vmem, size = 0x12000, scoped, tag = 'internal scratch']
  #allocation2 [shape = 'f32[32,160]{1,0:T(8,128)}', space=vmem, size = 0x8000, scoped, tag = 'scratch operand']
  %s0 = inlined_call_operand.vmem [shape: f32[32,9216], index: 0, kind: input, shape index: {}]
  %s1 = inlined_call_operand.vmem [shape: bf16[160,9216], index: 1, kind: input, shape index: {}]
  %s2 = inlined_call_operand.vmem [shape: f32[1,10], index: 2, kind: input, shape index: {}]
  %s3 = inlined_call_operand.vmem [shape: f32[2,10], index: 3, kind: input, shape index: {}]
  %s4 = inlined_call_operand.hbm [shape: f32[1,1], index: 4, kind: output, shape index: {}]
  %s5 = sld [smem:[#allocation0]]
  $region103: #{robustness_loss_pallas.1} parent=0
    _
  %s7 = ssub.s32 1, %s5
  %s8 = scalar_select 0, %s7, %s5
  $region1: #{robustness_loss_pallas.1} parent=0
    #allocation3 [shape = 'u8[1179648]{0}', space=vmem, size = 0x120000, scoped, tag = 'input window, operand 0']
    #allocation4 [shape = 'u8[2949120]{0}', space=vmem, size = 0x2d0000, scoped, tag = 'input window, operand 1']
    #allocation5 [shape = 'u8[512]{0}', space=vmem, size = 0x400, scoped, tag = 'output window, operand 0, single buffered']
    #allocation6 [shape = 's32[2]{0}', space=sflag, size = 0x8, scoped, tag = 'scoped memory for robustness_loss_pallas.1']
    %9 = vsyncpa [#allocation6], 0
    loop: start=0, step=1, limit=4
    $region2: #{robustness_loss_pallas.1} parent=1 // loop_pre_header
      _
    $region3: #{robustness_loss_pallas.1} parent=1 // loop_header
      %s11 = sphi 0, %s15
      %p12 = scmp.ge.s32.totalorder %s11, 4
      %s18 = sphi 0, %s30
      %s19 = sphi 0, %s26
      %s20 = sphi 0, %s18
      %s21 = sphi 0, %s19
      %s22 = sphi 0, %s20
      %s23 = sphi 0, %s21
      %s37 = sphi 0, %s39
      %s40 = sphi 0, %s37
      %s41 = sphi 0, %s40
      %s57 = sphi 0, %s41
      %s67 = sphi 0, %s69
      %s70 = sphi 0, %s67
      %s71 = sphi 0, %s70
      %s87 = sphi 0, %s71
      %s91 = sphi 0, %s91
      %s93 = sphi 0, %s91
      %s94 = sphi 0, %s93
      %s108 = sphi 0, %s94
      %s112 = sphi 0, %s112
      %s114 = sphi 0, %s112
      %s115 = sphi 0, %s114
      %s129 = sphi 0, %s115
      %s133 = sphi 0, %s133
      %s135 = sphi 0, %s133
      %s136 = sphi 0, %s135
      %s150 = sphi 0, %s136
    $region4: #{robustness_loss_pallas.1} parent=1 // loop_header_branch
      %14 = sbr.rel (%p12) target = $region8
    $region5: #{robustness_loss_pallas.1} parent=1 // loop_body
      %s16 = ssub.s32 %s11, 1
      %s17 = ssub.s32 %s11, 2
      %s24 = sadd.s32 1, %s19
      %p25 = scmp.ge.s32.totalorder %s24, 2
      %s26 = scalar_select %p25, 0, %s24
      %s27 = sadd.s32 1, %s18
      %s28 = scalar_select %p25, %s27, %s18
      %p29 = scmp.ge.s32.totalorder %s28, 1
      %s30 = scalar_select %p29, 0, %s28
      %s31 = smul.u32 %s18, 2
      %s32 = sadd.s32 %s31, %s19
      %s33 = smul.u32 %s30, 2
      %s34 = sadd.s32 %s33, %s26
      %s35 = ssub.s32 %s32, %s34
      %p36 = scmp.eq.s32.totalorder %s35, 0
      %s38 = sadd.s32 %s37, 1
      %s39 = scalar_select %p36, %s37, %s38
      %p42 = pneg %p36
      %p43 = scmp.eq.s32.totalorder %s11, 1
      %p44 = por %p42, %p43
      %p45 = scmp.ne.s32.totalorder %s37, %s40
      %p46 = scmp.eq.s32.totalorder %s11, 0
      %p47 = por %p45, %p46
      %p48 = scmp.ne.s32.totalorder %s37, %s40
      %p49 = scmp.eq.s32.totalorder %s16, 1
      %p50 = por %p48, %p49
      %p51 = scmp.ne.s32.totalorder %s40, %s41
      %p52 = scmp.eq.s32.totalorder %s16, 0
      %p53 = por %p51, %p52
      %p54 = scmp.ne.s32.totalorder %s40, %s41
      %p55 = scmp.eq.s32.totalorder %s17, 1
      %p56 = por %p54, %p55
      %p58 = scmp.ne.s32.totalorder %s41, %s57
      %p59 = scmp.eq.s32.totalorder %s17, 0
      %p60 = por %p58, %p59
      %s61 = smul.u32 %s18, 2
      %s62 = sadd.s32 %s61, %s19
      %s63 = smul.u32 %s30, 2
      %s64 = sadd.s32 %s63, %s26
      %s65 = ssub.s32 %s62, %s64
      %p66 = scmp.eq.s32.totalorder %s65, 0
      %s68 = sadd.s32 %s67, 1
      %s69 = scalar_select %p66, %s67, %s68
      %p72 = pneg %p66
      %p73 = scmp.eq.s32.totalorder %s11, 1
      %p74 = por %p72, %p73
      %p75 = scmp.ne.s32.totalorder %s67, %s70
      %p76 = scmp.eq.s32.totalorder %s11, 0
      %p77 = por %p75, %p76
      %p78 = scmp.ne.s32.totalorder %s67, %s70
      %p79 = scmp.eq.s32.totalorder %s16, 1
      %p80 = por %p78, %p79
      %p81 = scmp.ne.s32.totalorder %s70, %s71
      %p82 = scmp.eq.s32.totalorder %s16, 0
      %p83 = por %p81, %p82
      %p84 = scmp.ne.s32.totalorder %s70, %s71
      %p85 = scmp.eq.s32.totalorder %s17, 1
      %p86 = por %p84, %p85
      %p88 = scmp.ne.s32.totalorder %s71, %s87
      %p89 = scmp.eq.s32.totalorder %s17, 0
      %p90 = por %p88, %p89
      %s92 = sadd.s32 %s91, 1
      %p95 = scmp.eq.s32.totalorder %s11, 1
      %p96 = scmp.ne.s32.totalorder %s91, %s93
      %p97 = scmp.eq.s32.totalorder %s11, 0
      %p98 = por %p96, %p97
      %p99 = scmp.ne.s32.totalorder %s91, %s93
      %p100 = scmp.eq.s32.totalorder %s16, 1
      %p101 = por %p99, %p100
      %p102 = scmp.ne.s32.totalorder %s93, %s94
      %p103 = scmp.eq.s32.totalorder %s16, 0
      %p104 = por %p102, %p103
      %p105 = scmp.ne.s32.totalorder %s93, %s94
      %p106 = scmp.eq.s32.totalorder %s17, 1
      %p107 = por %p105, %p106
      %p109 = scmp.ne.s32.totalorder %s94, %s108
      %p110 = scmp.eq.s32.totalorder %s17, 0
      %p111 = por %p109, %p110
      %s113 = sadd.s32 %s112, 1
      %p116 = scmp.eq.s32.totalorder %s11, 1
      %p117 = scmp.ne.s32.totalorder %s112, %s114
      %p118 = scmp.eq.s32.totalorder %s11, 0
      %p119 = por %p117, %p118
      %p120 = scmp.ne.s32.totalorder %s112, %s114
      %p121 = scmp.eq.s32.totalorder %s16, 1
      %p122 = por %p120, %p121
      %p123 = scmp.ne.s32.totalorder %s114, %s115
      %p124 = scmp.eq.s32.totalorder %s16, 0
      %p125 = por %p123, %p124
      %p126 = scmp.ne.s32.totalorder %s114, %s115
      %p127 = scmp.eq.s32.totalorder %s17, 1
      %p128 = por %p126, %p127
      %p130 = scmp.ne.s32.totalorder %s115, %s129
      %p131 = scmp.eq.s32.totalorder %s17, 0
      %p132 = por %p130, %p131
      %s134 = sadd.s32 %s133, 1
      %p137 = scmp.eq.s32.totalorder %s11, 1
      %p138 = scmp.ne.s32.totalorder %s133, %s135
      %p139 = scmp.eq.s32.totalorder %s11, 0
      %p140 = por %p138, %p139
      %p141 = scmp.ne.s32.totalorder %s133, %s135
      %p142 = scmp.eq.s32.totalorder %s16, 1
      %p143 = por %p141, %p142
      %p144 = scmp.ne.s32.totalorder %s135, %s136
      %p145 = scmp.eq.s32.totalorder %s16, 0
      %p146 = por %p144, %p145
      %p147 = scmp.ne.s32.totalorder %s135, %s136
      %p148 = scmp.eq.s32.totalorder %s17, 1
      %p149 = por %p147, %p148
      %p151 = scmp.ne.s32.totalorder %s136, %s150
      %p152 = scmp.eq.s32.totalorder %s17, 0
      %p153 = por %p151, %p152
      %p154 = scmp.le.s32.totalorder 1, %s11
      %p155 = scmp.lt.s32.totalorder %s11, 3
      %p156 = pnand %p154, %p155
      %p157 = pneg %p156
      // Predicated region
      $region9: #{robustness_loss_pallas.1} parent=5 // pred_check
        _
      $region10: #{robustness_loss_pallas.1} parent=5 // pred_check_branch
        %159 = sbr.rel (%p156) target = $region12
      $region11: #{robustness_loss_pallas.1} parent=5 // pred_region
        %s160 = ssub.s32 %s11, 1
        // Predicated region
        $region13: #{robustness_loss_pallas.1} parent=11 // pred_check
          %p161 = pneg %p104
        $region14: #{robustness_loss_pallas.1} parent=11 // pred_check_branch
          %163 = sbr.rel (%p161) target = $region16
        $region15: #{robustness_loss_pallas.1} parent=11 // pred_region
          _
        $region16: #{robustness_loss_pallas.1} parent=11 // pred_fallthru
          _
        // Predicated region
        $region17: #{robustness_loss_pallas.1} parent=11 // pred_check
          %p164 = pneg %p125
        $region18: #{robustness_loss_pallas.1} parent=11 // pred_check_branch
          %166 = sbr.rel (%p164) target = $region20
        $region19: #{robustness_loss_pallas.1} parent=11 // pred_region
          _
        $region20: #{robustness_loss_pallas.1} parent=11 // pred_fallthru
          _
      $region12: #{robustness_loss_pallas.1} parent=5 // pred_fallthru
        _
      %p167 = scmp.lt.s32.totalorder %s11, 2
      // Predicated region
      $region21: #{robustness_loss_pallas.1} parent=5 // pred_check
        %p168 = pneg %p167
      $region22: #{robustness_loss_pallas.1} parent=5 // pred_check_branch
        %170 = sbr.rel (%p168) target = $region24
      $region23: #{robustness_loss_pallas.1} parent=5 // pred_region
        // Predicated region
        $region25: #{robustness_loss_pallas.1} parent=23 // pred_check
          %p171 = pneg %p47
        $region26: #{robustness_loss_pallas.1} parent=23 // pred_check_branch
          %173 = sbr.rel (%p171) target = $region28
        $region27: #{robustness_loss_pallas.1} parent=23 // pred_region
          %s174 = sand.u32 %s37, 1
          %s175 = sand.u32 %s37, 1
          %s176 = smul.addr %s175, 1152
          %s177 = scalar_lea.vmem [#allocation3], %s176
          %s178 = smul.u32 %s18, 2
          %s179 = sadd.s32 %s178, %s19
          %s180 = smul.u32 36, %s179
          %s181 = smul.addr %s180, 8
          %s182 = scalar_lea.vmem %s0, %s181
          // Predicated region
          $region29: #{robustness_loss_pallas.1} parent=27 // pred_check
            _
          $region30: #{robustness_loss_pallas.1} parent=27 // pred_check_branch
            %184 = sbr.rel (0) target = $region32
          $region31: #{robustness_loss_pallas.1} parent=27 // pred_region
            // Predicated region
            $region33: #{robustness_loss_pallas.1} parent=31 // pred_check
              _
            $region34: #{robustness_loss_pallas.1} parent=31 // pred_check_branch
              %186 = sbr.rel (0) target = $region36
            $region35: #{robustness_loss_pallas.1} parent=31 // pred_region
              loop: start=0, step=1, limit=1
              $region37: #{robustness_loss_pallas.1} parent=35 // loop_pre_header
                _
              $region38: #{robustness_loss_pallas.1} parent=35 // loop_header
                %s188 = sphi 0, %s192
                %p189 = scmp.ge.s32.totalorder %s188, 1
                %s193 = sphi %s182, %s182
                %s194 = sphi %s177, %s177
              $region39: #{robustness_loss_pallas.1} parent=35 // loop_header_branch
                %191 = sbr.rel (%p189) target = $region43
              $region40: #{robustness_loss_pallas.1} parent=35 // loop_body
                %v195 = vld [vmem:[%s193] sm:$0xff]
                %196 = vst [vmem:[%s194] sm:$0xff] %v195
                %v197 = vld [vmem:[%s193 + $0x8] sm:$0xff]
                %198 = vst [vmem:[%s194 + $0x8] sm:$0xff] %v197
                %v199 = vld [vmem:[%s193 + $0x10] sm:$0xff]
                %200 = vst [vmem:[%s194 + $0x10] sm:$0xff] %v199
                %v201 = vld [vmem:[%s193 + $0x18] sm:$0xff]
                %202 = vst [vmem:[%s194 + $0x18] sm:$0xff] %v201
                %v203 = vld [vmem:[%s193 + $0x20] sm:$0xff]
                %204 = vst [vmem:[%s194 + $0x20] sm:$0xff] %v203
                %v205 = vld [vmem:[%s193 + $0x28] sm:$0xff]
                %206 = vst [vmem:[%s194 + $0x28] sm:$0xff] %v205
                %v207 = vld [vmem:[%s193 + $0x30] sm:$0xff]
                %208 = vst [vmem:[%s194 + $0x30] sm:$0xff] %v207
                %v209 = vld [vmem:[%s193 + $0x38] sm:$0xff]
                %210 = vst [vmem:[%s194 + $0x38] sm:$0xff] %v209
                %v211 = vld [vmem:[%s193 + $0x40] sm:$0xff]
                %212 = vst [vmem:[%s194 + $0x40] sm:$0xff] %v211
                %v213 = vld [vmem:[%s193 + $0x48] sm:$0xff]
                %214 = vst [vmem:[%s194 + $0x48] sm:$0xff] %v213
                %v215 = vld [vmem:[%s193 + $0x50] sm:$0xff]
                %216 = vst [vmem:[%s194 + $0x50] sm:$0xff] %v215
                %v217 = vld [vmem:[%s193 + $0x58] sm:$0xff]
                %218 = vst [vmem:[%s194 + $0x58] sm:$0xff] %v217
                %v219 = vld [vmem:[%s193 + $0x60] sm:$0xff]
                %220 = vst [vmem:[%s194 + $0x60] sm:$0xff] %v219
                %v221 = vld [vmem:[%s193 + $0x68] sm:$0xff]
                %222 = vst [vmem:[%s194 + $0x68] sm:$0xff] %v221
                %v223 = vld [vmem:[%s193 + $0x70] sm:$0xff]
                %224 = vst [vmem:[%s194 + $0x70] sm:$0xff] %v223
                %v225 = vld [vmem:[%s193 + $0x78] sm:$0xff]
                %226 = vst [vmem:[%s194 + $0x78] sm:$0xff] %v225
                %v227 = vld [vmem:[%s193 + $0x80] sm:$0xff]
                %228 = vst [vmem:[%s194 + $0x80] sm:$0xff] %v227
                %v229 = vld [vmem:[%s193 + $0x88] sm:$0xff]
                %230 = vst [vmem:[%s194 + $0x88] sm:$0xff] %v229
                %v231 = vld [vmem:[%s193 + $0x90] sm:$0xff]
                %232 = vst [vmem:[%s194 + $0x90] sm:$0xff] %v231
                %v233 = vld [vmem:[%s193 + $0x98] sm:$0xff]
                %234 = vst [vmem:[%s194 + $0x98] sm:$0xff] %v233
                %v235 = vld [vmem:[%s193 + $0xa0] sm:$0xff]
                %236 = vst [vmem:[%s194 + $0xa0] sm:$0xff] %v235
                %v237 = vld [vmem:[%s193 + $0xa8] sm:$0xff]
                %238 = vst [vmem:[%s194 + $0xa8] sm:$0xff] %v237
                %v239 = vld [vmem:[%s193 + $0xb0] sm:$0xff]
                %240 = vst [vmem:[%s194 + $0xb0] sm:$0xff] %v239
                %v241 = vld [vmem:[%s193 + $0xb8] sm:$0xff]
                %242 = vst [vmem:[%s194 + $0xb8] sm:$0xff] %v241
                %v243 = vld [vmem:[%s193 + $0xc0] sm:$0xff]
                %244 = vst [vmem:[%s194 + $0xc0] sm:$0xff] %v243
                %v245 = vld [vmem:[%s193 + $0xc8] sm:$0xff]
                %246 = vst [vmem:[%s194 + $0xc8] sm:$0xff] %v245
                %v247 = vld [vmem:[%s193 + $0xd0] sm:$0xff]
                %248 = vst [vmem:[%s194 + $0xd0] sm:$0xff] %v247
                %v249 = vld [vmem:[%s193 + $0xd8] sm:$0xff]
                %250 = vst [vmem:[%s194 + $0xd8] sm:$0xff] %v249
                %v251 = vld [vmem:[%s193 + $0xe0] sm:$0xff]
                %252 = vst [vmem:[%s194 + $0xe0] sm:$0xff] %v251
                %v253 = vld [vmem:[%s193 + $0xe8] sm:$0xff]
                %254 = vst [vmem:[%s194 + $0xe8] sm:$0xff] %v253
                %v255 = vld [vmem:[%s193 + $0xf0] sm:$0xff]
                %256 = vst [vmem:[%s194 + $0xf0] sm:$0xff] %v255
                %v257 = vld [vmem:[%s193 + $0xf8] sm:$0xff]
                %258 = vst [vmem:[%s194 + $0xf8] sm:$0xff] %v257
                %v259 = vld [vmem:[%s193 + $0x100] sm:$0xff]
                %260 = vst [vmem:[%s194 + $0x100] sm:$0xff] %v259
                %v261 = vld [vmem:[%s193 + $0x108] sm:$0xff]
                %262 = vst [vmem:[%s194 + $0x108] sm:$0xff] %v261
                %v263 = vld [vmem:[%s193 + $0x110] sm:$0xff]
                %264 = vst [vmem:[%s194 + $0x110] sm:$0xff] %v263
                %v265 = vld [vmem:[%s193 + $0x118] sm:$0xff]
                %266 = vst [vmem:[%s194 + $0x118] sm:$0xff] %v265
                %v267 = vld [vmem:[%s193 + $0x240] sm:$0xff]
                %268 = vst [vmem:[%s194 + $0x120] sm:$0xff] %v267
                %v269 = vld [vmem:[%s193 + $0x248] sm:$0xff]
                %270 = vst [vmem:[%s194 + $0x128] sm:$0xff] %v269
                %v271 = vld [vmem:[%s193 + $0x250] sm:$0xff]
                %272 = vst [vmem:[%s194 + $0x130] sm:$0xff] %v271
                %v273 = vld [vmem:[%s193 + $0x258] sm:$0xff]
                %274 = vst [vmem:[%s194 + $0x138] sm:$0xff] %v273
                %v275 = vld [vmem:[%s193 + $0x260] sm:$0xff]
                %276 = vst [vmem:[%s194 + $0x140] sm:$0xff] %v275
                %v277 = vld [vmem:[%s193 + $0x268] sm:$0xff]
                %278 = vst [vmem:[%s194 + $0x148] sm:$0xff] %v277
                %v279 = vld [vmem:[%s193 + $0x270] sm:$0xff]
                %280 = vst [vmem:[%s194 + $0x150] sm:$0xff] %v279
                %v281 = vld [vmem:[%s193 + $0x278] sm:$0xff]
                %282 = vst [vmem:[%s194 + $0x158] sm:$0xff] %v281
                %v283 = vld [vmem:[%s193 + $0x280] sm:$0xff]
                %284 = vst [vmem:[%s194 + $0x160] sm:$0xff] %v283
                %v285 = vld [vmem:[%s193 + $0x288] sm:$0xff]
                %286 = vst [vmem:[%s194 + $0x168] sm:$0xff] %v285
                %v287 = vld [vmem:[%s193 + $0x290] sm:$0xff]
                %288 = vst [vmem:[%s194 + $0x170] sm:$0xff] %v287
                %v289 = vld [vmem:[%s193 + $0x298] sm:$0xff]
                %290 = vst [vmem:[%s194 + $0x178] sm:$0xff] %v289
                %v291 = vld [vmem:[%s193 + $0x2a0] sm:$0xff]
                %292 = vst [vmem:[%s194 + $0x180] sm:$0xff] %v291
                %v293 = vld [vmem:[%s193 + $0x2a8] sm:$0xff]
                %294 = vst [vmem:[%s194 + $0x188] sm:$0xff] %v293
                %v295 = vld [vmem:[%s193 + $0x2b0] sm:$0xff]
                %296 = vst [vmem:[%s194 + $0x190] sm:$0xff] %v295
                %v297 = vld [vmem:[%s193 + $0x2b8] sm:$0xff]
                %298 = vst [vmem:[%s194 + $0x198] sm:$0xff] %v297
                %v299 = vld [vmem:[%s193 + $0x2c0] sm:$0xff]
                %300 = vst [vmem:[%s194 + $0x1a0] sm:$0xff] %v299
                %v301 = vld [vmem:[%s193 + $0x2c8] sm:$0xff]
                %302 = vst [vmem:[%s194 + $0x1a8] sm:$0xff] %v301
                %v303 = vld [vmem:[%s193 + $0x2d0] sm:$0xff]
                %304 = vst [vmem:[%s194 + $0x1b0] sm:$0xff] %v303
                %v305 = vld [vmem:[%s193 + $0x2d8] sm:$0xff]
                %306 = vst [vmem:[%s194 + $0x1b8] sm:$0xff] %v305
                %v307 = vld [vmem:[%s193 + $0x2e0] sm:$0xff]
                %308 = vst [vmem:[%s194 + $0x1c0] sm:$0xff] %v307
                %v309 = vld [vmem:[%s193 + $0x2e8] sm:$0xff]
                %310 = vst [vmem:[%s194 + $0x1c8] sm:$0xff] %v309
                %v311 = vld [vmem:[%s193 + $0x2f0] sm:$0xff]
                %312 = vst [vmem:[%s194 + $0x1d0] sm:$0xff] %v311
                %v313 = vld [vmem:[%s193 + $0x2f8] sm:$0xff]
                %314 = vst [vmem:[%s194 + $0x1d8] sm:$0xff] %v313
                %v315 = vld [vmem:[%s193 + $0x300] sm:$0xff]
                %316 = vst [vmem:[%s194 + $0x1e0] sm:$0xff] %v315
                %v317 = vld [vmem:[%s193 + $0x308] sm:$0xff]
                %318 = vst [vmem:[%s194 + $0x1e8] sm:$0xff] %v317
                %v319 = vld [vmem:[%s193 + $0x310] sm:$0xff]
                %320 = vst [vmem:[%s194 + $0x1f0] sm:$0xff] %v319
                %v321 = vld [vmem:[%s193 + $0x318] sm:$0xff]
                %322 = vst [vmem:[%s194 + $0x1f8] sm:$0xff] %v321
                %v323 = vld [vmem:[%s193 + $0x320] sm:$0xff]
                %324 = vst [vmem:[%s194 + $0x200] sm:$0xff] %v323
                %v325 = vld [vmem:[%s193 + $0x328] sm:$0xff]
                %326 = vst [vmem:[%s194 + $0x208] sm:$0xff] %v325
                %v327 = vld [vmem:[%s193 + $0x330] sm:$0xff]
                %328 = vst [vmem:[%s194 + $0x210] sm:$0xff] %v327
                %v329 = vld [vmem:[%s193 + $0x338] sm:$0xff]
                %330 = vst [vmem:[%s194 + $0x218] sm:$0xff] %v329
                %v331 = vld [vmem:[%s193 + $0x340] sm:$0xff]
                %332 = vst [vmem:[%s194 + $0x220] sm:$0xff] %v331
                %v333 = vld [vmem:[%s193 + $0x348] sm:$0xff]
                %334 = vst [vmem:[%s194 + $0x228] sm:$0xff] %v333
                %v335 = vld [vmem:[%s193 + $0x350] sm:$0xff]
                %336 = vst [vmem:[%s194 + $0x230] sm:$0xff] %v335
                %v337 = vld [vmem:[%s193 + $0x358] sm:$0xff]
                %338 = vst [vmem:[%s194 + $0x238] sm:$0xff] %v337
                %v339 = vld [vmem:[%s193 + $0x480] sm:$0xff]
                %340 = vst [vmem:[%s194 + $0x240] sm:$0xff] %v339
                %v341 = vld [vmem:[%s193 + $0x488] sm:$0xff]
                %342 = vst [vmem:[%s194 + $0x248] sm:$0xff] %v341
                %v343 = vld [vmem:[%s193 + $0x490] sm:$0xff]
                %344 = vst [vmem:[%s194 + $0x250] sm:$0xff] %v343
                %v345 = vld [vmem:[%s193 + $0x498] sm:$0xff]
                %346 = vst [vmem:[%s194 + $0x258] sm:$0xff] %v345
                %v347 = vld [vmem:[%s193 + $0x4a0] sm:$0xff]
                %348 = vst [vmem:[%s194 + $0x260] sm:$0xff] %v347
                %v349 = vld [vmem:[%s193 + $0x4a8] sm:$0xff]
                %350 = vst [vmem:[%s194 + $0x268] sm:$0xff] %v349
                %v351 = vld [vmem:[%s193 + $0x4b0] sm:$0xff]
                %352 = vst [vmem:[%s194 + $0x270] sm:$0xff] %v351
                %v353 = vld [vmem:[%s193 + $0x4b8] sm:$0xff]
                %354 = vst [vmem:[%s194 + $0x278] sm:$0xff] %v353
                %v355 = vld [vmem:[%s193 + $0x4c0] sm:$0xff]
                %356 = vst [vmem:[%s194 + $0x280] sm:$0xff] %v355
                %v357 = vld [vmem:[%s193 + $0x4c8] sm:$0xff]
                %358 = vst [vmem:[%s194 + $0x288] sm:$0xff] %v357
                %v359 = vld [vmem:[%s193 + $0x4d0] sm:$0xff]
                %360 = vst [vmem:[%s194 + $0x290] sm:$0xff] %v359
                %v361 = vld [vmem:[%s193 + $0x4d8] sm:$0xff]
                %362 = vst [vmem:[%s194 + $0x298] sm:$0xff] %v361
                %v363 = vld [vmem:[%s193 + $0x4e0] sm:$0xff]
                %364 = vst [vmem:[%s194 + $0x2a0] sm:$0xff] %v363
                %v365 = vld [vmem:[%s193 + $0x4e8] sm:$0xff]
                %366 = vst [vmem:[%s194 + $0x2a8] sm:$0xff] %v365
                %v367 = vld [vmem:[%s193 + $0x4f0] sm:$0xff]
                %368 = vst [vmem:[%s194 + $0x2b0] sm:$0xff] %v367
                %v369 = vld [vmem:[%s193 + $0x4f8] sm:$0xff]
                %370 = vst [vmem:[%s194 + $0x2b8] sm:$0xff] %v369
                %v371 = vld [vmem:[%s193 + $0x500] sm:$0xff]
                %372 = vst [vmem:[%s194 + $0x2c0] sm:$0xff] %v371
                %v373 = vld [vmem:[%s193 + $0x508] sm:$0xff]
                %374 = vst [vmem:[%s194 + $0x2c8] sm:$0xff] %v373
                %v375 = vld [vmem:[%s193 + $0x510] sm:$0xff]
                %376 = vst [vmem:[%s194 + $0x2d0] sm:$0xff] %v375
                %v377 = vld [vmem:[%s193 + $0x518] sm:$0xff]
                %378 = vst [vmem:[%s194 + $0x2d8] sm:$0xff] %v377
                %v379 = vld [vmem:[%s193 + $0x520] sm:$0xff]
                %380 = vst [vmem:[%s194 + $0x2e0] sm:$0xff] %v379
                %v381 = vld [vmem:[%s193 + $0x528] sm:$0xff]
                %382 = vst [vmem:[%s194 + $0x2e8] sm:$0xff] %v381
                %v383 = vld [vmem:[%s193 + $0x530] sm:$0xff]
                %384 = vst [vmem:[%s194 + $0x2f0] sm:$0xff] %v383
                %v385 = vld [vmem:[%s193 + $0x538] sm:$0xff]
                %386 = vst [vmem:[%s194 + $0x2f8] sm:$0xff] %v385
                %v387 = vld [vmem:[%s193 + $0x540] sm:$0xff]
                %388 = vst [vmem:[%s194 + $0x300] sm:$0xff] %v387
                %v389 = vld [vmem:[%s193 + $0x548] sm:$0xff]
                %390 = vst [vmem:[%s194 + $0x308] sm:$0xff] %v389
                %v391 = vld [vmem:[%s193 + $0x550] sm:$0xff]
                %392 = vst [vmem:[%s194 + $0x310] sm:$0xff] %v391
                %v393 = vld [vmem:[%s193 + $0x558] sm:$0xff]
                %394 = vst [vmem:[%s194 + $0x318] sm:$0xff] %v393
                %v395 = vld [vmem:[%s193 + $0x560] sm:$0xff]
                %396 = vst [vmem:[%s194 + $0x320] sm:$0xff] %v395
                %v397 = vld [vmem:[%s193 + $0x568] sm:$0xff]
                %398 = vst [vmem:[%s194 + $0x328] sm:$0xff] %v397
                %v399 = vld [vmem:[%s193 + $0x570] sm:$0xff]
                %400 = vst [vmem:[%s194 + $0x330] sm:$0xff] %v399
                %v401 = vld [vmem:[%s193 + $0x578] sm:$0xff]
                %402 = vst [vmem:[%s194 + $0x338] sm:$0xff] %v401
                %v403 = vld [vmem:[%s193 + $0x580] sm:$0xff]
                %404 = vst [vmem:[%s194 + $0x340] sm:$0xff] %v403
                %v405 = vld [vmem:[%s193 + $0x588] sm:$0xff]
                %406 = vst [vmem:[%s194 + $0x348] sm:$0xff] %v405
                %v407 = vld [vmem:[%s193 + $0x590] sm:$0xff]
                %408 = vst [vmem:[%s194 + $0x350] sm:$0xff] %v407
                %v409 = vld [vmem:[%s193 + $0x598] sm:$0xff]
                %410 = vst [vmem:[%s194 + $0x358] sm:$0xff] %v409
                %v411 = vld [vmem:[%s193 + $0x6c0] sm:$0xff]
                %412 = vst [vmem:[%s194 + $0x360] sm:$0xff] %v411
                %v413 = vld [vmem:[%s193 + $0x6c8] sm:$0xff]
                %414 = vst [vmem:[%s194 + $0x368] sm:$0xff] %v413
                %v415 = vld [vmem:[%s193 + $0x6d0] sm:$0xff]
                %416 = vst [vmem:[%s194 + $0x370] sm:$0xff] %v415
                %v417 = vld [vmem:[%s193 + $0x6d8] sm:$0xff]
                %418 = vst [vmem:[%s194 + $0x378] sm:$0xff] %v417
                %v419 = vld [vmem:[%s193 + $0x6e0] sm:$0xff]
                %420 = vst [vmem:[%s194 + $0x380] sm:$0xff] %v419
                %v421 = vld [vmem:[%s193 + $0x6e8] sm:$0xff]
                %422 = vst [vmem:[%s194 + $0x388] sm:$0xff] %v421
                %v423 = vld [vmem:[%s193 + $0x6f0] sm:$0xff]
                %424 = vst [vmem:[%s194 + $0x390] sm:$0xff] %v423
                %v425 = vld [vmem:[%s193 + $0x6f8] sm:$0xff]
                %426 = vst [vmem:[%s194 + $0x398] sm:$0xff] %v425
                %v427 = vld [vmem:[%s193 + $0x700] sm:$0xff]
                %428 = vst [vmem:[%s194 + $0x3a0] sm:$0xff] %v427
                %v429 = vld [vmem:[%s193 + $0x708] sm:$0xff]
                %430 = vst [vmem:[%s194 + $0x3a8] sm:$0xff] %v429
                %v431 = vld [vmem:[%s193 + $0x710] sm:$0xff]
                %432 = vst [vmem:[%s194 + $0x3b0] sm:$0xff] %v431
                %v433 = vld [vmem:[%s193 + $0x718] sm:$0xff]
                %434 = vst [vmem:[%s194 + $0x3b8] sm:$0xff] %v433
                %v435 = vld [vmem:[%s193 + $0x720] sm:$0xff]
                %436 = vst [vmem:[%s194 + $0x3c0] sm:$0xff] %v435
                %v437 = vld [vmem:[%s193 + $0x728] sm:$0xff]
                %438 = vst [vmem:[%s194 + $0x3c8] sm:$0xff] %v437
                %v439 = vld [vmem:[%s193 + $0x730] sm:$0xff]
                %440 = vst [vmem:[%s194 + $0x3d0] sm:$0xff] %v439
                %v441 = vld [vmem:[%s193 + $0x738] sm:$0xff]
                %442 = vst [vmem:[%s194 + $0x3d8] sm:$0xff] %v441
                %v443 = vld [vmem:[%s193 + $0x740] sm:$0xff]
                %444 = vst [vmem:[%s194 + $0x3e0] sm:$0xff] %v443
                %v445 = vld [vmem:[%s193 + $0x748] sm:$0xff]
                %446 = vst [vmem:[%s194 + $0x3e8] sm:$0xff] %v445
                %v447 = vld [vmem:[%s193 + $0x750] sm:$0xff]
                %448 = vst [vmem:[%s194 + $0x3f0] sm:$0xff] %v447
                %v449 = vld [vmem:[%s193 + $0x758] sm:$0xff]
                %450 = vst [vmem:[%s194 + $0x3f8] sm:$0xff] %v449
                %v451 = vld [vmem:[%s193 + $0x760] sm:$0xff]
                %452 = vst [vmem:[%s194 + $0x400] sm:$0xff] %v451
                %v453 = vld [vmem:[%s193 + $0x768] sm:$0xff]
                %454 = vst [vmem:[%s194 + $0x408] sm:$0xff] %v453
                %v455 = vld [vmem:[%s193 + $0x770] sm:$0xff]
                %456 = vst [vmem:[%s194 + $0x410] sm:$0xff] %v455
                %v457 = vld [vmem:[%s193 + $0x778] sm:$0xff]
                %458 = vst [vmem:[%s194 + $0x418] sm:$0xff] %v457
                %v459 = vld [vmem:[%s193 + $0x780] sm:$0xff]
                %460 = vst [vmem:[%s194 + $0x420] sm:$0xff] %v459
                %v461 = vld [vmem:[%s193 + $0x788] sm:$0xff]
                %462 = vst [vmem:[%s194 + $0x428] sm:$0xff] %v461
                %v463 = vld [vmem:[%s193 + $0x790] sm:$0xff]
                %464 = vst [vmem:[%s194 + $0x430] sm:$0xff] %v463
                %v465 = vld [vmem:[%s193 + $0x798] sm:$0xff]
                %466 = vst [vmem:[%s194 + $0x438] sm:$0xff] %v465
                %v467 = vld [vmem:[%s193 + $0x7a0] sm:$0xff]
                %468 = vst [vmem:[%s194 + $0x440] sm:$0xff] %v467
                %v469 = vld [vmem:[%s193 + $0x7a8] sm:$0xff]
                %470 = vst [vmem:[%s194 + $0x448] sm:$0xff] %v469
                %v471 = vld [vmem:[%s193 + $0x7b0] sm:$0xff]
                %472 = vst [vmem:[%s194 + $0x450] sm:$0xff] %v471
                %v473 = vld [vmem:[%s193 + $0x7b8] sm:$0xff]
                %474 = vst [vmem:[%s194 + $0x458] sm:$0xff] %v473
                %v475 = vld [vmem:[%s193 + $0x7c0] sm:$0xff]
                %476 = vst [vmem:[%s194 + $0x460] sm:$0xff] %v475
                %v477 = vld [vmem:[%s193 + $0x7c8] sm:$0xff]
                %478 = vst [vmem:[%s194 + $0x468] sm:$0xff] %v477
                %v479 = vld [vmem:[%s193 + $0x7d0] sm:$0xff]
                %480 = vst [vmem:[%s194 + $0x470] sm:$0xff] %v479
                %v481 = vld [vmem:[%s193 + $0x7d8] sm:$0xff]
                %482 = vst [vmem:[%s194 + $0x478] sm:$0xff] %v481
              $region41: #{robustness_loss_pallas.1} parent=35 // loop_footer
                %s192 = sadd.s32 1, %s188
              $region42: #{robustness_loss_pallas.1} parent=35 // loop_footer_branch
                %187 = sbr.rel target = $region38
              $region43: #{robustness_loss_pallas.1} parent=35 // loop_exit
                _
            $region36: #{robustness_loss_pallas.1} parent=31 // pred_fallthru
              _
            // Predicated region
            $region44: #{robustness_loss_pallas.1} parent=31 // pred_check
              _
            $region45: #{robustness_loss_pallas.1} parent=31 // pred_check_branch
              %484 = sbr.rel target = $region47
            $region46: #{robustness_loss_pallas.1} parent=31 // pred_region
              _
            $region47: #{robustness_loss_pallas.1} parent=31 // pred_fallthru
              _
          $region32: #{robustness_loss_pallas.1} parent=27 // pred_fallthru
            _
          %485 = vnop
        $region28: #{robustness_loss_pallas.1} parent=23 // pred_fallthru
          _
        // Predicated region
        $region48: #{robustness_loss_pallas.1} parent=23 // pred_check
          %p486 = pneg %p77
        $region49: #{robustness_loss_pallas.1} parent=23 // pred_check_branch
          %488 = sbr.rel (%p486) target = $region51
        $region50: #{robustness_loss_pallas.1} parent=23 // pred_region
          %s489 = sand.u32 %s67, 1
          %s490 = sand.u32 %s67, 1
          %s491 = smul.addr %s490, 2880
          %s492 = scalar_lea.vmem [#allocation4], %s491
          %s493 = smul.u32 %s18, 2
          %s494 = sadd.s32 %s493, %s19
          %s495 = smul.u32 36, %s494
          %s496 = smul.addr %s495, 4
          %s497 = scalar_lea.vmem %s1, %s496
          // Predicated region
          $region52: #{robustness_loss_pallas.1} parent=50 // pred_check
            _
          $region53: #{robustness_loss_pallas.1} parent=50 // pred_check_branch
            %499 = sbr.rel (0) target = $region55
          $region54: #{robustness_loss_pallas.1} parent=50 // pred_region
            // Predicated region
            $region56: #{robustness_loss_pallas.1} parent=54 // pred_check
              _
            $region57: #{robustness_loss_pallas.1} parent=54 // pred_check_branch
              %501 = sbr.rel (0) target = $region59
            $region58: #{robustness_loss_pallas.1} parent=54 // pred_region
              loop: start=0, step=1, limit=1
              $region60: #{robustness_loss_pallas.1} parent=58 // loop_pre_header
                _
              $region61: #{robustness_loss_pallas.1} parent=58 // loop_header
                %s503 = sphi 0, %s507
                %p504 = scmp.ge.s32.totalorder %s503, 1
                %s508 = sphi %s497, %s497
                %s509 = sphi %s492, %s492
              $region62: #{robustness_loss_pallas.1} parent=58 // loop_header_branch
                %506 = sbr.rel (%p504) target = $region66
              $region63: #{robustness_loss_pallas.1} parent=58 // loop_body
                %v510 = vld [vmem:[%s508] sm:$0xff]
                %511 = vst [vmem:[%s509] sm:$0xff] %v510
                %v512 = vld [vmem:[%s508 + $0x8] sm:$0xff]
                %513 = vst [vmem:[%s509 + $0x8] sm:$0xff] %v512
                %v514 = vld [vmem:[%s508 + $0x10] sm:$0xff]
                %515 = vst [vmem:[%s509 + $0x10] sm:$0xff] %v514
                %v516 = vld [vmem:[%s508 + $0x18] sm:$0xff]
                %517 = vst [vmem:[%s509 + $0x18] sm:$0xff] %v516
                %v518 = vld [vmem:[%s508 + $0x20] sm:$0xff]
                %519 = vst [vmem:[%s509 + $0x20] sm:$0xff] %v518
                %v520 = vld [vmem:[%s508 + $0x28] sm:$0xff]
                %521 = vst [vmem:[%s509 + $0x28] sm:$0xff] %v520
                %v522 = vld [vmem:[%s508 + $0x30] sm:$0xff]
                %523 = vst [vmem:[%s509 + $0x30] sm:$0xff] %v522
                %v524 = vld [vmem:[%s508 + $0x38] sm:$0xff]
                %525 = vst [vmem:[%s509 + $0x38] sm:$0xff] %v524
                %v526 = vld [vmem:[%s508 + $0x40] sm:$0xff]
                %527 = vst [vmem:[%s509 + $0x40] sm:$0xff] %v526
                %v528 = vld [vmem:[%s508 + $0x48] sm:$0xff]
                %529 = vst [vmem:[%s509 + $0x48] sm:$0xff] %v528
                %v530 = vld [vmem:[%s508 + $0x50] sm:$0xff]
                %531 = vst [vmem:[%s509 + $0x50] sm:$0xff] %v530
                %v532 = vld [vmem:[%s508 + $0x58] sm:$0xff]
                %533 = vst [vmem:[%s509 + $0x58] sm:$0xff] %v532
                %v534 = vld [vmem:[%s508 + $0x60] sm:$0xff]
                %535 = vst [vmem:[%s509 + $0x60] sm:$0xff] %v534
                %v536 = vld [vmem:[%s508 + $0x68] sm:$0xff]
                %537 = vst [vmem:[%s509 + $0x68] sm:$0xff] %v536
                %v538 = vld [vmem:[%s508 + $0x70] sm:$0xff]
                %539 = vst [vmem:[%s509 + $0x70] sm:$0xff] %v538
                %v540 = vld [vmem:[%s508 + $0x78] sm:$0xff]
                %541 = vst [vmem:[%s509 + $0x78] sm:$0xff] %v540
                %v542 = vld [vmem:[%s508 + $0x80] sm:$0xff]
                %543 = vst [vmem:[%s509 + $0x80] sm:$0xff] %v542
                %v544 = vld [vmem:[%s508 + $0x88] sm:$0xff]
                %545 = vst [vmem:[%s509 + $0x88] sm:$0xff] %v544
                %v546 = vld [vmem:[%s508 + $0x120] sm:$0xff]
                %547 = vst [vmem:[%s509 + $0x90] sm:$0xff] %v546
                %v548 = vld [vmem:[%s508 + $0x128] sm:$0xff]
                %549 = vst [vmem:[%s509 + $0x98] sm:$0xff] %v548
                %v550 = vld [vmem:[%s508 + $0x130] sm:$0xff]
                %551 = vst [vmem:[%s509 + $0xa0] sm:$0xff] %v550
                %v552 = vld [vmem:[%s508 + $0x138] sm:$0xff]
                %553 = vst [vmem:[%s509 + $0xa8] sm:$0xff] %v552
                %v554 = vld [vmem:[%s508 + $0x140] sm:$0xff]
                %555 = vst [vmem:[%s509 + $0xb0] sm:$0xff] %v554
                %v556 = vld [vmem:[%s508 + $0x148] sm:$0xff]
                %557 = vst [vmem:[%s509 + $0xb8] sm:$0xff] %v556
                %v558 = vld [vmem:[%s508 + $0x150] sm:$0xff]
                %559 = vst [vmem:[%s509 + $0xc0] sm:$0xff] %v558
                %v560 = vld [vmem:[%s508 + $0x158] sm:$0xff]
                %561 = vst [vmem:[%s509 + $0xc8] sm:$0xff] %v560
                %v562 = vld [vmem:[%s508 + $0x160] sm:$0xff]
                %563 = vst [vmem:[%s509 + $0xd0] sm:$0xff] %v562
                %v564 = vld [vmem:[%s508 + $0x168] sm:$0xff]
                %565 = vst [vmem:[%s509 + $0xd8] sm:$0xff] %v564
                %v566 = vld [vmem:[%s508 + $0x170] sm:$0xff]
                %567 = vst [vmem:[%s509 + $0xe0] sm:$0xff] %v566
                %v568 = vld [vmem:[%s508 + $0x178] sm:$0xff]
                %569 = vst [vmem:[%s509 + $0xe8] sm:$0xff] %v568
                %v570 = vld [vmem:[%s508 + $0x180] sm:$0xff]
                %571 = vst [vmem:[%s509 + $0xf0] sm:$0xff] %v570
                %v572 = vld [vmem:[%s508 + $0x188] sm:$0xff]
                %573 = vst [vmem:[%s509 + $0xf8] sm:$0xff] %v572
                %v574 = vld [vmem:[%s508 + $0x190] sm:$0xff]
                %575 = vst [vmem:[%s509 + $0x100] sm:$0xff] %v574
                %v576 = vld [vmem:[%s508 + $0x198] sm:$0xff]
                %577 = vst [vmem:[%s509 + $0x108] sm:$0xff] %v576
                %v578 = vld [vmem:[%s508 + $0x1a0] sm:$0xff]
                %579 = vst [vmem:[%s509 + $0x110] sm:$0xff] %v578
                %v580 = vld [vmem:[%s508 + $0x1a8] sm:$0xff]
                %581 = vst [vmem:[%s509 + $0x118] sm:$0xff] %v580
                %v582 = vld [vmem:[%s508 + $0x240] sm:$0xff]
                %583 = vst [vmem:[%s509 + $0x120] sm:$0xff] %v582
                %v584 = vld [vmem:[%s508 + $0x248] sm:$0xff]
                %585 = vst [vmem:[%s509 + $0x128] sm:$0xff] %v584
                %v586 = vld [vmem:[%s508 + $0x250] sm:$0xff]
                %587 = vst [vmem:[%s509 + $0x130] sm:$0xff] %v586
                %v588 = vld [vmem:[%s508 + $0x258] sm:$0xff]
                %589 = vst [vmem:[%s509 + $0x138] sm:$0xff] %v588
                %v590 = vld [vmem:[%s508 + $0x260] sm:$0xff]
                %591 = vst [vmem:[%s509 + $0x140] sm:$0xff] %v590
                %v592 = vld [vmem:[%s508 + $0x268] sm:$0xff]
                %593 = vst [vmem:[%s509 + $0x148] sm:$0xff] %v592
                %v594 = vld [vmem:[%s508 + $0x270] sm:$0xff]
                %595 = vst [vmem:[%s509 + $0x150] sm:$0xff] %v594
                %v596 = vld [vmem:[%s508 + $0x278] sm:$0xff]
                %597 = vst [vmem:[%s509 + $0x158] sm:$0xff] %v596
                %v598 = vld [vmem:[%s508 + $0x280] sm:$0xff]
                %599 = vst [vmem:[%s509 + $0x160] sm:$0xff] %v598
                %v600 = vld [vmem:[%s508 + $0x288] sm:$0xff]
                %601 = vst [vmem:[%s509 + $0x168] sm:$0xff] %v600
                %v602 = vld [vmem:[%s508 + $0x290] sm:$0xff]
                %603 = vst [vmem:[%s509 + $0x170] sm:$0xff] %v602
                %v604 = vld [vmem:[%s508 + $0x298] sm:$0xff]
                %605 = vst [vmem:[%s509 + $0x178] sm:$0xff] %v604
                %v606 = vld [vmem:[%s508 + $0x2a0] sm:$0xff]
                %607 = vst [vmem:[%s509 + $0x180] sm:$0xff] %v606
                %v608 = vld [vmem:[%s508 + $0x2a8] sm:$0xff]
                %609 = vst [vmem:[%s509 + $0x188] sm:$0xff] %v608
                %v610 = vld [vmem:[%s508 + $0x2b0] sm:$0xff]
                %611 = vst [vmem:[%s509 + $0x190] sm:$0xff] %v610
                %v612 = vld [vmem:[%s508 + $0x2b8] sm:$0xff]
                %613 = vst [vmem:[%s509 + $0x198] sm:$0xff] %v612
                %v614 = vld [vmem:[%s508 + $0x2c0] sm:$0xff]
                %615 = vst [vmem:[%s509 + $0x1a0] sm:$0xff] %v614
                %v616 = vld [vmem:[%s508 + $0x2c8] sm:$0xff]
                %617 = vst [vmem:[%s509 + $0x1a8] sm:$0xff] %v616
                %v618 = vld [vmem:[%s508 + $0x360] sm:$0xff]
                %619 = vst [vmem:[%s509 + $0x1b0] sm:$0xff] %v618
                %v620 = vld [vmem:[%s508 + $0x368] sm:$0xff]
                %621 = vst [vmem:[%s509 + $0x1b8] sm:$0xff] %v620
                %v622 = vld [vmem:[%s508 + $0x370] sm:$0xff]
                %623 = vst [vmem:[%s509 + $0x1c0] sm:$0xff] %v622
                %v624 = vld [vmem:[%s508 + $0x378] sm:$0xff]
                %625 = vst [vmem:[%s509 + $0x1c8] sm:$0xff] %v624
                %v626 = vld [vmem:[%s508 + $0x380] sm:$0xff]
                %627 = vst [vmem:[%s509 + $0x1d0] sm:$0xff] %v626
                %v628 = vld [vmem:[%s508 + $0x388] sm:$0xff]
                %629 = vst [vmem:[%s509 + $0x1d8] sm:$0xff] %v628
                %v630 = vld [vmem:[%s508 + $0x390] sm:$0xff]
                %631 = vst [vmem:[%s509 + $0x1e0] sm:$0xff] %v630
                %v632 = vld [vmem:[%s508 + $0x398] sm:$0xff]
                %633 = vst [vmem:[%s509 + $0x1e8] sm:$0xff] %v632
                %v634 = vld [vmem:[%s508 + $0x3a0] sm:$0xff]
                %635 = vst [vmem:[%s509 + $0x1f0] sm:$0xff] %v634
                %v636 = vld [vmem:[%s508 + $0x3a8] sm:$0xff]
                %637 = vst [vmem:[%s509 + $0x1f8] sm:$0xff] %v636
                %v638 = vld [vmem:[%s508 + $0x3b0] sm:$0xff]
                %639 = vst [vmem:[%s509 + $0x200] sm:$0xff] %v638
                %v640 = vld [vmem:[%s508 + $0x3b8] sm:$0xff]
                %641 = vst [vmem:[%s509 + $0x208] sm:$0xff] %v640
                %v642 = vld [vmem:[%s508 + $0x3c0] sm:$0xff]
                %643 = vst [vmem:[%s509 + $0x210] sm:$0xff] %v642
                %v644 = vld [vmem:[%s508 + $0x3c8] sm:$0xff]
                %645 = vst [vmem:[%s509 + $0x218] sm:$0xff] %v644
                %v646 = vld [vmem:[%s508 + $0x3d0] sm:$0xff]
                %647 = vst [vmem:[%s509 + $0x220] sm:$0xff] %v646
                %v648 = vld [vmem:[%s508 + $0x3d8] sm:$0xff]
                %649 = vst [vmem:[%s509 + $0x228] sm:$0xff] %v648
                %v650 = vld [vmem:[%s508 + $0x3e0] sm:$0xff]
                %651 = vst [vmem:[%s509 + $0x230] sm:$0xff] %v650
                %v652 = vld [vmem:[%s508 + $0x3e8] sm:$0xff]
                %653 = vst [vmem:[%s509 + $0x238] sm:$0xff] %v652
                %v654 = vld [vmem:[%s508 + $0x480] sm:$0xff]
                %655 = vst [vmem:[%s509 + $0x240] sm:$0xff] %v654
                %v656 = vld [vmem:[%s508 + $0x488] sm:$0xff]
                %657 = vst [vmem:[%s509 + $0x248] sm:$0xff] %v656
                %v658 = vld [vmem:[%s508 + $0x490] sm:$0xff]
                %659 = vst [vmem:[%s509 + $0x250] sm:$0xff] %v658
                %v660 = vld [vmem:[%s508 + $0x498] sm:$0xff]
                %661 = vst [vmem:[%s509 + $0x258] sm:$0xff] %v660
                %v662 = vld [vmem:[%s508 + $0x4a0] sm:$0xff]
                %663 = vst [vmem:[%s509 + $0x260] sm:$0xff] %v662
                %v664 = vld [vmem:[%s508 + $0x4a8] sm:$0xff]
                %665 = vst [vmem:[%s509 + $0x268] sm:$0xff] %v664
                %v666 = vld [vmem:[%s508 + $0x4b0] sm:$0xff]
                %667 = vst [vmem:[%s509 + $0x270] sm:$0xff] %v666
                %v668 = vld [vmem:[%s508 + $0x4b8] sm:$0xff]
                %669 = vst [vmem:[%s509 + $0x278] sm:$0xff] %v668
                %v670 = vld [vmem:[%s508 + $0x4c0] sm:$0xff]
                %671 = vst [vmem:[%s509 + $0x280] sm:$0xff] %v670
                %v672 = vld [vmem:[%s508 + $0x4c8] sm:$0xff]
                %673 = vst [vmem:[%s509 + $0x288] sm:$0xff] %v672
                %v674 = vld [vmem:[%s508 + $0x4d0] sm:$0xff]
                %675 = vst [vmem:[%s509 + $0x290] sm:$0xff] %v674
                %v676 = vld [vmem:[%s508 + $0x4d8] sm:$0xff]
                %677 = vst [vmem:[%s509 + $0x298] sm:$0xff] %v676
                %v678 = vld [vmem:[%s508 + $0x4e0] sm:$0xff]
                %679 = vst [vmem:[%s509 + $0x2a0] sm:$0xff] %v678
                %v680 = vld [vmem:[%s508 + $0x4e8] sm:$0xff]
                %681 = vst [vmem:[%s509 + $0x2a8] sm:$0xff] %v680
                %v682 = vld [vmem:[%s508 + $0x4f0] sm:$0xff]
                %683 = vst [vmem:[%s509 + $0x2b0] sm:$0xff] %v682
                %v684 = vld [vmem:[%s508 + $0x4f8] sm:$0xff]
                %685 = vst [vmem:[%s509 + $0x2b8] sm:$0xff] %v684
                %v686 = vld [vmem:[%s508 + $0x500] sm:$0xff]
                %687 = vst [vmem:[%s509 + $0x2c0] sm:$0xff] %v686
                %v688 = vld [vmem:[%s508 + $0x508] sm:$0xff]
                %689 = vst [vmem:[%s509 + $0x2c8] sm:$0xff] %v688
                %v690 = vld [vmem:[%s508 + $0x5a0] sm:$0xff]
                %691 = vst [vmem:[%s509 + $0x2d0] sm:$0xff] %v690
                %v692 = vld [vmem:[%s508 + $0x5a8] sm:$0xff]
                %693 = vst [vmem:[%s509 + $0x2d8] sm:$0xff] %v692
                %v694 = vld [vmem:[%s508 + $0x5b0] sm:$0xff]
                %695 = vst [vmem:[%s509 + $0x2e0] sm:$0xff] %v694
                %v696 = vld [vmem:[%s508 + $0x5b8] sm:$0xff]
                %697 = vst [vmem:[%s509 + $0x2e8] sm:$0xff] %v696
                %v698 = vld [vmem:[%s508 + $0x5c0] sm:$0xff]
                %699 = vst [vmem:[%s509 + $0x2f0] sm:$0xff] %v698
                %v700 = vld [vmem:[%s508 + $0x5c8] sm:$0xff]
                %701 = vst [vmem:[%s509 + $0x2f8] sm:$0xff] %v700
                %v702 = vld [vmem:[%s508 + $0x5d0] sm:$0xff]
                %703 = vst [vmem:[%s509 + $0x300] sm:$0xff] %v702
                %v704 = vld [vmem:[%s508 + $0x5d8] sm:$0xff]
                %705 = vst [vmem:[%s509 + $0x308] sm:$0xff] %v704
                %v706 = vld [vmem:[%s508 + $0x5e0] sm:$0xff]
                %707 = vst [vmem:[%s509 + $0x310] sm:$0xff] %v706
                %v708 = vld [vmem:[%s508 + $0x5e8] sm:$0xff]
                %709 = vst [vmem:[%s509 + $0x318] sm:$0xff] %v708
                %v710 = vld [vmem:[%s508 + $0x5f0] sm:$0xff]
                %711 = vst [vmem:[%s509 + $0x320] sm:$0xff] %v710
                %v712 = vld [vmem:[%s508 + $0x5f8] sm:$0xff]
                %713 = vst [vmem:[%s509 + $0x328] sm:$0xff] %v712
                %v714 = vld [vmem:[%s508 + $0x600] sm:$0xff]
                %715 = vst [vmem:[%s509 + $0x330] sm:$0xff] %v714
                %v716 = vld [vmem:[%s508 + $0x608] sm:$0xff]
                %717 = vst [vmem:[%s509 + $0x338] sm:$0xff] %v716
                %v718 = vld [vmem:[%s508 + $0x610] sm:$0xff]
                %719 = vst [vmem:[%s509 + $0x340] sm:$0xff] %v718
                %v720 = vld [vmem:[%s508 + $0x618] sm:$0xff]
                %721 = vst [vmem:[%s509 + $0x348] sm:$0xff] %v720
                %v722 = vld [vmem:[%s508 + $0x620] sm:$0xff]
                %723 = vst [vmem:[%s509 + $0x350] sm:$0xff] %v722
                %v724 = vld [vmem:[%s508 + $0x628] sm:$0xff]
                %725 = vst [vmem:[%s509 + $0x358] sm:$0xff] %v724
                %v726 = vld [vmem:[%s508 + $0x6c0] sm:$0xff]
                %727 = vst [vmem:[%s509 + $0x360] sm:$0xff] %v726
                %v728 = vld [vmem:[%s508 + $0x6c8] sm:$0xff]
                %729 = vst [vmem:[%s509 + $0x368] sm:$0xff] %v728
                %v730 = vld [vmem:[%s508 + $0x6d0] sm:$0xff]
                %731 = vst [vmem:[%s509 + $0x370] sm:$0xff] %v730
                %v732 = vld [vmem:[%s508 + $0x6d8] sm:$0xff]
                %733 = vst [vmem:[%s509 + $0x378] sm:$0xff] %v732
                %v734 = vld [vmem:[%s508 + $0x6e0] sm:$0xff]
                %735 = vst [vmem:[%s509 + $0x380] sm:$0xff] %v734
                %v736 = vld [vmem:[%s508 + $0x6e8] sm:$0xff]
                %737 = vst [vmem:[%s509 + $0x388] sm:$0xff] %v736
                %v738 = vld [vmem:[%s508 + $0x6f0] sm:$0xff]
                %739 = vst [vmem:[%s509 + $0x390] sm:$0xff] %v738
                %v740 = vld [vmem:[%s508 + $0x6f8] sm:$0xff]
                %741 = vst [vmem:[%s509 + $0x398] sm:$0xff] %v740
                %v742 = vld [vmem:[%s508 + $0x700] sm:$0xff]
                %743 = vst [vmem:[%s509 + $0x3a0] sm:$0xff] %v742
                %v744 = vld [vmem:[%s508 + $0x708] sm:$0xff]
                %745 = vst [vmem:[%s509 + $0x3a8] sm:$0xff] %v744
                %v746 = vld [vmem:[%s508 + $0x710] sm:$0xff]
                %747 = vst [vmem:[%s509 + $0x3b0] sm:$0xff] %v746
                %v748 = vld [vmem:[%s508 + $0x718] sm:$0xff]
                %749 = vst [vmem:[%s509 + $0x3b8] sm:$0xff] %v748
                %v750 = vld [vmem:[%s508 + $0x720] sm:$0xff]
                %751 = vst [vmem:[%s509 + $0x3c0] sm:$0xff] %v750
                %v752 = vld [vmem:[%s508 + $0x728] sm:$0xff]
                %753 = vst [vmem:[%s509 + $0x3c8] sm:$0xff] %v752
                %v754 = vld [vmem:[%s508 + $0x730] sm:$0xff]
                %755 = vst [vmem:[%s509 + $0x3d0] sm:$0xff] %v754
                %v756 = vld [vmem:[%s508 + $0x738] sm:$0xff]
                %757 = vst [vmem:[%s509 + $0x3d8] sm:$0xff] %v756
                %v758 = vld [vmem:[%s508 + $0x740] sm:$0xff]
                %759 = vst [vmem:[%s509 + $0x3e0] sm:$0xff] %v758
                %v760 = vld [vmem:[%s508 + $0x748] sm:$0xff]
                %761 = vst [vmem:[%s509 + $0x3e8] sm:$0xff] %v760
                %v762 = vld [vmem:[%s508 + $0x7e0] sm:$0xff]
                %763 = vst [vmem:[%s509 + $0x3f0] sm:$0xff] %v762
                %v764 = vld [vmem:[%s508 + $0x7e8] sm:$0xff]
                %765 = vst [vmem:[%s509 + $0x3f8] sm:$0xff] %v764
                %v766 = vld [vmem:[%s508 + $0x7f0] sm:$0xff]
                %767 = vst [vmem:[%s509 + $0x400] sm:$0xff] %v766
                %v768 = vld [vmem:[%s508 + $0x7f8] sm:$0xff]
                %769 = vst [vmem:[%s509 + $0x408] sm:$0xff] %v768
                %v770 = vld [vmem:[%s508 + $0x800] sm:$0xff]
                %771 = vst [vmem:[%s509 + $0x410] sm:$0xff] %v770
                %v772 = vld [vmem:[%s508 + $0x808] sm:$0xff]
                %773 = vst [vmem:[%s509 + $0x418] sm:$0xff] %v772
                %v774 = vld [vmem:[%s508 + $0x810] sm:$0xff]
                %775 = vst [vmem:[%s509 + $0x420] sm:$0xff] %v774
                %v776 = vld [vmem:[%s508 + $0x818] sm:$0xff]
                %777 = vst [vmem:[%s509 + $0x428] sm:$0xff] %v776
                %v778 = vld [vmem:[%s508 + $0x820] sm:$0xff]
                %779 = vst [vmem:[%s509 + $0x430] sm:$0xff] %v778
                %v780 = vld [vmem:[%s508 + $0x828] sm:$0xff]
                %781 = vst [vmem:[%s509 + $0x438] sm:$0xff] %v780
                %v782 = vld [vmem:[%s508 + $0x830] sm:$0xff]
                %783 = vst [vmem:[%s509 + $0x440] sm:$0xff] %v782
                %v784 = vld [vmem:[%s508 + $0x838] sm:$0xff]
                %785 = vst [vmem:[%s509 + $0x448] sm:$0xff] %v784
                %v786 = vld [vmem:[%s508 + $0x840] sm:$0xff]
                %787 = vst [vmem:[%s509 + $0x450] sm:$0xff] %v786
                %v788 = vld [vmem:[%s508 + $0x848] sm:$0xff]
                %789 = vst [vmem:[%s509 + $0x458] sm:$0xff] %v788
                %v790 = vld [vmem:[%s508 + $0x850] sm:$0xff]
                %791 = vst [vmem:[%s509 + $0x460] sm:$0xff] %v790
                %v792 = vld [vmem:[%s508 + $0x858] sm:$0xff]
                %793 = vst [vmem:[%s509 + $0x468] sm:$0xff] %v792
                %v794 = vld [vmem:[%s508 + $0x860] sm:$0xff]
                %795 = vst [vmem:[%s509 + $0x470] sm:$0xff] %v794
                %v796 = vld [vmem:[%s508 + $0x868] sm:$0xff]
                %797 = vst [vmem:[%s509 + $0x478] sm:$0xff] %v796
                %v798 = vld [vmem:[%s508 + $0x900] sm:$0xff]
                %799 = vst [vmem:[%s509 + $0x480] sm:$0xff] %v798
                %v800 = vld [vmem:[%s508 + $0x908] sm:$0xff]
                %801 = vst [vmem:[%s509 + $0x488] sm:$0xff] %v800
                %v802 = vld [vmem:[%s508 + $0x910] sm:$0xff]
                %803 = vst [vmem:[%s509 + $0x490] sm:$0xff] %v802
                %v804 = vld [vmem:[%s508 + $0x918] sm:$0xff]
                %805 = vst [vmem:[%s509 + $0x498] sm:$0xff] %v804
                %v806 = vld [vmem:[%s508 + $0x920] sm:$0xff]
                %807 = vst [vmem:[%s509 + $0x4a0] sm:$0xff] %v806
                %v808 = vld [vmem:[%s508 + $0x928] sm:$0xff]
                %809 = vst [vmem:[%s509 + $0x4a8] sm:$0xff] %v808
                %v810 = vld [vmem:[%s508 + $0x930] sm:$0xff]
                %811 = vst [vmem:[%s509 + $0x4b0] sm:$0xff] %v810
                %v812 = vld [vmem:[%s508 + $0x938] sm:$0xff]
                %813 = vst [vmem:[%s509 + $0x4b8] sm:$0xff] %v812
                %v814 = vld [vmem:[%s508 + $0x940] sm:$0xff]
                %815 = vst [vmem:[%s509 + $0x4c0] sm:$0xff] %v814
                %v816 = vld [vmem:[%s508 + $0x948] sm:$0xff]
                %817 = vst [vmem:[%s509 + $0x4c8] sm:$0xff] %v816
                %v818 = vld [vmem:[%s508 + $0x950] sm:$0xff]
                %819 = vst [vmem:[%s509 + $0x4d0] sm:$0xff] %v818
                %v820 = vld [vmem:[%s508 + $0x958] sm:$0xff]
                %821 = vst [vmem:[%s509 + $0x4d8] sm:$0xff] %v820
                %v822 = vld [vmem:[%s508 + $0x960] sm:$0xff]
                %823 = vst [vmem:[%s509 + $0x4e0] sm:$0xff] %v822
                %v824 = vld [vmem:[%s508 + $0x968] sm:$0xff]
                %825 = vst [vmem:[%s509 + $0x4e8] sm:$0xff] %v824
                %v826 = vld [vmem:[%s508 + $0x970] sm:$0xff]
                %827 = vst [vmem:[%s509 + $0x4f0] sm:$0xff] %v826
                %v828 = vld [vmem:[%s508 + $0x978] sm:$0xff]
                %829 = vst [vmem:[%s509 + $0x4f8] sm:$0xff] %v828
                %v830 = vld [vmem:[%s508 + $0x980] sm:$0xff]
                %831 = vst [vmem:[%s509 + $0x500] sm:$0xff] %v830
                %v832 = vld [vmem:[%s508 + $0x988] sm:$0xff]
                %833 = vst [vmem:[%s509 + $0x508] sm:$0xff] %v832
                %v834 = vld [vmem:[%s508 + $0xa20] sm:$0xff]
                %835 = vst [vmem:[%s509 + $0x510] sm:$0xff] %v834
                %v836 = vld [vmem:[%s508 + $0xa28] sm:$0xff]
                %837 = vst [vmem:[%s509 + $0x518] sm:$0xff] %v836
                %v838 = vld [vmem:[%s508 + $0xa30] sm:$0xff]
                %839 = vst [vmem:[%s509 + $0x520] sm:$0xff] %v838
                %v840 = vld [vmem:[%s508 + $0xa38] sm:$0xff]
                %841 = vst [vmem:[%s509 + $0x528] sm:$0xff] %v840
                %v842 = vld [vmem:[%s508 + $0xa40] sm:$0xff]
                %843 = vst [vmem:[%s509 + $0x530] sm:$0xff] %v842
                %v844 = vld [vmem:[%s508 + $0xa48] sm:$0xff]
                %845 = vst [vmem:[%s509 + $0x538] sm:$0xff] %v844
                %v846 = vld [vmem:[%s508 + $0xa50] sm:$0xff]
                %847 = vst [vmem:[%s509 + $0x540] sm:$0xff] %v846
                %v848 = vld [vmem:[%s508 + $0xa58] sm:$0xff]
                %849 = vst [vmem:[%s509 + $0x548] sm:$0xff] %v848
                %v850 = vld [vmem:[%s508 + $0xa60] sm:$0xff]
                %851 = vst [vmem:[%s509 + $0x550] sm:$0xff] %v850
                %v852 = vld [vmem:[%s508 + $0xa68] sm:$0xff]
                %853 = vst [vmem:[%s509 + $0x558] sm:$0xff] %v852
                %v854 = vld [vmem:[%s508 + $0xa70] sm:$0xff]
                %855 = vst [vmem:[%s509 + $0x560] sm:$0xff] %v854
                %v856 = vld [vmem:[%s508 + $0xa78] sm:$0xff]
                %857 = vst [vmem:[%s509 + $0x568] sm:$0xff] %v856
                %v858 = vld [vmem:[%s508 + $0xa80] sm:$0xff]
                %859 = vst [vmem:[%s509 + $0x570] sm:$0xff] %v858
                %v860 = vld [vmem:[%s508 + $0xa88] sm:$0xff]
                %861 = vst [vmem:[%s509 + $0x578] sm:$0xff] %v860
                %v862 = vld [vmem:[%s508 + $0xa90] sm:$0xff]
                %863 = vst [vmem:[%s509 + $0x580] sm:$0xff] %v862
                %v864 = vld [vmem:[%s508 + $0xa98] sm:$0xff]
                %865 = vst [vmem:[%s509 + $0x588] sm:$0xff] %v864
                %v866 = vld [vmem:[%s508 + $0xaa0] sm:$0xff]
                %867 = vst [vmem:[%s509 + $0x590] sm:$0xff] %v866
                %v868 = vld [vmem:[%s508 + $0xaa8] sm:$0xff]
                %869 = vst [vmem:[%s509 + $0x598] sm:$0xff] %v868
                %v870 = vld [vmem:[%s508 + $0xb40] sm:$0xff]
                %871 = vst [vmem:[%s509 + $0x5a0] sm:$0xff] %v870
                %v872 = vld [vmem:[%s508 + $0xb48] sm:$0xff]
                %873 = vst [vmem:[%s509 + $0x5a8] sm:$0xff] %v872
                %v874 = vld [vmem:[%s508 + $0xb50] sm:$0xff]
                %875 = vst [vmem:[%s509 + $0x5b0] sm:$0xff] %v874
                %v876 = vld [vmem:[%s508 + $0xb58] sm:$0xff]
                %877 = vst [vmem:[%s509 + $0x5b8] sm:$0xff] %v876
                %v878 = vld [vmem:[%s508 + $0xb60] sm:$0xff]
                %879 = vst [vmem:[%s509 + $0x5c0] sm:$0xff] %v878
                %v880 = vld [vmem:[%s508 + $0xb68] sm:$0xff]
                %881 = vst [vmem:[%s509 + $0x5c8] sm:$0xff] %v880
                %v882 = vld [vmem:[%s508 + $0xb70] sm:$0xff]
                %883 = vst [vmem:[%s509 + $0x5d0] sm:$0xff] %v882
                %v884 = vld [vmem:[%s508 + $0xb78] sm:$0xff]
                %885 = vst [vmem:[%s509 + $0x5d8] sm:$0xff] %v884
                %v886 = vld [vmem:[%s508 + $0xb80] sm:$0xff]
                %887 = vst [vmem:[%s509 + $0x5e0] sm:$0xff] %v886
                %v888 = vld [vmem:[%s508 + $0xb88] sm:$0xff]
                %889 = vst [vmem:[%s509 + $0x5e8] sm:$0xff] %v888
                %v890 = vld [vmem:[%s508 + $0xb90] sm:$0xff]
                %891 = vst [vmem:[%s509 + $0x5f0] sm:$0xff] %v890
                %v892 = vld [vmem:[%s508 + $0xb98] sm:$0xff]
                %893 = vst [vmem:[%s509 + $0x5f8] sm:$0xff] %v892
                %v894 = vld [vmem:[%s508 + $0xba0] sm:$0xff]
                %895 = vst [vmem:[%s509 + $0x600] sm:$0xff] %v894
                %v896 = vld [vmem:[%s508 + $0xba8] sm:$0xff]
                %897 = vst [vmem:[%s509 + $0x608] sm:$0xff] %v896
                %v898 = vld [vmem:[%s508 + $0xbb0] sm:$0xff]
                %899 = vst [vmem:[%s509 + $0x610] sm:$0xff] %v898
                %v900 = vld [vmem:[%s508 + $0xbb8] sm:$0xff]
                %901 = vst [vmem:[%s509 + $0x618] sm:$0xff] %v900
                %v902 = vld [vmem:[%s508 + $0xbc0] sm:$0xff]
                %903 = vst [vmem:[%s509 + $0x620] sm:$0xff] %v902
                %v904 = vld [vmem:[%s508 + $0xbc8] sm:$0xff]
                %905 = vst [vmem:[%s509 + $0x628] sm:$0xff] %v904
                %v906 = vld [vmem:[%s508 + $0xc60] sm:$0xff]
                %907 = vst [vmem:[%s509 + $0x630] sm:$0xff] %v906
                %v908 = vld [vmem:[%s508 + $0xc68] sm:$0xff]
                %909 = vst [vmem:[%s509 + $0x638] sm:$0xff] %v908
                %v910 = vld [vmem:[%s508 + $0xc70] sm:$0xff]
                %911 = vst [vmem:[%s509 + $0x640] sm:$0xff] %v910
                %v912 = vld [vmem:[%s508 + $0xc78] sm:$0xff]
                %913 = vst [vmem:[%s509 + $0x648] sm:$0xff] %v912
                %v914 = vld [vmem:[%s508 + $0xc80] sm:$0xff]
                %915 = vst [vmem:[%s509 + $0x650] sm:$0xff] %v914
                %v916 = vld [vmem:[%s508 + $0xc88] sm:$0xff]
                %917 = vst [vmem:[%s509 + $0x658] sm:$0xff] %v916
                %v918 = vld [vmem:[%s508 + $0xc90] sm:$0xff]
                %919 = vst [vmem:[%s509 + $0x660] sm:$0xff] %v918
                %v920 = vld [vmem:[%s508 + $0xc98] sm:$0xff]
                %921 = vst [vmem:[%s509 + $0x668] sm:$0xff] %v920
                %v922 = vld [vmem:[%s508 + $0xca0] sm:$0xff]
                %923 = vst [vmem:[%s509 + $0x670] sm:$0xff] %v922
                %v924 = vld [vmem:[%s508 + $0xca8] sm:$0xff]
                %925 = vst [vmem:[%s509 + $0x678] sm:$0xff] %v924
                %v926 = vld [vmem:[%s508 + $0xcb0] sm:$0xff]
                %927 = vst [vmem:[%s509 + $0x680] sm:$0xff] %v926
                %v928 = vld [vmem:[%s508 + $0xcb8] sm:$0xff]
                %929 = vst [vmem:[%s509 + $0x688] sm:$0xff] %v928
                %v930 = vld [vmem:[%s508 + $0xcc0] sm:$0xff]
                %931 = vst [vmem:[%s509 + $0x690] sm:$0xff] %v930
                %v932 = vld [vmem:[%s508 + $0xcc8] sm:$0xff]
                %933 = vst [vmem:[%s509 + $0x698] sm:$0xff] %v932
                %v934 = vld [vmem:[%s508 + $0xcd0] sm:$0xff]
                %935 = vst [vmem:[%s509 + $0x6a0] sm:$0xff] %v934
                %v936 = vld [vmem:[%s508 + $0xcd8] sm:$0xff]
                %937 = vst [vmem:[%s509 + $0x6a8] sm:$0xff] %v936
                %v938 = vld [vmem:[%s508 + $0xce0] sm:$0xff]
                %939 = vst [vmem:[%s509 + $0x6b0] sm:$0xff] %v938
                %v940 = vld [vmem:[%s508 + $0xce8] sm:$0xff]
                %941 = vst [vmem:[%s509 + $0x6b8] sm:$0xff] %v940
                %v942 = vld [vmem:[%s508 + $0xd80] sm:$0xff]
                %943 = vst [vmem:[%s509 + $0x6c0] sm:$0xff] %v942
                %v944 = vld [vmem:[%s508 + $0xd88] sm:$0xff]
                %945 = vst [vmem:[%s509 + $0x6c8] sm:$0xff] %v944
                %v946 = vld [vmem:[%s508 + $0xd90] sm:$0xff]
                %947 = vst [vmem:[%s509 + $0x6d0] sm:$0xff] %v946
                %v948 = vld [vmem:[%s508 + $0xd98] sm:$0xff]
                %949 = vst [vmem:[%s509 + $0x6d8] sm:$0xff] %v948
                %v950 = vld [vmem:[%s508 + $0xda0] sm:$0xff]
                %951 = vst [vmem:[%s509 + $0x6e0] sm:$0xff] %v950
                %v952 = vld [vmem:[%s508 + $0xda8] sm:$0xff]
                %953 = vst [vmem:[%s509 + $0x6e8] sm:$0xff] %v952
                %v954 = vld [vmem:[%s508 + $0xdb0] sm:$0xff]
                %955 = vst [vmem:[%s509 + $0x6f0] sm:$0xff] %v954
                %v956 = vld [vmem:[%s508 + $0xdb8] sm:$0xff]
                %957 = vst [vmem:[%s509 + $0x6f8] sm:$0xff] %v956
                %v958 = vld [vmem:[%s508 + $0xdc0] sm:$0xff]
                %959 = vst [vmem:[%s509 + $0x700] sm:$0xff] %v958
                %v960 = vld [vmem:[%s508 + $0xdc8] sm:$0xff]
                %961 = vst [vmem:[%s509 + $0x708] sm:$0xff] %v960
                %v962 = vld [vmem:[%s508 + $0xdd0] sm:$0xff]
                %963 = vst [vmem:[%s509 + $0x710] sm:$0xff] %v962
                %v964 = vld [vmem:[%s508 + $0xdd8] sm:$0xff]
                %965 = vst [vmem:[%s509 + $0x718] sm:$0xff] %v964
                %v966 = vld [vmem:[%s508 + $0xde0] sm:$0xff]
                %967 = vst [vmem:[%s509 + $0x720] sm:$0xff] %v966
                %v968 = vld [vmem:[%s508 + $0xde8] sm:$0xff]
                %969 = vst [vmem:[%s509 + $0x728] sm:$0xff] %v968
                %v970 = vld [vmem:[%s508 + $0xdf0] sm:$0xff]
                %971 = vst [vmem:[%s509 + $0x730] sm:$0xff] %v970
                %v972 = vld [vmem:[%s508 + $0xdf8] sm:$0xff]
                %973 = vst [vmem:[%s509 + $0x738] sm:$0xff] %v972
                %v974 = vld [vmem:[%s508 + $0xe00] sm:$0xff]
                %975 = vst [vmem:[%s509 + $0x740] sm:$0xff] %v974
                %v976 = vld [vmem:[%s508 + $0xe08] sm:$0xff]
                %977 = vst [vmem:[%s509 + $0x748] sm:$0xff] %v976
                %v978 = vld [vmem:[%s508 + $0xea0] sm:$0xff]
                %979 = vst [vmem:[%s509 + $0x750] sm:$0xff] %v978
                %v980 = vld [vmem:[%s508 + $0xea8] sm:$0xff]
                %981 = vst [vmem:[%s509 + $0x758] sm:$0xff] %v980
                %v982 = vld [vmem:[%s508 + $0xeb0] sm:$0xff]
                %983 = vst [vmem:[%s509 + $0x760] sm:$0xff] %v982
                %v984 = vld [vmem:[%s508 + $0xeb8] sm:$0xff]
                %985 = vst [vmem:[%s509 + $0x768] sm:$0xff] %v984
                %v986 = vld [vmem:[%s508 + $0xec0] sm:$0xff]
                %987 = vst [vmem:[%s509 + $0x770] sm:$0xff] %v986
                %v988 = vld [vmem:[%s508 + $0xec8] sm:$0xff]
                %989 = vst [vmem:[%s509 + $0x778] sm:$0xff] %v988
                %v990 = vld [vmem:[%s508 + $0xed0] sm:$0xff]
                %991 = vst [vmem:[%s509 + $0x780] sm:$0xff] %v990
                %v992 = vld [vmem:[%s508 + $0xed8] sm:$0xff]
                %993 = vst [vmem:[%s509 + $0x788] sm:$0xff] %v992
                %v994 = vld [vmem:[%s508 + $0xee0] sm:$0xff]
                %995 = vst [vmem:[%s509 + $0x790] sm:$0xff] %v994
                %v996 = vld [vmem:[%s508 + $0xee8] sm:$0xff]
                %997 = vst [vmem:[%s509 + $0x798] sm:$0xff] %v996
                %v998 = vld [vmem:[%s508 + $0xef0] sm:$0xff]
                %999 = vst [vmem:[%s509 + $0x7a0] sm:$0xff] %v998
                %v1000 = vld [vmem:[%s508 + $0xef8] sm:$0xff]
                %1001 = vst [vmem:[%s509 + $0x7a8] sm:$0xff] %v1000
                %v1002 = vld [vmem:[%s508 + $0xf00] sm:$0xff]
                %1003 = vst [vmem:[%s509 + $0x7b0] sm:$0xff] %v1002
                %v1004 = vld [vmem:[%s508 + $0xf08] sm:$0xff]
                %1005 = vst [vmem:[%s509 + $0x7b8] sm:$0xff] %v1004
                %v1006 = vld [vmem:[%s508 + $0xf10] sm:$0xff]
                %1007 = vst [vmem:[%s509 + $0x7c0] sm:$0xff] %v1006
                %v1008 = vld [vmem:[%s508 + $0xf18] sm:$0xff]
                %1009 = vst [vmem:[%s509 + $0x7c8] sm:$0xff] %v1008
                %v1010 = vld [vmem:[%s508 + $0xf20] sm:$0xff]
                %1011 = vst [vmem:[%s509 + $0x7d0] sm:$0xff] %v1010
                %v1012 = vld [vmem:[%s508 + $0xf28] sm:$0xff]
                %1013 = vst [vmem:[%s509 + $0x7d8] sm:$0xff] %v1012
                %v1014 = vld [vmem:[%s508 + $0xfc0] sm:$0xff]
                %1015 = vst [vmem:[%s509 + $0x7e0] sm:$0xff] %v1014
                %v1016 = vld [vmem:[%s508 + $0xfc8] sm:$0xff]
                %1017 = vst [vmem:[%s509 + $0x7e8] sm:$0xff] %v1016
                %v1018 = vld [vmem:[%s508 + $0xfd0] sm:$0xff]
                %1019 = vst [vmem:[%s509 + $0x7f0] sm:$0xff] %v1018
                %v1020 = vld [vmem:[%s508 + $0xfd8] sm:$0xff]
                %1021 = vst [vmem:[%s509 + $0x7f8] sm:$0xff] %v1020
                %v1022 = vld [vmem:[%s508 + $0xfe0] sm:$0xff]
                %1023 = vst [vmem:[%s509 + $0x800] sm:$0xff] %v1022
                %v1024 = vld [vmem:[%s508 + $0xfe8] sm:$0xff]
                %1025 = vst [vmem:[%s509 + $0x808] sm:$0xff] %v1024
                %v1026 = vld [vmem:[%s508 + $0xff0] sm:$0xff]
                %1027 = vst [vmem:[%s509 + $0x810] sm:$0xff] %v1026
                %v1028 = vld [vmem:[%s508 + $0xff8] sm:$0xff]
                %1029 = vst [vmem:[%s509 + $0x818] sm:$0xff] %v1028
                %v1030 = vld [vmem:[%s508 + $0x1000] sm:$0xff]
                %1031 = vst [vmem:[%s509 + $0x820] sm:$0xff] %v1030
                %v1032 = vld [vmem:[%s508 + $0x1008] sm:$0xff]
                %1033 = vst [vmem:[%s509 + $0x828] sm:$0xff] %v1032
                %v1034 = vld [vmem:[%s508 + $0x1010] sm:$0xff]
                %1035 = vst [vmem:[%s509 + $0x830] sm:$0xff] %v1034
                %v1036 = vld [vmem:[%s508 + $0x1018] sm:$0xff]
                %1037 = vst [vmem:[%s509 + $0x838] sm:$0xff] %v1036
                %v1038 = vld [vmem:[%s508 + $0x1020] sm:$0xff]
                %1039 = vst [vmem:[%s509 + $0x840] sm:$0xff] %v1038
                %v1040 = vld [vmem:[%s508 + $0x1028] sm:$0xff]
                %1041 = vst [vmem:[%s509 + $0x848] sm:$0xff] %v1040
                %v1042 = vld [vmem:[%s508 + $0x1030] sm:$0xff]
                %1043 = vst [vmem:[%s509 + $0x850] sm:$0xff] %v1042
                %v1044 = vld [vmem:[%s508 + $0x1038] sm:$0xff]
                %1045 = vst [vmem:[%s509 + $0x858] sm:$0xff] %v1044
                %v1046 = vld [vmem:[%s508 + $0x1040] sm:$0xff]
                %1047 = vst [vmem:[%s509 + $0x860] sm:$0xff] %v1046
                %v1048 = vld [vmem:[%s508 + $0x1048] sm:$0xff]
                %1049 = vst [vmem:[%s509 + $0x868] sm:$0xff] %v1048
                %v1050 = vld [vmem:[%s508 + $0x10e0] sm:$0xff]
                %1051 = vst [vmem:[%s509 + $0x870] sm:$0xff] %v1050
                %v1052 = vld [vmem:[%s508 + $0x10e8] sm:$0xff]
                %1053 = vst [vmem:[%s509 + $0x878] sm:$0xff] %v1052
                %v1054 = vld [vmem:[%s508 + $0x10f0] sm:$0xff]
                %1055 = vst [vmem:[%s509 + $0x880] sm:$0xff] %v1054
                %v1056 = vld [vmem:[%s508 + $0x10f8] sm:$0xff]
                %1057 = vst [vmem:[%s509 + $0x888] sm:$0xff] %v1056
                %v1058 = vld [vmem:[%s508 + $0x1100] sm:$0xff]
                %1059 = vst [vmem:[%s509 + $0x890] sm:$0xff] %v1058
                %v1060 = vld [vmem:[%s508 + $0x1108] sm:$0xff]
                %1061 = vst [vmem:[%s509 + $0x898] sm:$0xff] %v1060
                %v1062 = vld [vmem:[%s508 + $0x1110] sm:$0xff]
                %1063 = vst [vmem:[%s509 + $0x8a0] sm:$0xff] %v1062
                %v1064 = vld [vmem:[%s508 + $0x1118] sm:$0xff]
                %1065 = vst [vmem:[%s509 + $0x8a8] sm:$0xff] %v1064
                %v1066 = vld [vmem:[%s508 + $0x1120] sm:$0xff]
                %1067 = vst [vmem:[%s509 + $0x8b0] sm:$0xff] %v1066
                %v1068 = vld [vmem:[%s508 + $0x1128] sm:$0xff]
                %1069 = vst [vmem:[%s509 + $0x8b8] sm:$0xff] %v1068
                %v1070 = vld [vmem:[%s508 + $0x1130] sm:$0xff]
                %1071 = vst [vmem:[%s509 + $0x8c0] sm:$0xff] %v1070
                %v1072 = vld [vmem:[%s508 + $0x1138] sm:$0xff]
                %1073 = vst [vmem:[%s509 + $0x8c8] sm:$0xff] %v1072
                %v1074 = vld [vmem:[%s508 + $0x1140] sm:$0xff]
                %1075 = vst [vmem:[%s509 + $0x8d0] sm:$0xff] %v1074
                %v1076 = vld [vmem:[%s508 + $0x1148] sm:$0xff]
                %1077 = vst [vmem:[%s509 + $0x8d8] sm:$0xff] %v1076
                %v1078 = vld [vmem:[%s508 + $0x1150] sm:$0xff]
                %1079 = vst [vmem:[%s509 + $0x8e0] sm:$0xff] %v1078
                %v1080 = vld [vmem:[%s508 + $0x1158] sm:$0xff]
                %1081 = vst [vmem:[%s509 + $0x8e8] sm:$0xff] %v1080
                %v1082 = vld [vmem:[%s508 + $0x1160] sm:$0xff]
                %1083 = vst [vmem:[%s509 + $0x8f0] sm:$0xff] %v1082
                %v1084 = vld [vmem:[%s508 + $0x1168] sm:$0xff]
                %1085 = vst [vmem:[%s509 + $0x8f8] sm:$0xff] %v1084
                %v1086 = vld [vmem:[%s508 + $0x1200] sm:$0xff]
                %1087 = vst [vmem:[%s509 + $0x900] sm:$0xff] %v1086
                %v1088 = vld [vmem:[%s508 + $0x1208] sm:$0xff]
                %1089 = vst [vmem:[%s509 + $0x908] sm:$0xff] %v1088
                %v1090 = vld [vmem:[%s508 + $0x1210] sm:$0xff]
                %1091 = vst [vmem:[%s509 + $0x910] sm:$0xff] %v1090
                %v1092 = vld [vmem:[%s508 + $0x1218] sm:$0xff]
                %1093 = vst [vmem:[%s509 + $0x918] sm:$0xff] %v1092
                %v1094 = vld [vmem:[%s508 + $0x1220] sm:$0xff]
                %1095 = vst [vmem:[%s509 + $0x920] sm:$0xff] %v1094
                %v1096 = vld [vmem:[%s508 + $0x1228] sm:$0xff]
                %1097 = vst [vmem:[%s509 + $0x928] sm:$0xff] %v1096
                %v1098 = vld [vmem:[%s508 + $0x1230] sm:$0xff]
                %1099 = vst [vmem:[%s509 + $0x930] sm:$0xff] %v1098
                %v1100 = vld [vmem:[%s508 + $0x1238] sm:$0xff]
                %1101 = vst [vmem:[%s509 + $0x938] sm:$0xff] %v1100
                %v1102 = vld [vmem:[%s508 + $0x1240] sm:$0xff]
                %1103 = vst [vmem:[%s509 + $0x940] sm:$0xff] %v1102
                %v1104 = vld [vmem:[%s508 + $0x1248] sm:$0xff]
                %1105 = vst [vmem:[%s509 + $0x948] sm:$0xff] %v1104
                %v1106 = vld [vmem:[%s508 + $0x1250] sm:$0xff]
                %1107 = vst [vmem:[%s509 + $0x950] sm:$0xff] %v1106
                %v1108 = vld [vmem:[%s508 + $0x1258] sm:$0xff]
                %1109 = vst [vmem:[%s509 + $0x958] sm:$0xff] %v1108
                %v1110 = vld [vmem:[%s508 + $0x1260] sm:$0xff]
                %1111 = vst [vmem:[%s509 + $0x960] sm:$0xff] %v1110
                %v1112 = vld [vmem:[%s508 + $0x1268] sm:$0xff]
                %1113 = vst [vmem:[%s509 + $0x968] sm:$0xff] %v1112
                %v1114 = vld [vmem:[%s508 + $0x1270] sm:$0xff]
                %1115 = vst [vmem:[%s509 + $0x970] sm:$0xff] %v1114
                %v1116 = vld [vmem:[%s508 + $0x1278] sm:$0xff]
                %1117 = vst [vmem:[%s509 + $0x978] sm:$0xff] %v1116
                %v1118 = vld [vmem:[%s508 + $0x1280] sm:$0xff]
                %1119 = vst [vmem:[%s509 + $0x980] sm:$0xff] %v1118
                %v1120 = vld [vmem:[%s508 + $0x1288] sm:$0xff]
                %1121 = vst [vmem:[%s509 + $0x988] sm:$0xff] %v1120
                %v1122 = vld [vmem:[%s508 + $0x1320] sm:$0xff]
                %1123 = vst [vmem:[%s509 + $0x990] sm:$0xff] %v1122
                %v1124 = vld [vmem:[%s508 + $0x1328] sm:$0xff]
                %1125 = vst [vmem:[%s509 + $0x998] sm:$0xff] %v1124
                %v1126 = vld [vmem:[%s508 + $0x1330] sm:$0xff]
                %1127 = vst [vmem:[%s509 + $0x9a0] sm:$0xff] %v1126
                %v1128 = vld [vmem:[%s508 + $0x1338] sm:$0xff]
                %1129 = vst [vmem:[%s509 + $0x9a8] sm:$0xff] %v1128
                %v1130 = vld [vmem:[%s508 + $0x1340] sm:$0xff]
                %1131 = vst [vmem:[%s509 + $0x9b0] sm:$0xff] %v1130
                %v1132 = vld [vmem:[%s508 + $0x1348] sm:$0xff]
                %1133 = vst [vmem:[%s509 + $0x9b8] sm:$0xff] %v1132
                %v1134 = vld [vmem:[%s508 + $0x1350] sm:$0xff]
                %1135 = vst [vmem:[%s509 + $0x9c0] sm:$0xff] %v1134
                %v1136 = vld [vmem:[%s508 + $0x1358] sm:$0xff]
                %1137 = vst [vmem:[%s509 + $0x9c8] sm:$0xff] %v1136
                %v1138 = vld [vmem:[%s508 + $0x1360] sm:$0xff]
                %1139 = vst [vmem:[%s509 + $0x9d0] sm:$0xff] %v1138
                %v1140 = vld [vmem:[%s508 + $0x1368] sm:$0xff]
                %1141 = vst [vmem:[%s509 + $0x9d8] sm:$0xff] %v1140
                %v1142 = vld [vmem:[%s508 + $0x1370] sm:$0xff]
                %1143 = vst [vmem:[%s509 + $0x9e0] sm:$0xff] %v1142
                %v1144 = vld [vmem:[%s508 + $0x1378] sm:$0xff]
                %1145 = vst [vmem:[%s509 + $0x9e8] sm:$0xff] %v1144
                %v1146 = vld [vmem:[%s508 + $0x1380] sm:$0xff]
                %1147 = vst [vmem:[%s509 + $0x9f0] sm:$0xff] %v1146
                %v1148 = vld [vmem:[%s508 + $0x1388] sm:$0xff]
                %1149 = vst [vmem:[%s509 + $0x9f8] sm:$0xff] %v1148
                %v1150 = vld [vmem:[%s508 + $0x1390] sm:$0xff]
                %1151 = vst [vmem:[%s509 + $0xa00] sm:$0xff] %v1150
                %v1152 = vld [vmem:[%s508 + $0x1398] sm:$0xff]
                %1153 = vst [vmem:[%s509 + $0xa08] sm:$0xff] %v1152
                %v1154 = vld [vmem:[%s508 + $0x13a0] sm:$0xff]
                %1155 = vst [vmem:[%s509 + $0xa10] sm:$0xff] %v1154
                %v1156 = vld [vmem:[%s508 + $0x13a8] sm:$0xff]
                %1157 = vst [vmem:[%s509 + $0xa18] sm:$0xff] %v1156
                %v1158 = vld [vmem:[%s508 + $0x1440] sm:$0xff]
                %1159 = vst [vmem:[%s509 + $0xa20] sm:$0xff] %v1158
                %v1160 = vld [vmem:[%s508 + $0x1448] sm:$0xff]
                %1161 = vst [vmem:[%s509 + $0xa28] sm:$0xff] %v1160
                %v1162 = vld [vmem:[%s508 + $0x1450] sm:$0xff]
                %1163 = vst [vmem:[%s509 + $0xa30] sm:$0xff] %v1162
                %v1164 = vld [vmem:[%s508 + $0x1458] sm:$0xff]
                %1165 = vst [vmem:[%s509 + $0xa38] sm:$0xff] %v1164
                %v1166 = vld [vmem:[%s508 + $0x1460] sm:$0xff]
                %1167 = vst [vmem:[%s509 + $0xa40] sm:$0xff] %v1166
                %v1168 = vld [vmem:[%s508 + $0x1468] sm:$0xff]
                %1169 = vst [vmem:[%s509 + $0xa48] sm:$0xff] %v1168
                %v1170 = vld [vmem:[%s508 + $0x1470] sm:$0xff]
                %1171 = vst [vmem:[%s509 + $0xa50] sm:$0xff] %v1170
                %v1172 = vld [vmem:[%s508 + $0x1478] sm:$0xff]
                %1173 = vst [vmem:[%s509 + $0xa58] sm:$0xff] %v1172
                %v1174 = vld [vmem:[%s508 + $0x1480] sm:$0xff]
                %1175 = vst [vmem:[%s509 + $0xa60] sm:$0xff] %v1174
                %v1176 = vld [vmem:[%s508 + $0x1488] sm:$0xff]
                %1177 = vst [vmem:[%s509 + $0xa68] sm:$0xff] %v1176
                %v1178 = vld [vmem:[%s508 + $0x1490] sm:$0xff]
                %1179 = vst [vmem:[%s509 + $0xa70] sm:$0xff] %v1178
                %v1180 = vld [vmem:[%s508 + $0x1498] sm:$0xff]
                %1181 = vst [vmem:[%s509 + $0xa78] sm:$0xff] %v1180
                %v1182 = vld [vmem:[%s508 + $0x14a0] sm:$0xff]
                %1183 = vst [vmem:[%s509 + $0xa80] sm:$0xff] %v1182
                %v1184 = vld [vmem:[%s508 + $0x14a8] sm:$0xff]
                %1185 = vst [vmem:[%s509 + $0xa88] sm:$0xff] %v1184
                %v1186 = vld [vmem:[%s508 + $0x14b0] sm:$0xff]
                %1187 = vst [vmem:[%s509 + $0xa90] sm:$0xff] %v1186
                %v1188 = vld [vmem:[%s508 + $0x14b8] sm:$0xff]
                %1189 = vst [vmem:[%s509 + $0xa98] sm:$0xff] %v1188
                %v1190 = vld [vmem:[%s508 + $0x14c0] sm:$0xff]
                %1191 = vst [vmem:[%s509 + $0xaa0] sm:$0xff] %v1190
                %v1192 = vld [vmem:[%s508 + $0x14c8] sm:$0xff]
                %1193 = vst [vmem:[%s509 + $0xaa8] sm:$0xff] %v1192
                %v1194 = vld [vmem:[%s508 + $0x1560] sm:$0xff]
                %1195 = vst [vmem:[%s509 + $0xab0] sm:$0xff] %v1194
                %v1196 = vld [vmem:[%s508 + $0x1568] sm:$0xff]
                %1197 = vst [vmem:[%s509 + $0xab8] sm:$0xff] %v1196
                %v1198 = vld [vmem:[%s508 + $0x1570] sm:$0xff]
                %1199 = vst [vmem:[%s509 + $0xac0] sm:$0xff] %v1198
                %v1200 = vld [vmem:[%s508 + $0x1578] sm:$0xff]
                %1201 = vst [vmem:[%s509 + $0xac8] sm:$0xff] %v1200
                %v1202 = vld [vmem:[%s508 + $0x1580] sm:$0xff]
                %1203 = vst [vmem:[%s509 + $0xad0] sm:$0xff] %v1202
                %v1204 = vld [vmem:[%s508 + $0x1588] sm:$0xff]
                %1205 = vst [vmem:[%s509 + $0xad8] sm:$0xff] %v1204
                %v1206 = vld [vmem:[%s508 + $0x1590] sm:$0xff]
                %1207 = vst [vmem:[%s509 + $0xae0] sm:$0xff] %v1206
                %v1208 = vld [vmem:[%s508 + $0x1598] sm:$0xff]
                %1209 = vst [vmem:[%s509 + $0xae8] sm:$0xff] %v1208
                %v1210 = vld [vmem:[%s508 + $0x15a0] sm:$0xff]
                %1211 = vst [vmem:[%s509 + $0xaf0] sm:$0xff] %v1210
                %v1212 = vld [vmem:[%s508 + $0x15a8] sm:$0xff]
                %1213 = vst [vmem:[%s509 + $0xaf8] sm:$0xff] %v1212
                %v1214 = vld [vmem:[%s508 + $0x15b0] sm:$0xff]
                %1215 = vst [vmem:[%s509 + $0xb00] sm:$0xff] %v1214
                %v1216 = vld [vmem:[%s508 + $0x15b8] sm:$0xff]
                %1217 = vst [vmem:[%s509 + $0xb08] sm:$0xff] %v1216
                %v1218 = vld [vmem:[%s508 + $0x15c0] sm:$0xff]
                %1219 = vst [vmem:[%s509 + $0xb10] sm:$0xff] %v1218
                %v1220 = vld [vmem:[%s508 + $0x15c8] sm:$0xff]
                %1221 = vst [vmem:[%s509 + $0xb18] sm:$0xff] %v1220
                %v1222 = vld [vmem:[%s508 + $0x15d0] sm:$0xff]
                %1223 = vst [vmem:[%s509 + $0xb20] sm:$0xff] %v1222
                %v1224 = vld [vmem:[%s508 + $0x15d8] sm:$0xff]
                %1225 = vst [vmem:[%s509 + $0xb28] sm:$0xff] %v1224
                %v1226 = vld [vmem:[%s508 + $0x15e0] sm:$0xff]
                %1227 = vst [vmem:[%s509 + $0xb30] sm:$0xff] %v1226
                %v1228 = vld [vmem:[%s508 + $0x15e8] sm:$0xff]
                %1229 = vst [vmem:[%s509 + $0xb38] sm:$0xff] %v1228
              $region64: #{robustness_loss_pallas.1} parent=58 // loop_footer
                %s507 = sadd.s32 1, %s503
              $region65: #{robustness_loss_pallas.1} parent=58 // loop_footer_branch
                %502 = sbr.rel target = $region61
              $region66: #{robustness_loss_pallas.1} parent=58 // loop_exit
                _
            $region59: #{robustness_loss_pallas.1} parent=54 // pred_fallthru
              _
            // Predicated region
            $region67: #{robustness_loss_pallas.1} parent=54 // pred_check
              _
            $region68: #{robustness_loss_pallas.1} parent=54 // pred_check_branch
              %1231 = sbr.rel target = $region70
            $region69: #{robustness_loss_pallas.1} parent=54 // pred_region
              _
            $region70: #{robustness_loss_pallas.1} parent=54 // pred_fallthru
              _
          $region55: #{robustness_loss_pallas.1} parent=50 // pred_fallthru
            _
          %1232 = vnop
        $region51: #{robustness_loss_pallas.1} parent=23 // pred_fallthru
          _
      $region24: #{robustness_loss_pallas.1} parent=5 // pred_fallthru
        _
      %p1233 = scmp.le.s32.totalorder 1, %s11
      %p1234 = scmp.lt.s32.totalorder %s11, 3
      %p1235 = pnand %p1233, %p1234
      %p1236 = pneg %p1235
      // Predicated region
      $region71: #{robustness_loss_pallas.1} parent=5 // pred_check
        _
      $region72: #{robustness_loss_pallas.1} parent=5 // pred_check_branch
        %1238 = sbr.rel (%p1235) target = $region74
      $region73: #{robustness_loss_pallas.1} parent=5 // pred_region
        %s1239 = ssub.s32 %s11, 1
        %s1240 = sand.u32 %s40, 1
        %s1241 = sand.u32 %s40, 1
        %s1242 = smul.addr %s1241, 1152
        %s1243 = scalar_lea.vmem [#allocation3], %s1242
        // Predicated region
        $region75: #{robustness_loss_pallas.1} parent=73 // pred_check
          %p1244 = pneg %p53
        $region76: #{robustness_loss_pallas.1} parent=73 // pred_check_branch
          %1246 = sbr.rel (%p1244) target = $region78
        $region77: #{robustness_loss_pallas.1} parent=73 // pred_region
          _
        $region78: #{robustness_loss_pallas.1} parent=73 // pred_fallthru
          _
        %s1247 = sand.u32 %s70, 1
        %s1248 = sand.u32 %s70, 1
        %s1249 = smul.addr %s1248, 2880
        %s1250 = scalar_lea.vmem [#allocation4], %s1249
        // Predicated region
        $region79: #{robustness_loss_pallas.1} parent=73 // pred_check
          %p1251 = pneg %p83
        $region80: #{robustness_loss_pallas.1} parent=73 // pred_check_branch
          %1253 = sbr.rel (%p1251) target = $region82
        $region81: #{robustness_loss_pallas.1} parent=73 // pred_region
          _
        $region82: #{robustness_loss_pallas.1} parent=73 // pred_fallthru
          _
        %s1254 = sand.u32 %s40, 1
        %s1255 = sand.u32 %s40, 1
        %s1256 = smul.addr %s1255, 1152
        %s1257 = scalar_lea.vmem [#allocation3], %s1256
        %p1258 = pneg %p53
        %p1259 = pneg %p50
        %s1260 = sand.u32 %s70, 1
        %s1261 = sand.u32 %s70, 1
        %s1262 = smul.addr %s1261, 2880
        %s1263 = scalar_lea.vmem [#allocation4], %s1262
        %p1264 = pneg %p83
        %p1265 = pneg %p80
        %p1266 = pneg %p104
        %p1267 = pneg %p101
        %p1268 = pneg %p125
        %p1269 = pneg %p122
        %p1270 = pneg %p146
        %p1271 = pneg %p143
        %s1272 = smul.u32 %s20, 2
        %s1273 = sadd.s32 %s1272, %s21
        %s1274 = smul.u32 36, %s1273
        %s1275 = smul.u32 %s20, 2
        %s1276 = sadd.s32 %s1275, %s21
        %s1277 = smul.u32 36, %s1276
        %p1279 = scmp.eq.s32.totalorder %s21, 0
        // Predicated region
        $region83: #{robustness_loss_pallas.1} parent=73 // pred_check
          %p1280 = pneg %p1279
        $region84: #{robustness_loss_pallas.1} parent=73 // pred_check_branch
          %1282 = sbr.rel (%p1280) target = $region86
        $region85: #{robustness_loss_pallas.1} parent=73 // pred_region
          %1283 = vst [vmem:[#allocation2] sm:$0xff] 0.0
          %vm1284 = vcmask 261120
          %1285 = vst.msk [vmem:[#allocation2 + $0x8] sm:$0xff] %vm1284, 0.0
          %1286 = vst [vmem:[#allocation2 + $0x10] sm:$0xff] 0.0
          %1287 = vst.msk [vmem:[#allocation2 + $0x18] sm:$0xff] %vm1284, 0.0
          %1288 = vst [vmem:[#allocation2 + $0x20] sm:$0xff] 0.0
          %1289 = vst.msk [vmem:[#allocation2 + $0x28] sm:$0xff] %vm1284, 0.0
          %1290 = vst [vmem:[#allocation2 + $0x30] sm:$0xff] 0.0
          %1291 = vst.msk [vmem:[#allocation2 + $0x38] sm:$0xff] %vm1284, 0.0
        $region86: #{robustness_loss_pallas.1} parent=73 // pred_fallthru
          _
        %v1292 = vld [vmem:[#allocation2] sm:$0xff]
        %v1293 = vld [vmem:[#allocation2 + $0x8] sm:$0xff]
        %v1294 = vld [vmem:[#allocation2 + $0x10] sm:$0xff]
        %v1295 = vld [vmem:[#allocation2 + $0x18] sm:$0xff]
        %v1296 = vld [vmem:[#allocation2 + $0x20] sm:$0xff]
        %v1297 = vld [vmem:[#allocation2 + $0x28] sm:$0xff]
        %v1298 = vld [vmem:[#allocation2 + $0x30] sm:$0xff]
        %v1299 = vld [vmem:[#allocation2 + $0x38] sm:$0xff]
        %v1300 = vld [vmem:[%s1243] sm:$0xff]
        %v1301 = vld [vmem:[%s1243 + $0x8] sm:$0xff]
        %v1302 = vld [vmem:[%s1243 + $0x10] sm:$0xff]
        %v1303 = vld [vmem:[%s1243 + $0x18] sm:$0xff]
        %v1304 = vld [vmem:[%s1243 + $0x20] sm:$0xff]
        %v1305 = vld [vmem:[%s1243 + $0x28] sm:$0xff]
        %v1306 = vld [vmem:[%s1243 + $0x30] sm:$0xff]
        %v1307 = vld [vmem:[%s1243 + $0x38] sm:$0xff]
        %v1308 = vld [vmem:[%s1243 + $0x40] sm:$0xff]
        %v1309 = vld [vmem:[%s1243 + $0x48] sm:$0xff]
        %v1310 = vld [vmem:[%s1243 + $0x50] sm:$0xff]
        %v1311 = vld [vmem:[%s1243 + $0x58] sm:$0xff]
        %v1312 = vld [vmem:[%s1243 + $0x60] sm:$0xff]
        %v1313 = vld [vmem:[%s1243 + $0x68] sm:$0xff]
        %v1314 = vld [vmem:[%s1243 + $0x70] sm:$0xff]
        %v1315 = vld [vmem:[%s1243 + $0x78] sm:$0xff]
        %v1316 = vld [vmem:[%s1243 + $0x80] sm:$0xff]
        %v1317 = vld [vmem:[%s1243 + $0x88] sm:$0xff]
        %v1318 = vld [vmem:[%s1243 + $0x90] sm:$0xff]
        %v1319 = vld [vmem:[%s1243 + $0x98] sm:$0xff]
        %v1320 = vld [vmem:[%s1243 + $0xa0] sm:$0xff]
        %v1321 = vld [vmem:[%s1243 + $0xa8] sm:$0xff]
        %v1322 = vld [vmem:[%s1243 + $0xb0] sm:$0xff]
        %v1323 = vld [vmem:[%s1243 + $0xb8] sm:$0xff]
        %v1324 = vld [vmem:[%s1243 + $0xc0] sm:$0xff]
        %v1325 = vld [vmem:[%s1243 + $0xc8] sm:$0xff]
        %v1326 = vld [vmem:[%s1243 + $0xd0] sm:$0xff]
        %v1327 = vld [vmem:[%s1243 + $0xd8] sm:$0xff]
        %v1328 = vld [vmem:[%s1243 + $0xe0] sm:$0xff]
        %v1329 = vld [vmem:[%s1243 + $0xe8] sm:$0xff]
        %v1330 = vld [vmem:[%s1243 + $0xf0] sm:$0xff]
        %v1331 = vld [vmem:[%s1243 + $0xf8] sm:$0xff]
        %v1332 = vld [vmem:[%s1243 + $0x100] sm:$0xff]
        %v1333 = vld [vmem:[%s1243 + $0x108] sm:$0xff]
        %v1334 = vld [vmem:[%s1243 + $0x110] sm:$0xff]
        %v1335 = vld [vmem:[%s1243 + $0x118] sm:$0xff]
        %v1336 = vld [vmem:[%s1243 + $0x120] sm:$0xff]
        %v1337 = vld [vmem:[%s1243 + $0x128] sm:$0xff]
        %v1338 = vld [vmem:[%s1243 + $0x130] sm:$0xff]
        %v1339 = vld [vmem:[%s1243 + $0x138] sm:$0xff]
        %v1340 = vld [vmem:[%s1243 + $0x140] sm:$0xff]
        %v1341 = vld [vmem:[%s1243 + $0x148] sm:$0xff]
        %v1342 = vld [vmem:[%s1243 + $0x150] sm:$0xff]
        %v1343 = vld [vmem:[%s1243 + $0x158] sm:$0xff]
        %v1344 = vld [vmem:[%s1243 + $0x160] sm:$0xff]
        %v1345 = vld [vmem:[%s1243 + $0x168] sm:$0xff]
        %v1346 = vld [vmem:[%s1243 + $0x170] sm:$0xff]
        %v1347 = vld [vmem:[%s1243 + $0x178] sm:$0xff]
        %v1348 = vld [vmem:[%s1243 + $0x180] sm:$0xff]
        %v1349 = vld [vmem:[%s1243 + $0x188] sm:$0xff]
        %v1350 = vld [vmem:[%s1243 + $0x190] sm:$0xff]
        %v1351 = vld [vmem:[%s1243 + $0x198] sm:$0xff]
        %v1352 = vld [vmem:[%s1243 + $0x1a0] sm:$0xff]
        %v1353 = vld [vmem:[%s1243 + $0x1a8] sm:$0xff]
        %v1354 = vld [vmem:[%s1243 + $0x1b0] sm:$0xff]
        %v1355 = vld [vmem:[%s1243 + $0x1b8] sm:$0xff]
        %v1356 = vld [vmem:[%s1243 + $0x1c0] sm:$0xff]
        %v1357 = vld [vmem:[%s1243 + $0x1c8] sm:$0xff]
        %v1358 = vld [vmem:[%s1243 + $0x1d0] sm:$0xff]
        %v1359 = vld [vmem:[%s1243 + $0x1d8] sm:$0xff]
        %v1360 = vld [vmem:[%s1243 + $0x1e0] sm:$0xff]
        %v1361 = vld [vmem:[%s1243 + $0x1e8] sm:$0xff]
        %v1362 = vld [vmem:[%s1243 + $0x1f0] sm:$0xff]
        %v1363 = vld [vmem:[%s1243 + $0x1f8] sm:$0xff]
        %v1364 = vld [vmem:[%s1243 + $0x200] sm:$0xff]
        %v1365 = vld [vmem:[%s1243 + $0x208] sm:$0xff]
        %v1366 = vld [vmem:[%s1243 + $0x210] sm:$0xff]
        %v1367 = vld [vmem:[%s1243 + $0x218] sm:$0xff]
        %v1368 = vld [vmem:[%s1243 + $0x220] sm:$0xff]
        %v1369 = vld [vmem:[%s1243 + $0x228] sm:$0xff]
        %v1370 = vld [vmem:[%s1243 + $0x230] sm:$0xff]
        %v1371 = vld [vmem:[%s1243 + $0x238] sm:$0xff]
        %v1372 = vld [vmem:[%s1243 + $0x240] sm:$0xff]
        %v1373 = vld [vmem:[%s1243 + $0x248] sm:$0xff]
        %v1374 = vld [vmem:[%s1243 + $0x250] sm:$0xff]
        %v1375 = vld [vmem:[%s1243 + $0x258] sm:$0xff]
        %v1376 = vld [vmem:[%s1243 + $0x260] sm:$0xff]
        %v1377 = vld [vmem:[%s1243 + $0x268] sm:$0xff]
        %v1378 = vld [vmem:[%s1243 + $0x270] sm:$0xff]
        %v1379 = vld [vmem:[%s1243 + $0x278] sm:$0xff]
        %v1380 = vld [vmem:[%s1243 + $0x280] sm:$0xff]
        %v1381 = vld [vmem:[%s1243 + $0x288] sm:$0xff]
        %v1382 = vld [vmem:[%s1243 + $0x290] sm:$0xff]
        %v1383 = vld [vmem:[%s1243 + $0x298] sm:$0xff]
        %v1384 = vld [vmem:[%s1243 + $0x2a0] sm:$0xff]
        %v1385 = vld [vmem:[%s1243 + $0x2a8] sm:$0xff]
        %v1386 = vld [vmem:[%s1243 + $0x2b0] sm:$0xff]
        %v1387 = vld [vmem:[%s1243 + $0x2b8] sm:$0xff]
        %v1388 = vld [vmem:[%s1243 + $0x2c0] sm:$0xff]
        %v1389 = vld [vmem:[%s1243 + $0x2c8] sm:$0xff]
        %v1390 = vld [vmem:[%s1243 + $0x2d0] sm:$0xff]
        %v1391 = vld [vmem:[%s1243 + $0x2d8] sm:$0xff]
        %v1392 = vld [vmem:[%s1243 + $0x2e0] sm:$0xff]
        %v1393 = vld [vmem:[%s1243 + $0x2e8] sm:$0xff]
        %v1394 = vld [vmem:[%s1243 + $0x2f0] sm:$0xff]
        %v1395 = vld [vmem:[%s1243 + $0x2f8] sm:$0xff]
        %v1396 = vld [vmem:[%s1243 + $0x300] sm:$0xff]
        %v1397 = vld [vmem:[%s1243 + $0x308] sm:$0xff]
        %v1398 = vld [vmem:[%s1243 + $0x310] sm:$0xff]
        %v1399 = vld [vmem:[%s1243 + $0x318] sm:$0xff]
        %v1400 = vld [vmem:[%s1243 + $0x320] sm:$0xff]
        %v1401 = vld [vmem:[%s1243 + $0x328] sm:$0xff]
        %v1402 = vld [vmem:[%s1243 + $0x330] sm:$0xff]
        %v1403 = vld [vmem:[%s1243 + $0x338] sm:$0xff]
        %v1404 = vld [vmem:[%s1243 + $0x340] sm:$0xff]
        %v1405 = vld [vmem:[%s1243 + $0x348] sm:$0xff]
        %v1406 = vld [vmem:[%s1243 + $0x350] sm:$0xff]
        %v1407 = vld [vmem:[%s1243 + $0x358] sm:$0xff]
        %v1408 = vld [vmem:[%s1243 + $0x360] sm:$0xff]
        %v1409 = vld [vmem:[%s1243 + $0x368] sm:$0xff]
        %v1410 = vld [vmem:[%s1243 + $0x370] sm:$0xff]
        %v1411 = vld [vmem:[%s1243 + $0x378] sm:$0xff]
        %v1412 = vld [vmem:[%s1243 + $0x380] sm:$0xff]
        %v1413 = vld [vmem:[%s1243 + $0x388] sm:$0xff]
        %v1414 = vld [vmem:[%s1243 + $0x390] sm:$0xff]
        %v1415 = vld [vmem:[%s1243 + $0x398] sm:$0xff]
        %v1416 = vld [vmem:[%s1243 + $0x3a0] sm:$0xff]
        %v1417 = vld [vmem:[%s1243 + $0x3a8] sm:$0xff]
        %v1418 = vld [vmem:[%s1243 + $0x3b0] sm:$0xff]
        %v1419 = vld [vmem:[%s1243 + $0x3b8] sm:$0xff]
        %v1420 = vld [vmem:[%s1243 + $0x3c0] sm:$0xff]
        %v1421 = vld [vmem:[%s1243 + $0x3c8] sm:$0xff]
        %v1422 = vld [vmem:[%s1243 + $0x3d0] sm:$0xff]
        %v1423 = vld [vmem:[%s1243 + $0x3d8] sm:$0xff]
        %v1424 = vld [vmem:[%s1243 + $0x3e0] sm:$0xff]
        %v1425 = vld [vmem:[%s1243 + $0x3e8] sm:$0xff]
        %v1426 = vld [vmem:[%s1243 + $0x3f0] sm:$0xff]
        %v1427 = vld [vmem:[%s1243 + $0x3f8] sm:$0xff]
        %v1428 = vld [vmem:[%s1243 + $0x400] sm:$0xff]
        %v1429 = vld [vmem:[%s1243 + $0x408] sm:$0xff]
        %v1430 = vld [vmem:[%s1243 + $0x410] sm:$0xff]
        %v1431 = vld [vmem:[%s1243 + $0x418] sm:$0xff]
        %v1432 = vld [vmem:[%s1243 + $0x420] sm:$0xff]
        %v1433 = vld [vmem:[%s1243 + $0x428] sm:$0xff]
        %v1434 = vld [vmem:[%s1243 + $0x430] sm:$0xff]
        %v1435 = vld [vmem:[%s1243 + $0x438] sm:$0xff]
        %v1436 = vld [vmem:[%s1243 + $0x440] sm:$0xff]
        %v1437 = vld [vmem:[%s1243 + $0x448] sm:$0xff]
        %v1438 = vld [vmem:[%s1243 + $0x450] sm:$0xff]
        %v1439 = vld [vmem:[%s1243 + $0x458] sm:$0xff]
        %v1440 = vld [vmem:[%s1243 + $0x460] sm:$0xff]
        %v1441 = vld [vmem:[%s1243 + $0x468] sm:$0xff]
        %v1442 = vld [vmem:[%s1243 + $0x470] sm:$0xff]
        %v1443 = vld [vmem:[%s1243 + $0x478] sm:$0xff]
        %v1444 = vpack.c.bf16 %v1336, %v1300
        %v1445 = vpack.c.bf16 %v1337, %v1301
        %v1446 = vpack.c.bf16 %v1338, %v1302
        %v1447 = vpack.c.bf16 %v1339, %v1303
        %v1448 = vpack.c.bf16 %v1340, %v1304
        %v1449 = vpack.c.bf16 %v1341, %v1305
        %v1450 = vpack.c.bf16 %v1342, %v1306
        %v1451 = vpack.c.bf16 %v1343, %v1307
        %v1452 = vpack.c.bf16 %v1344, %v1308
        %v1453 = vpack.c.bf16 %v1345, %v1309
        %v1454 = vpack.c.bf16 %v1346, %v1310
        %v1455 = vpack.c.bf16 %v1347, %v1311
        %v1456 = vpack.c.bf16 %v1348, %v1312
        %v1457 = vpack.c.bf16 %v1349, %v1313
        %v1458 = vpack.c.bf16 %v1350, %v1314
        %v1459 = vpack.c.bf16 %v1351, %v1315
        %v1460 = vpack.c.bf16 %v1352, %v1316
        %v1461 = vpack.c.bf16 %v1353, %v1317
        %v1462 = vpack.c.bf16 %v1354, %v1318
        %v1463 = vpack.c.bf16 %v1355, %v1319
        %v1464 = vpack.c.bf16 %v1356, %v1320
        %v1465 = vpack.c.bf16 %v1357, %v1321
        %v1466 = vpack.c.bf16 %v1358, %v1322
        %v1467 = vpack.c.bf16 %v1359, %v1323
        %v1468 = vpack.c.bf16 %v1360, %v1324
        %v1469 = vpack.c.bf16 %v1361, %v1325
        %v1470 = vpack.c.bf16 %v1362, %v1326
        %v1471 = vpack.c.bf16 %v1363, %v1327
        %v1472 = vpack.c.bf16 %v1364, %v1328
        %v1473 = vpack.c.bf16 %v1365, %v1329
        %v1474 = vpack.c.bf16 %v1366, %v1330
        %v1475 = vpack.c.bf16 %v1367, %v1331
        %v1476 = vpack.c.bf16 %v1368, %v1332
        %v1477 = vpack.c.bf16 %v1369, %v1333
        %v1478 = vpack.c.bf16 %v1370, %v1334
        %v1479 = vpack.c.bf16 %v1371, %v1335
        %v1480 = vpack.c.bf16 %v1408, %v1372
        %v1481 = vpack.c.bf16 %v1409, %v1373
        %v1482 = vpack.c.bf16 %v1410, %v1374
        %v1483 = vpack.c.bf16 %v1411, %v1375
        %v1484 = vpack.c.bf16 %v1412, %v1376
        %v1485 = vpack.c.bf16 %v1413, %v1377
        %v1486 = vpack.c.bf16 %v1414, %v1378
        %v1487 = vpack.c.bf16 %v1415, %v1379
        %v1488 = vpack.c.bf16 %v1416, %v1380
        %v1489 = vpack.c.bf16 %v1417, %v1381
        %v1490 = vpack.c.bf16 %v1418, %v1382
        %v1491 = vpack.c.bf16 %v1419, %v1383
        %v1492 = vpack.c.bf16 %v1420, %v1384
        %v1493 = vpack.c.bf16 %v1421, %v1385
        %v1494 = vpack.c.bf16 %v1422, %v1386
        %v1495 = vpack.c.bf16 %v1423, %v1387
        %v1496 = vpack.c.bf16 %v1424, %v1388
        %v1497 = vpack.c.bf16 %v1425, %v1389
        %v1498 = vpack.c.bf16 %v1426, %v1390
        %v1499 = vpack.c.bf16 %v1427, %v1391
        %v1500 = vpack.c.bf16 %v1428, %v1392
        %v1501 = vpack.c.bf16 %v1429, %v1393
        %v1502 = vpack.c.bf16 %v1430, %v1394
        %v1503 = vpack.c.bf16 %v1431, %v1395
        %v1504 = vpack.c.bf16 %v1432, %v1396
        %v1505 = vpack.c.bf16 %v1433, %v1397
        %v1506 = vpack.c.bf16 %v1434, %v1398
        %v1507 = vpack.c.bf16 %v1435, %v1399
        %v1508 = vpack.c.bf16 %v1436, %v1400
        %v1509 = vpack.c.bf16 %v1437, %v1401
        %v1510 = vpack.c.bf16 %v1438, %v1402
        %v1511 = vpack.c.bf16 %v1439, %v1403
        %v1512 = vpack.c.bf16 %v1440, %v1404
        %v1513 = vpack.c.bf16 %v1441, %v1405
        %v1514 = vpack.c.bf16 %v1442, %v1406
        %v1515 = vpack.c.bf16 %v1443, %v1407
        %v1516 = vld [vmem:[%s1250] sm:$0xff]
        %v1517 = vld [vmem:[%s1250 + $0x8] sm:$0xff]
        %v1518 = vld [vmem:[%s1250 + $0x10] sm:$0xff]
        %v1519 = vld [vmem:[%s1250 + $0x18] sm:$0xff]
        %v1520 = vld [vmem:[%s1250 + $0x20] sm:$0xff]
        %v1521 = vld [vmem:[%s1250 + $0x28] sm:$0xff]
        %v1522 = vld [vmem:[%s1250 + $0x30] sm:$0xff]
        %v1523 = vld [vmem:[%s1250 + $0x38] sm:$0xff]
        %v1524 = vld [vmem:[%s1250 + $0x40] sm:$0xff]
        %v1525 = vld [vmem:[%s1250 + $0x48] sm:$0xff]
        %v1526 = vld [vmem:[%s1250 + $0x50] sm:$0xff]
        %v1527 = vld [vmem:[%s1250 + $0x58] sm:$0xff]
        %v1528 = vld [vmem:[%s1250 + $0x60] sm:$0xff]
        %v1529 = vld [vmem:[%s1250 + $0x68] sm:$0xff]
        %v1530 = vld [vmem:[%s1250 + $0x70] sm:$0xff]
        %v1531 = vld [vmem:[%s1250 + $0x78] sm:$0xff]
        %v1532 = vld [vmem:[%s1250 + $0x80] sm:$0xff]
        %v1533 = vld [vmem:[%s1250 + $0x88] sm:$0xff]
        %v1534 = vld [vmem:[%s1250 + $0x90] sm:$0xff]
        %v1535 = vld [vmem:[%s1250 + $0x98] sm:$0xff]
        %v1536 = vld [vmem:[%s1250 + $0xa0] sm:$0xff]
        %v1537 = vld [vmem:[%s1250 + $0xa8] sm:$0xff]
        %v1538 = vld [vmem:[%s1250 + $0xb0] sm:$0xff]
        %v1539 = vld [vmem:[%s1250 + $0xb8] sm:$0xff]
        %v1540 = vld [vmem:[%s1250 + $0xc0] sm:$0xff]
        %v1541 = vld [vmem:[%s1250 + $0xc8] sm:$0xff]
        %v1542 = vld [vmem:[%s1250 + $0xd0] sm:$0xff]
        %v1543 = vld [vmem:[%s1250 + $0xd8] sm:$0xff]
        %v1544 = vld [vmem:[%s1250 + $0xe0] sm:$0xff]
        %v1545 = vld [vmem:[%s1250 + $0xe8] sm:$0xff]
        %v1546 = vld [vmem:[%s1250 + $0xf0] sm:$0xff]
        %v1547 = vld [vmem:[%s1250 + $0xf8] sm:$0xff]
        %v1548 = vld [vmem:[%s1250 + $0x100] sm:$0xff]
        %v1549 = vld [vmem:[%s1250 + $0x108] sm:$0xff]
        %v1550 = vld [vmem:[%s1250 + $0x110] sm:$0xff]
        %v1551 = vld [vmem:[%s1250 + $0x118] sm:$0xff]
        %v1552 = vld [vmem:[%s1250 + $0x120] sm:$0xff]
        %v1553 = vld [vmem:[%s1250 + $0x128] sm:$0xff]
        %v1554 = vld [vmem:[%s1250 + $0x130] sm:$0xff]
        %v1555 = vld [vmem:[%s1250 + $0x138] sm:$0xff]
        %v1556 = vld [vmem:[%s1250 + $0x140] sm:$0xff]
        %v1557 = vld [vmem:[%s1250 + $0x148] sm:$0xff]
        %v1558 = vld [vmem:[%s1250 + $0x150] sm:$0xff]
        %v1559 = vld [vmem:[%s1250 + $0x158] sm:$0xff]
        %v1560 = vld [vmem:[%s1250 + $0x160] sm:$0xff]
        %v1561 = vld [vmem:[%s1250 + $0x168] sm:$0xff]
        %v1562 = vld [vmem:[%s1250 + $0x170] sm:$0xff]
        %v1563 = vld [vmem:[%s1250 + $0x178] sm:$0xff]
        %v1564 = vld [vmem:[%s1250 + $0x180] sm:$0xff]
        %v1565 = vld [vmem:[%s1250 + $0x188] sm:$0xff]
        %v1566 = vld [vmem:[%s1250 + $0x190] sm:$0xff]
        %v1567 = vld [vmem:[%s1250 + $0x198] sm:$0xff]
        %v1568 = vld [vmem:[%s1250 + $0x1a0] sm:$0xff]
        %v1569 = vld [vmem:[%s1250 + $0x1a8] sm:$0xff]
        %v1570 = vld [vmem:[%s1250 + $0x1b0] sm:$0xff]
        %v1571 = vld [vmem:[%s1250 + $0x1b8] sm:$0xff]
        %v1572 = vld [vmem:[%s1250 + $0x1c0] sm:$0xff]
        %v1573 = vld [vmem:[%s1250 + $0x1c8] sm:$0xff]
        %v1574 = vld [vmem:[%s1250 + $0x1d0] sm:$0xff]
        %v1575 = vld [vmem:[%s1250 + $0x1d8] sm:$0xff]
        %v1576 = vld [vmem:[%s1250 + $0x1e0] sm:$0xff]
        %v1577 = vld [vmem:[%s1250 + $0x1e8] sm:$0xff]
        %v1578 = vld [vmem:[%s1250 + $0x1f0] sm:$0xff]
        %v1579 = vld [vmem:[%s1250 + $0x1f8] sm:$0xff]
        %v1580 = vld [vmem:[%s1250 + $0x200] sm:$0xff]
        %v1581 = vld [vmem:[%s1250 + $0x208] sm:$0xff]
        %v1582 = vld [vmem:[%s1250 + $0x210] sm:$0xff]
        %v1583 = vld [vmem:[%s1250 + $0x218] sm:$0xff]
        %v1584 = vld [vmem:[%s1250 + $0x220] sm:$0xff]
        %v1585 = vld [vmem:[%s1250 + $0x228] sm:$0xff]
        %v1586 = vld [vmem:[%s1250 + $0x230] sm:$0xff]
        %v1587 = vld [vmem:[%s1250 + $0x238] sm:$0xff]
        %v1588 = vld [vmem:[%s1250 + $0x240] sm:$0xff]
        %v1589 = vld [vmem:[%s1250 + $0x248] sm:$0xff]
        %v1590 = vld [vmem:[%s1250 + $0x250] sm:$0xff]
        %v1591 = vld [vmem:[%s1250 + $0x258] sm:$0xff]
        %v1592 = vld [vmem:[%s1250 + $0x260] sm:$0xff]
        %v1593 = vld [vmem:[%s1250 + $0x268] sm:$0xff]
        %v1594 = vld [vmem:[%s1250 + $0x270] sm:$0xff]
        %v1595 = vld [vmem:[%s1250 + $0x278] sm:$0xff]
        %v1596 = vld [vmem:[%s1250 + $0x280] sm:$0xff]
        %v1597 = vld [vmem:[%s1250 + $0x288] sm:$0xff]
        %v1598 = vld [vmem:[%s1250 + $0x290] sm:$0xff]
        %v1599 = vld [vmem:[%s1250 + $0x298] sm:$0xff]
        %v1600 = vld [vmem:[%s1250 + $0x2a0] sm:$0xff]
        %v1601 = vld [vmem:[%s1250 + $0x2a8] sm:$0xff]
        %v1602 = vld [vmem:[%s1250 + $0x2b0] sm:$0xff]
        %v1603 = vld [vmem:[%s1250 + $0x2b8] sm:$0xff]
        %v1604 = vld [vmem:[%s1250 + $0x2c0] sm:$0xff]
        %v1605 = vld [vmem:[%s1250 + $0x2c8] sm:$0xff]
        %v1606 = vld [vmem:[%s1250 + $0x2d0] sm:$0xff]
        %v1607 = vld [vmem:[%s1250 + $0x2d8] sm:$0xff]
        %v1608 = vld [vmem:[%s1250 + $0x2e0] sm:$0xff]
        %v1609 = vld [vmem:[%s1250 + $0x2e8] sm:$0xff]
        %v1610 = vld [vmem:[%s1250 + $0x2f0] sm:$0xff]
        %v1611 = vld [vmem:[%s1250 + $0x2f8] sm:$0xff]
        %v1612 = vld [vmem:[%s1250 + $0x300] sm:$0xff]
        %v1613 = vld [vmem:[%s1250 + $0x308] sm:$0xff]
        %v1614 = vld [vmem:[%s1250 + $0x310] sm:$0xff]
        %v1615 = vld [vmem:[%s1250 + $0x318] sm:$0xff]
        %v1616 = vld [vmem:[%s1250 + $0x320] sm:$0xff]
        %v1617 = vld [vmem:[%s1250 + $0x328] sm:$0xff]
        %v1618 = vld [vmem:[%s1250 + $0x330] sm:$0xff]
        %v1619 = vld [vmem:[%s1250 + $0x338] sm:$0xff]
        %v1620 = vld [vmem:[%s1250 + $0x340] sm:$0xff]
        %v1621 = vld [vmem:[%s1250 + $0x348] sm:$0xff]
        %v1622 = vld [vmem:[%s1250 + $0x350] sm:$0xff]
        %v1623 = vld [vmem:[%s1250 + $0x358] sm:$0xff]
        %v1624 = vld [vmem:[%s1250 + $0x360] sm:$0xff]
        %v1625 = vld [vmem:[%s1250 + $0x368] sm:$0xff]
        %v1626 = vld [vmem:[%s1250 + $0x370] sm:$0xff]
        %v1627 = vld [vmem:[%s1250 + $0x378] sm:$0xff]
        %v1628 = vld [vmem:[%s1250 + $0x380] sm:$0xff]
        %v1629 = vld [vmem:[%s1250 + $0x388] sm:$0xff]
        %v1630 = vld [vmem:[%s1250 + $0x390] sm:$0xff]
        %v1631 = vld [vmem:[%s1250 + $0x398] sm:$0xff]
        %v1632 = vld [vmem:[%s1250 + $0x3a0] sm:$0xff]
        %v1633 = vld [vmem:[%s1250 + $0x3a8] sm:$0xff]
        %v1634 = vld [vmem:[%s1250 + $0x3b0] sm:$0xff]
        %v1635 = vld [vmem:[%s1250 + $0x3b8] sm:$0xff]
        %v1636 = vld [vmem:[%s1250 + $0x3c0] sm:$0xff]
        %v1637 = vld [vmem:[%s1250 + $0x3c8] sm:$0xff]
        %v1638 = vld [vmem:[%s1250 + $0x3d0] sm:$0xff]
        %v1639 = vld [vmem:[%s1250 + $0x3d8] sm:$0xff]
        %v1640 = vld [vmem:[%s1250 + $0x3e0] sm:$0xff]
        %v1641 = vld [vmem:[%s1250 + $0x3e8] sm:$0xff]
        %v1642 = vld [vmem:[%s1250 + $0x3f0] sm:$0xff]
        %v1643 = vld [vmem:[%s1250 + $0x3f8] sm:$0xff]
        %v1644 = vld [vmem:[%s1250 + $0x400] sm:$0xff]
        %v1645 = vld [vmem:[%s1250 + $0x408] sm:$0xff]
        %v1646 = vld [vmem:[%s1250 + $0x410] sm:$0xff]
        %v1647 = vld [vmem:[%s1250 + $0x418] sm:$0xff]
        %v1648 = vld [vmem:[%s1250 + $0x420] sm:$0xff]
        %v1649 = vld [vmem:[%s1250 + $0x428] sm:$0xff]
        %v1650 = vld [vmem:[%s1250 + $0x430] sm:$0xff]
        %v1651 = vld [vmem:[%s1250 + $0x438] sm:$0xff]
        %v1652 = vld [vmem:[%s1250 + $0x440] sm:$0xff]
        %v1653 = vld [vmem:[%s1250 + $0x448] sm:$0xff]
        %v1654 = vld [vmem:[%s1250 + $0x450] sm:$0xff]
        %v1655 = vld [vmem:[%s1250 + $0x458] sm:$0xff]
        %v1656 = vld [vmem:[%s1250 + $0x460] sm:$0xff]
        %v1657 = vld [vmem:[%s1250 + $0x468] sm:$0xff]
        %v1658 = vld [vmem:[%s1250 + $0x470] sm:$0xff]
        %v1659 = vld [vmem:[%s1250 + $0x478] sm:$0xff]
        %v1660 = vld [vmem:[%s1250 + $0x480] sm:$0xff]
        %v1661 = vld [vmem:[%s1250 + $0x488] sm:$0xff]
        %v1662 = vld [vmem:[%s1250 + $0x490] sm:$0xff]
        %v1663 = vld [vmem:[%s1250 + $0x498] sm:$0xff]
        %v1664 = vld [vmem:[%s1250 + $0x4a0] sm:$0xff]
        %v1665 = vld [vmem:[%s1250 + $0x4a8] sm:$0xff]
        %v1666 = vld [vmem:[%s1250 + $0x4b0] sm:$0xff]
        %v1667 = vld [vmem:[%s1250 + $0x4b8] sm:$0xff]
        %v1668 = vld [vmem:[%s1250 + $0x4c0] sm:$0xff]
        %v1669 = vld [vmem:[%s1250 + $0x4c8] sm:$0xff]
        %v1670 = vld [vmem:[%s1250 + $0x4d0] sm:$0xff]
        %v1671 = vld [vmem:[%s1250 + $0x4d8] sm:$0xff]
        %v1672 = vld [vmem:[%s1250 + $0x4e0] sm:$0xff]
        %v1673 = vld [vmem:[%s1250 + $0x4e8] sm:$0xff]
        %v1674 = vld [vmem:[%s1250 + $0x4f0] sm:$0xff]
        %v1675 = vld [vmem:[%s1250 + $0x4f8] sm:$0xff]
        %v1676 = vld [vmem:[%s1250 + $0x500] sm:$0xff]
        %v1677 = vld [vmem:[%s1250 + $0x508] sm:$0xff]
        %v1678 = vld [vmem:[%s1250 + $0x510] sm:$0xff]
        %v1679 = vld [vmem:[%s1250 + $0x518] sm:$0xff]
        %v1680 = vld [vmem:[%s1250 + $0x520] sm:$0xff]
        %v1681 = vld [vmem:[%s1250 + $0x528] sm:$0xff]
        %v1682 = vld [vmem:[%s1250 + $0x530] sm:$0xff]
        %v1683 = vld [vmem:[%s1250 + $0x538] sm:$0xff]
        %v1684 = vld [vmem:[%s1250 + $0x540] sm:$0xff]
        %v1685 = vld [vmem:[%s1250 + $0x548] sm:$0xff]
        %v1686 = vld [vmem:[%s1250 + $0x550] sm:$0xff]
        %v1687 = vld [vmem:[%s1250 + $0x558] sm:$0xff]
        %v1688 = vld [vmem:[%s1250 + $0x560] sm:$0xff]
        %v1689 = vld [vmem:[%s1250 + $0x568] sm:$0xff]
        %v1690 = vld [vmem:[%s1250 + $0x570] sm:$0xff]
        %v1691 = vld [vmem:[%s1250 + $0x578] sm:$0xff]
        %v1692 = vld [vmem:[%s1250 + $0x580] sm:$0xff]
        %v1693 = vld [vmem:[%s1250 + $0x588] sm:$0xff]
        %v1694 = vld [vmem:[%s1250 + $0x590] sm:$0xff]
        %v1695 = vld [vmem:[%s1250 + $0x598] sm:$0xff]
        %v1696 = vld [vmem:[%s1250 + $0x5a0] sm:$0xff]
        %v1697 = vld [vmem:[%s1250 + $0x5a8] sm:$0xff]
        %v1698 = vld [vmem:[%s1250 + $0x5b0] sm:$0xff]
        %v1699 = vld [vmem:[%s1250 + $0x5b8] sm:$0xff]
        %v1700 = vld [vmem:[%s1250 + $0x5c0] sm:$0xff]
        %v1701 = vld [vmem:[%s1250 + $0x5c8] sm:$0xff]
        %v1702 = vld [vmem:[%s1250 + $0x5d0] sm:$0xff]
        %v1703 = vld [vmem:[%s1250 + $0x5d8] sm:$0xff]
        %v1704 = vld [vmem:[%s1250 + $0x5e0] sm:$0xff]
        %v1705 = vld [vmem:[%s1250 + $0x5e8] sm:$0xff]
        %v1706 = vld [vmem:[%s1250 + $0x5f0] sm:$0xff]
        %v1707 = vld [vmem:[%s1250 + $0x5f8] sm:$0xff]
        %v1708 = vld [vmem:[%s1250 + $0x600] sm:$0xff]
        %v1709 = vld [vmem:[%s1250 + $0x608] sm:$0xff]
        %v1710 = vld [vmem:[%s1250 + $0x610] sm:$0xff]
        %v1711 = vld [vmem:[%s1250 + $0x618] sm:$0xff]
        %v1712 = vld [vmem:[%s1250 + $0x620] sm:$0xff]
        %v1713 = vld [vmem:[%s1250 + $0x628] sm:$0xff]
        %v1714 = vld [vmem:[%s1250 + $0x630] sm:$0xff]
        %v1715 = vld [vmem:[%s1250 + $0x638] sm:$0xff]
        %v1716 = vld [vmem:[%s1250 + $0x640] sm:$0xff]
        %v1717 = vld [vmem:[%s1250 + $0x648] sm:$0xff]
        %v1718 = vld [vmem:[%s1250 + $0x650] sm:$0xff]
        %v1719 = vld [vmem:[%s1250 + $0x658] sm:$0xff]
        %v1720 = vld [vmem:[%s1250 + $0x660] sm:$0xff]
        %v1721 = vld [vmem:[%s1250 + $0x668] sm:$0xff]
        %v1722 = vld [vmem:[%s1250 + $0x670] sm:$0xff]
        %v1723 = vld [vmem:[%s1250 + $0x678] sm:$0xff]
        %v1724 = vld [vmem:[%s1250 + $0x680] sm:$0xff]
        %v1725 = vld [vmem:[%s1250 + $0x688] sm:$0xff]
        %v1726 = vld [vmem:[%s1250 + $0x690] sm:$0xff]
        %v1727 = vld [vmem:[%s1250 + $0x698] sm:$0xff]
        %v1728 = vld [vmem:[%s1250 + $0x6a0] sm:$0xff]
        %v1729 = vld [vmem:[%s1250 + $0x6a8] sm:$0xff]
        %v1730 = vld [vmem:[%s1250 + $0x6b0] sm:$0xff]
        %v1731 = vld [vmem:[%s1250 + $0x6b8] sm:$0xff]
        %v1732 = vld [vmem:[%s1250 + $0x6c0] sm:$0xff]
        %v1733 = vld [vmem:[%s1250 + $0x6c8] sm:$0xff]
        %v1734 = vld [vmem:[%s1250 + $0x6d0] sm:$0xff]
        %v1735 = vld [vmem:[%s1250 + $0x6d8] sm:$0xff]
        %v1736 = vld [vmem:[%s1250 + $0x6e0] sm:$0xff]
        %v1737 = vld [vmem:[%s1250 + $0x6e8] sm:$0xff]
        %v1738 = vld [vmem:[%s1250 + $0x6f0] sm:$0xff]
        %v1739 = vld [vmem:[%s1250 + $0x6f8] sm:$0xff]
        %v1740 = vld [vmem:[%s1250 + $0x700] sm:$0xff]
        %v1741 = vld [vmem:[%s1250 + $0x708] sm:$0xff]
        %v1742 = vld [vmem:[%s1250 + $0x710] sm:$0xff]
        %v1743 = vld [vmem:[%s1250 + $0x718] sm:$0xff]
        %v1744 = vld [vmem:[%s1250 + $0x720] sm:$0xff]
        %v1745 = vld [vmem:[%s1250 + $0x728] sm:$0xff]
        %v1746 = vld [vmem:[%s1250 + $0x730] sm:$0xff]
        %v1747 = vld [vmem:[%s1250 + $0x738] sm:$0xff]
        %v1748 = vld [vmem:[%s1250 + $0x740] sm:$0xff]
        %v1749 = vld [vmem:[%s1250 + $0x748] sm:$0xff]
        %v1750 = vld [vmem:[%s1250 + $0x750] sm:$0xff]
        %v1751 = vld [vmem:[%s1250 + $0x758] sm:$0xff]
        %v1752 = vld [vmem:[%s1250 + $0x760] sm:$0xff]
        %v1753 = vld [vmem:[%s1250 + $0x768] sm:$0xff]
        %v1754 = vld [vmem:[%s1250 + $0x770] sm:$0xff]
        %v1755 = vld [vmem:[%s1250 + $0x778] sm:$0xff]
        %v1756 = vld [vmem:[%s1250 + $0x780] sm:$0xff]
        %v1757 = vld [vmem:[%s1250 + $0x788] sm:$0xff]
        %v1758 = vld [vmem:[%s1250 + $0x790] sm:$0xff]
        %v1759 = vld [vmem:[%s1250 + $0x798] sm:$0xff]
        %v1760 = vld [vmem:[%s1250 + $0x7a0] sm:$0xff]
        %v1761 = vld [vmem:[%s1250 + $0x7a8] sm:$0xff]
        %v1762 = vld [vmem:[%s1250 + $0x7b0] sm:$0xff]
        %v1763 = vld [vmem:[%s1250 + $0x7b8] sm:$0xff]
        %v1764 = vld [vmem:[%s1250 + $0x7c0] sm:$0xff]
        %v1765 = vld [vmem:[%s1250 + $0x7c8] sm:$0xff]
        %v1766 = vld [vmem:[%s1250 + $0x7d0] sm:$0xff]
        %v1767 = vld [vmem:[%s1250 + $0x7d8] sm:$0xff]
        %v1768 = vld [vmem:[%s1250 + $0x7e0] sm:$0xff]
        %v1769 = vld [vmem:[%s1250 + $0x7e8] sm:$0xff]
        %v1770 = vld [vmem:[%s1250 + $0x7f0] sm:$0xff]
        %v1771 = vld [vmem:[%s1250 + $0x7f8] sm:$0xff]
        %v1772 = vld [vmem:[%s1250 + $0x800] sm:$0xff]
        %v1773 = vld [vmem:[%s1250 + $0x808] sm:$0xff]
        %v1774 = vld [vmem:[%s1250 + $0x810] sm:$0xff]
        %v1775 = vld [vmem:[%s1250 + $0x818] sm:$0xff]
        %v1776 = vld [vmem:[%s1250 + $0x820] sm:$0xff]
        %v1777 = vld [vmem:[%s1250 + $0x828] sm:$0xff]
        %v1778 = vld [vmem:[%s1250 + $0x830] sm:$0xff]
        %v1779 = vld [vmem:[%s1250 + $0x838] sm:$0xff]
        %v1780 = vld [vmem:[%s1250 + $0x840] sm:$0xff]
        %v1781 = vld [vmem:[%s1250 + $0x848] sm:$0xff]
        %v1782 = vld [vmem:[%s1250 + $0x850] sm:$0xff]
        %v1783 = vld [vmem:[%s1250 + $0x858] sm:$0xff]
        %v1784 = vld [vmem:[%s1250 + $0x860] sm:$0xff]
        %v1785 = vld [vmem:[%s1250 + $0x868] sm:$0xff]
        %v1786 = vld [vmem:[%s1250 + $0x870] sm:$0xff]
        %v1787 = vld [vmem:[%s1250 + $0x878] sm:$0xff]
        %v1788 = vld [vmem:[%s1250 + $0x880] sm:$0xff]
        %v1789 = vld [vmem:[%s1250 + $0x888] sm:$0xff]
        %v1790 = vld [vmem:[%s1250 + $0x890] sm:$0xff]
        %v1791 = vld [vmem:[%s1250 + $0x898] sm:$0xff]
        %v1792 = vld [vmem:[%s1250 + $0x8a0] sm:$0xff]
        %v1793 = vld [vmem:[%s1250 + $0x8a8] sm:$0xff]
        %v1794 = vld [vmem:[%s1250 + $0x8b0] sm:$0xff]
        %v1795 = vld [vmem:[%s1250 + $0x8b8] sm:$0xff]
        %v1796 = vld [vmem:[%s1250 + $0x8c0] sm:$0xff]
        %v1797 = vld [vmem:[%s1250 + $0x8c8] sm:$0xff]
        %v1798 = vld [vmem:[%s1250 + $0x8d0] sm:$0xff]
        %v1799 = vld [vmem:[%s1250 + $0x8d8] sm:$0xff]
        %v1800 = vld [vmem:[%s1250 + $0x8e0] sm:$0xff]
        %v1801 = vld [vmem:[%s1250 + $0x8e8] sm:$0xff]
        %v1802 = vld [vmem:[%s1250 + $0x8f0] sm:$0xff]
        %v1803 = vld [vmem:[%s1250 + $0x8f8] sm:$0xff]
        %v1804 = vld [vmem:[%s1250 + $0x900] sm:$0xff]
        %v1805 = vld [vmem:[%s1250 + $0x908] sm:$0xff]
        %v1806 = vld [vmem:[%s1250 + $0x910] sm:$0xff]
        %v1807 = vld [vmem:[%s1250 + $0x918] sm:$0xff]
        %v1808 = vld [vmem:[%s1250 + $0x920] sm:$0xff]
        %v1809 = vld [vmem:[%s1250 + $0x928] sm:$0xff]
        %v1810 = vld [vmem:[%s1250 + $0x930] sm:$0xff]
        %v1811 = vld [vmem:[%s1250 + $0x938] sm:$0xff]
        %v1812 = vld [vmem:[%s1250 + $0x940] sm:$0xff]
        %v1813 = vld [vmem:[%s1250 + $0x948] sm:$0xff]
        %v1814 = vld [vmem:[%s1250 + $0x950] sm:$0xff]
        %v1815 = vld [vmem:[%s1250 + $0x958] sm:$0xff]
        %v1816 = vld [vmem:[%s1250 + $0x960] sm:$0xff]
        %v1817 = vld [vmem:[%s1250 + $0x968] sm:$0xff]
        %v1818 = vld [vmem:[%s1250 + $0x970] sm:$0xff]
        %v1819 = vld [vmem:[%s1250 + $0x978] sm:$0xff]
        %v1820 = vld [vmem:[%s1250 + $0x980] sm:$0xff]
        %v1821 = vld [vmem:[%s1250 + $0x988] sm:$0xff]
        %v1822 = vld [vmem:[%s1250 + $0x990] sm:$0xff]
        %v1823 = vld [vmem:[%s1250 + $0x998] sm:$0xff]
        %v1824 = vld [vmem:[%s1250 + $0x9a0] sm:$0xff]
        %v1825 = vld [vmem:[%s1250 + $0x9a8] sm:$0xff]
        %v1826 = vld [vmem:[%s1250 + $0x9b0] sm:$0xff]
        %v1827 = vld [vmem:[%s1250 + $0x9b8] sm:$0xff]
        %v1828 = vld [vmem:[%s1250 + $0x9c0] sm:$0xff]
        %v1829 = vld [vmem:[%s1250 + $0x9c8] sm:$0xff]
        %v1830 = vld [vmem:[%s1250 + $0x9d0] sm:$0xff]
        %v1831 = vld [vmem:[%s1250 + $0x9d8] sm:$0xff]
        %v1832 = vld [vmem:[%s1250 + $0x9e0] sm:$0xff]
        %v1833 = vld [vmem:[%s1250 + $0x9e8] sm:$0xff]
        %v1834 = vld [vmem:[%s1250 + $0x9f0] sm:$0xff]
        %v1835 = vld [vmem:[%s1250 + $0x9f8] sm:$0xff]
        %v1836 = vld [vmem:[%s1250 + $0xa00] sm:$0xff]
        %v1837 = vld [vmem:[%s1250 + $0xa08] sm:$0xff]
        %v1838 = vld [vmem:[%s1250 + $0xa10] sm:$0xff]
        %v1839 = vld [vmem:[%s1250 + $0xa18] sm:$0xff]
        %v1840 = vld [vmem:[%s1250 + $0xa20] sm:$0xff]
        %v1841 = vld [vmem:[%s1250 + $0xa28] sm:$0xff]
        %v1842 = vld [vmem:[%s1250 + $0xa30] sm:$0xff]
        %v1843 = vld [vmem:[%s1250 + $0xa38] sm:$0xff]
        %v1844 = vld [vmem:[%s1250 + $0xa40] sm:$0xff]
        %v1845 = vld [vmem:[%s1250 + $0xa48] sm:$0xff]
        %v1846 = vld [vmem:[%s1250 + $0xa50] sm:$0xff]
        %v1847 = vld [vmem:[%s1250 + $0xa58] sm:$0xff]
        %v1848 = vld [vmem:[%s1250 + $0xa60] sm:$0xff]
        %v1849 = vld [vmem:[%s1250 + $0xa68] sm:$0xff]
        %v1850 = vld [vmem:[%s1250 + $0xa70] sm:$0xff]
        %v1851 = vld [vmem:[%s1250 + $0xa78] sm:$0xff]
        %v1852 = vld [vmem:[%s1250 + $0xa80] sm:$0xff]
        %v1853 = vld [vmem:[%s1250 + $0xa88] sm:$0xff]
        %v1854 = vld [vmem:[%s1250 + $0xa90] sm:$0xff]
        %v1855 = vld [vmem:[%s1250 + $0xa98] sm:$0xff]
        %v1856 = vld [vmem:[%s1250 + $0xaa0] sm:$0xff]
        %v1857 = vld [vmem:[%s1250 + $0xaa8] sm:$0xff]
        %v1858 = vld [vmem:[%s1250 + $0xab0] sm:$0xff]
        %v1859 = vld [vmem:[%s1250 + $0xab8] sm:$0xff]
        %v1860 = vld [vmem:[%s1250 + $0xac0] sm:$0xff]
        %v1861 = vld [vmem:[%s1250 + $0xac8] sm:$0xff]
        %v1862 = vld [vmem:[%s1250 + $0xad0] sm:$0xff]
        %v1863 = vld [vmem:[%s1250 + $0xad8] sm:$0xff]
        %v1864 = vld [vmem:[%s1250 + $0xae0] sm:$0xff]
        %v1865 = vld [vmem:[%s1250 + $0xae8] sm:$0xff]
        %v1866 = vld [vmem:[%s1250 + $0xaf0] sm:$0xff]
        %v1867 = vld [vmem:[%s1250 + $0xaf8] sm:$0xff]
        %v1868 = vld [vmem:[%s1250 + $0xb00] sm:$0xff]
        %v1869 = vld [vmem:[%s1250 + $0xb08] sm:$0xff]
        %v1870 = vld [vmem:[%s1250 + $0xb10] sm:$0xff]
        %v1871 = vld [vmem:[%s1250 + $0xb18] sm:$0xff]
        %v1872 = vld [vmem:[%s1250 + $0xb20] sm:$0xff]
        %v1873 = vld [vmem:[%s1250 + $0xb28] sm:$0xff]
        %v1874 = vld [vmem:[%s1250 + $0xb30] sm:$0xff]
        %v1875 = vld [vmem:[%s1250 + $0xb38] sm:$0xff]
        %v2236 = vunpack.c.l.b16 %v1516
        %v2237 = vunpack.c.h.b16 %v1516
        %v2238 = vunpack.c.l.b16 %v1517
        %v2239 = vunpack.c.h.b16 %v1517
        %v2240 = vunpack.c.l.b16 %v1518
        %v2241 = vunpack.c.h.b16 %v1518
        %v2242 = vunpack.c.l.b16 %v1519
        %v2243 = vunpack.c.h.b16 %v1519
        %v2244 = vunpack.c.l.b16 %v1520
        %v2245 = vunpack.c.h.b16 %v1520
        %v2246 = vunpack.c.l.b16 %v1521
        %v2247 = vunpack.c.h.b16 %v1521
        %v2248 = vunpack.c.l.b16 %v1522
        %v2249 = vunpack.c.h.b16 %v1522
        %v2250 = vunpack.c.l.b16 %v1523
        %v2251 = vunpack.c.h.b16 %v1523
        %v2252 = vunpack.c.l.b16 %v1524
        %v2253 = vunpack.c.h.b16 %v1524
        %v2254 = vunpack.c.l.b16 %v1525
        %v2255 = vunpack.c.h.b16 %v1525
        %v2256 = vunpack.c.l.b16 %v1526
        %v2257 = vunpack.c.h.b16 %v1526
        %v2258 = vunpack.c.l.b16 %v1527
        %v2259 = vunpack.c.h.b16 %v1527
        %v2260 = vunpack.c.l.b16 %v1528
        %v2261 = vunpack.c.h.b16 %v1528
        %v2262 = vunpack.c.l.b16 %v1529
        %v2263 = vunpack.c.h.b16 %v1529
        %v2264 = vunpack.c.l.b16 %v1530
        %v2265 = vunpack.c.h.b16 %v1530
        %v2266 = vunpack.c.l.b16 %v1531
        %v2267 = vunpack.c.h.b16 %v1531
        %v2268 = vunpack.c.l.b16 %v1532
        %v2269 = vunpack.c.h.b16 %v1532
        %v2270 = vunpack.c.l.b16 %v1533
        %v2271 = vunpack.c.h.b16 %v1533
        %v2272 = vunpack.c.l.b16 %v1534
        %v2273 = vunpack.c.h.b16 %v1534
        %v2274 = vunpack.c.l.b16 %v1535
        %v2275 = vunpack.c.h.b16 %v1535
        %v2276 = vunpack.c.l.b16 %v1536
        %v2277 = vunpack.c.h.b16 %v1536
        %v2278 = vunpack.c.l.b16 %v1537
        %v2279 = vunpack.c.h.b16 %v1537
        %v2280 = vunpack.c.l.b16 %v1538
        %v2281 = vunpack.c.h.b16 %v1538
        %v2282 = vunpack.c.l.b16 %v1539
        %v2283 = vunpack.c.h.b16 %v1539
        %v2284 = vunpack.c.l.b16 %v1540
        %v2285 = vunpack.c.h.b16 %v1540
        %v2286 = vunpack.c.l.b16 %v1541
        %v2287 = vunpack.c.h.b16 %v1541
        %v2288 = vunpack.c.l.b16 %v1542
        %v2289 = vunpack.c.h.b16 %v1542
        %v2290 = vunpack.c.l.b16 %v1543
        %v2291 = vunpack.c.h.b16 %v1543
        %v2292 = vunpack.c.l.b16 %v1544
        %v2293 = vunpack.c.h.b16 %v1544
        %v2294 = vunpack.c.l.b16 %v1545
        %v2295 = vunpack.c.h.b16 %v1545
        %v2296 = vunpack.c.l.b16 %v1546
        %v2297 = vunpack.c.h.b16 %v1546
        %v2298 = vunpack.c.l.b16 %v1547
        %v2299 = vunpack.c.h.b16 %v1547
        %v2300 = vunpack.c.l.b16 %v1548
        %v2301 = vunpack.c.h.b16 %v1548
        %v2302 = vunpack.c.l.b16 %v1549
        %v2303 = vunpack.c.h.b16 %v1549
        %v2304 = vunpack.c.l.b16 %v1550
        %v2305 = vunpack.c.h.b16 %v1550
        %v2306 = vunpack.c.l.b16 %v1551
        %v2307 = vunpack.c.h.b16 %v1551
        %v2308 = vunpack.c.l.b16 %v1552
        %v2309 = vunpack.c.h.b16 %v1552
        %v2310 = vunpack.c.l.b16 %v1553
        %v2311 = vunpack.c.h.b16 %v1553
        %v2312 = vunpack.c.l.b16 %v1554
        %v2313 = vunpack.c.h.b16 %v1554
        %v2314 = vunpack.c.l.b16 %v1555
        %v2315 = vunpack.c.h.b16 %v1555
        %v2316 = vunpack.c.l.b16 %v1556
        %v2317 = vunpack.c.h.b16 %v1556
        %v2318 = vunpack.c.l.b16 %v1557
        %v2319 = vunpack.c.h.b16 %v1557
        %v2320 = vunpack.c.l.b16 %v1558
        %v2321 = vunpack.c.h.b16 %v1558
        %v2322 = vunpack.c.l.b16 %v1559
        %v2323 = vunpack.c.h.b16 %v1559
        %v2324 = vunpack.c.l.b16 %v1560
        %v2325 = vunpack.c.h.b16 %v1560
        %v2326 = vunpack.c.l.b16 %v1561
        %v2327 = vunpack.c.h.b16 %v1561
        %v2328 = vunpack.c.l.b16 %v1562
        %v2329 = vunpack.c.h.b16 %v1562
        %v2330 = vunpack.c.l.b16 %v1563
        %v2331 = vunpack.c.h.b16 %v1563
        %v2332 = vunpack.c.l.b16 %v1564
        %v2333 = vunpack.c.h.b16 %v1564
        %v2334 = vunpack.c.l.b16 %v1565
        %v2335 = vunpack.c.h.b16 %v1565
        %v2336 = vunpack.c.l.b16 %v1566
        %v2337 = vunpack.c.h.b16 %v1566
        %v2338 = vunpack.c.l.b16 %v1567
        %v2339 = vunpack.c.h.b16 %v1567
        %v2340 = vunpack.c.l.b16 %v1568
        %v2341 = vunpack.c.h.b16 %v1568
        %v2342 = vunpack.c.l.b16 %v1569
        %v2343 = vunpack.c.h.b16 %v1569
        %v2344 = vunpack.c.l.b16 %v1570
        %v2345 = vunpack.c.h.b16 %v1570
        %v2346 = vunpack.c.l.b16 %v1571
        %v2347 = vunpack.c.h.b16 %v1571
        %v2348 = vunpack.c.l.b16 %v1572
        %v2349 = vunpack.c.h.b16 %v1572
        %v2350 = vunpack.c.l.b16 %v1573
        %v2351 = vunpack.c.h.b16 %v1573
        %v2352 = vunpack.c.l.b16 %v1574
        %v2353 = vunpack.c.h.b16 %v1574
        %v2354 = vunpack.c.l.b16 %v1575
        %v2355 = vunpack.c.h.b16 %v1575
        %v2356 = vunpack.c.l.b16 %v1576
        %v2357 = vunpack.c.h.b16 %v1576
        %v2358 = vunpack.c.l.b16 %v1577
        %v2359 = vunpack.c.h.b16 %v1577
        %v2360 = vunpack.c.l.b16 %v1578
        %v2361 = vunpack.c.h.b16 %v1578
        %v2362 = vunpack.c.l.b16 %v1579
        %v2363 = vunpack.c.h.b16 %v1579
        %v2364 = vunpack.c.l.b16 %v1580
        %v2365 = vunpack.c.h.b16 %v1580
        %v2366 = vunpack.c.l.b16 %v1581
        %v2367 = vunpack.c.h.b16 %v1581
        %v2368 = vunpack.c.l.b16 %v1582
        %v2369 = vunpack.c.h.b16 %v1582
        %v2370 = vunpack.c.l.b16 %v1583
        %v2371 = vunpack.c.h.b16 %v1583
        %v2372 = vunpack.c.l.b16 %v1584
        %v2373 = vunpack.c.h.b16 %v1584
        %v2374 = vunpack.c.l.b16 %v1585
        %v2375 = vunpack.c.h.b16 %v1585
        %v2376 = vunpack.c.l.b16 %v1586
        %v2377 = vunpack.c.h.b16 %v1586
        %v2378 = vunpack.c.l.b16 %v1587
        %v2379 = vunpack.c.h.b16 %v1587
        %v2380 = vunpack.c.l.b16 %v1588
        %v2381 = vunpack.c.h.b16 %v1588
        %v2382 = vunpack.c.l.b16 %v1589
        %v2383 = vunpack.c.h.b16 %v1589
        %v2384 = vunpack.c.l.b16 %v1590
        %v2385 = vunpack.c.h.b16 %v1590
        %v2386 = vunpack.c.l.b16 %v1591
        %v2387 = vunpack.c.h.b16 %v1591
        %v2388 = vunpack.c.l.b16 %v1592
        %v2389 = vunpack.c.h.b16 %v1592
        %v2390 = vunpack.c.l.b16 %v1593
        %v2391 = vunpack.c.h.b16 %v1593
        %v2392 = vunpack.c.l.b16 %v1594
        %v2393 = vunpack.c.h.b16 %v1594
        %v2394 = vunpack.c.l.b16 %v1595
        %v2395 = vunpack.c.h.b16 %v1595
        %v2396 = vunpack.c.l.b16 %v1596
        %v2397 = vunpack.c.h.b16 %v1596
        %v2398 = vunpack.c.l.b16 %v1597
        %v2399 = vunpack.c.h.b16 %v1597
        %v2400 = vunpack.c.l.b16 %v1598
        %v2401 = vunpack.c.h.b16 %v1598
        %v2402 = vunpack.c.l.b16 %v1599
        %v2403 = vunpack.c.h.b16 %v1599
        %v2404 = vunpack.c.l.b16 %v1600
        %v2405 = vunpack.c.h.b16 %v1600
        %v2406 = vunpack.c.l.b16 %v1601
        %v2407 = vunpack.c.h.b16 %v1601
        %v2408 = vunpack.c.l.b16 %v1602
        %v2409 = vunpack.c.h.b16 %v1602
        %v2410 = vunpack.c.l.b16 %v1603
        %v2411 = vunpack.c.h.b16 %v1603
        %v2412 = vunpack.c.l.b16 %v1604
        %v2413 = vunpack.c.h.b16 %v1604
        %v2414 = vunpack.c.l.b16 %v1605
        %v2415 = vunpack.c.h.b16 %v1605
        %v2416 = vunpack.c.l.b16 %v1606
        %v2417 = vunpack.c.h.b16 %v1606
        %v2418 = vunpack.c.l.b16 %v1607
        %v2419 = vunpack.c.h.b16 %v1607
        %v2420 = vunpack.c.l.b16 %v1608
        %v2421 = vunpack.c.h.b16 %v1608
        %v2422 = vunpack.c.l.b16 %v1609
        %v2423 = vunpack.c.h.b16 %v1609
        %v2424 = vunpack.c.l.b16 %v1610
        %v2425 = vunpack.c.h.b16 %v1610
        %v2426 = vunpack.c.l.b16 %v1611
        %v2427 = vunpack.c.h.b16 %v1611
        %v2428 = vunpack.c.l.b16 %v1612
        %v2429 = vunpack.c.h.b16 %v1612
        %v2430 = vunpack.c.l.b16 %v1613
        %v2431 = vunpack.c.h.b16 %v1613
        %v2432 = vunpack.c.l.b16 %v1614
        %v2433 = vunpack.c.h.b16 %v1614
        %v2434 = vunpack.c.l.b16 %v1615
        %v2435 = vunpack.c.h.b16 %v1615
        %v2436 = vunpack.c.l.b16 %v1616
        %v2437 = vunpack.c.h.b16 %v1616
        %v2438 = vunpack.c.l.b16 %v1617
        %v2439 = vunpack.c.h.b16 %v1617
        %v2440 = vunpack.c.l.b16 %v1618
        %v2441 = vunpack.c.h.b16 %v1618
        %v2442 = vunpack.c.l.b16 %v1619
        %v2443 = vunpack.c.h.b16 %v1619
        %v2444 = vunpack.c.l.b16 %v1620
        %v2445 = vunpack.c.h.b16 %v1620
        %v2446 = vunpack.c.l.b16 %v1621
        %v2447 = vunpack.c.h.b16 %v1621
        %v2448 = vunpack.c.l.b16 %v1622
        %v2449 = vunpack.c.h.b16 %v1622
        %v2450 = vunpack.c.l.b16 %v1623
        %v2451 = vunpack.c.h.b16 %v1623
        %v2452 = vunpack.c.l.b16 %v1624
        %v2453 = vunpack.c.h.b16 %v1624
        %v2454 = vunpack.c.l.b16 %v1625
        %v2455 = vunpack.c.h.b16 %v1625
        %v2456 = vunpack.c.l.b16 %v1626
        %v2457 = vunpack.c.h.b16 %v1626
        %v2458 = vunpack.c.l.b16 %v1627
        %v2459 = vunpack.c.h.b16 %v1627
        %v2460 = vunpack.c.l.b16 %v1628
        %v2461 = vunpack.c.h.b16 %v1628
        %v2462 = vunpack.c.l.b16 %v1629
        %v2463 = vunpack.c.h.b16 %v1629
        %v2464 = vunpack.c.l.b16 %v1630
        %v2465 = vunpack.c.h.b16 %v1630
        %v2466 = vunpack.c.l.b16 %v1631
        %v2467 = vunpack.c.h.b16 %v1631
        %v2468 = vunpack.c.l.b16 %v1632
        %v2469 = vunpack.c.h.b16 %v1632
        %v2470 = vunpack.c.l.b16 %v1633
        %v2471 = vunpack.c.h.b16 %v1633
        %v2472 = vunpack.c.l.b16 %v1634
        %v2473 = vunpack.c.h.b16 %v1634
        %v2474 = vunpack.c.l.b16 %v1635
        %v2475 = vunpack.c.h.b16 %v1635
        %v2476 = vunpack.c.l.b16 %v1636
        %v2477 = vunpack.c.h.b16 %v1636
        %v2478 = vunpack.c.l.b16 %v1637
        %v2479 = vunpack.c.h.b16 %v1637
        %v2480 = vunpack.c.l.b16 %v1638
        %v2481 = vunpack.c.h.b16 %v1638
        %v2482 = vunpack.c.l.b16 %v1639
        %v2483 = vunpack.c.h.b16 %v1639
        %v2484 = vunpack.c.l.b16 %v1640
        %v2485 = vunpack.c.h.b16 %v1640
        %v2486 = vunpack.c.l.b16 %v1641
        %v2487 = vunpack.c.h.b16 %v1641
        %v2488 = vunpack.c.l.b16 %v1642
        %v2489 = vunpack.c.h.b16 %v1642
        %v2490 = vunpack.c.l.b16 %v1643
        %v2491 = vunpack.c.h.b16 %v1643
        %v2492 = vunpack.c.l.b16 %v1644
        %v2493 = vunpack.c.h.b16 %v1644
        %v2494 = vunpack.c.l.b16 %v1645
        %v2495 = vunpack.c.h.b16 %v1645
        %v2496 = vunpack.c.l.b16 %v1646
        %v2497 = vunpack.c.h.b16 %v1646
        %v2498 = vunpack.c.l.b16 %v1647
        %v2499 = vunpack.c.h.b16 %v1647
        %v2500 = vunpack.c.l.b16 %v1648
        %v2501 = vunpack.c.h.b16 %v1648
        %v2502 = vunpack.c.l.b16 %v1649
        %v2503 = vunpack.c.h.b16 %v1649
        %v2504 = vunpack.c.l.b16 %v1650
        %v2505 = vunpack.c.h.b16 %v1650
        %v2506 = vunpack.c.l.b16 %v1651
        %v2507 = vunpack.c.h.b16 %v1651
        %v2508 = vunpack.c.l.b16 %v1652
        %v2509 = vunpack.c.h.b16 %v1652
        %v2510 = vunpack.c.l.b16 %v1653
        %v2511 = vunpack.c.h.b16 %v1653
        %v2512 = vunpack.c.l.b16 %v1654
        %v2513 = vunpack.c.h.b16 %v1654
        %v2514 = vunpack.c.l.b16 %v1655
        %v2515 = vunpack.c.h.b16 %v1655
        %v2516 = vunpack.c.l.b16 %v1656
        %v2517 = vunpack.c.h.b16 %v1656
        %v2518 = vunpack.c.l.b16 %v1657
        %v2519 = vunpack.c.h.b16 %v1657
        %v2520 = vunpack.c.l.b16 %v1658
        %v2521 = vunpack.c.h.b16 %v1658
        %v2522 = vunpack.c.l.b16 %v1659
        %v2523 = vunpack.c.h.b16 %v1659
        %v2524 = vunpack.c.l.b16 %v1660
        %v2525 = vunpack.c.h.b16 %v1660
        %v2526 = vunpack.c.l.b16 %v1661
        %v2527 = vunpack.c.h.b16 %v1661
        %v2528 = vunpack.c.l.b16 %v1662
        %v2529 = vunpack.c.h.b16 %v1662
        %v2530 = vunpack.c.l.b16 %v1663
        %v2531 = vunpack.c.h.b16 %v1663
        %v2532 = vunpack.c.l.b16 %v1664
        %v2533 = vunpack.c.h.b16 %v1664
        %v2534 = vunpack.c.l.b16 %v1665
        %v2535 = vunpack.c.h.b16 %v1665
        %v2536 = vunpack.c.l.b16 %v1666
        %v2537 = vunpack.c.h.b16 %v1666
        %v2538 = vunpack.c.l.b16 %v1667
        %v2539 = vunpack.c.h.b16 %v1667
        %v2540 = vunpack.c.l.b16 %v1668
        %v2541 = vunpack.c.h.b16 %v1668
        %v2542 = vunpack.c.l.b16 %v1669
        %v2543 = vunpack.c.h.b16 %v1669
        %v2544 = vunpack.c.l.b16 %v1670
        %v2545 = vunpack.c.h.b16 %v1670
        %v2546 = vunpack.c.l.b16 %v1671
        %v2547 = vunpack.c.h.b16 %v1671
        %v2548 = vunpack.c.l.b16 %v1672
        %v2549 = vunpack.c.h.b16 %v1672
        %v2550 = vunpack.c.l.b16 %v1673
        %v2551 = vunpack.c.h.b16 %v1673
        %v2552 = vunpack.c.l.b16 %v1674
        %v2553 = vunpack.c.h.b16 %v1674
        %v2554 = vunpack.c.l.b16 %v1675
        %v2555 = vunpack.c.h.b16 %v1675
        %v2556 = vunpack.c.l.b16 %v1676
        %v2557 = vunpack.c.h.b16 %v1676
        %v2558 = vunpack.c.l.b16 %v1677
        %v2559 = vunpack.c.h.b16 %v1677
        %v2560 = vunpack.c.l.b16 %v1678
        %v2561 = vunpack.c.h.b16 %v1678
        %v2562 = vunpack.c.l.b16 %v1679
        %v2563 = vunpack.c.h.b16 %v1679
        %v2564 = vunpack.c.l.b16 %v1680
        %v2565 = vunpack.c.h.b16 %v1680
        %v2566 = vunpack.c.l.b16 %v1681
        %v2567 = vunpack.c.h.b16 %v1681
        %v2568 = vunpack.c.l.b16 %v1682
        %v2569 = vunpack.c.h.b16 %v1682
        %v2570 = vunpack.c.l.b16 %v1683
        %v2571 = vunpack.c.h.b16 %v1683
        %v2572 = vunpack.c.l.b16 %v1684
        %v2573 = vunpack.c.h.b16 %v1684
        %v2574 = vunpack.c.l.b16 %v1685
        %v2575 = vunpack.c.h.b16 %v1685
        %v2576 = vunpack.c.l.b16 %v1686
        %v2577 = vunpack.c.h.b16 %v1686
        %v2578 = vunpack.c.l.b16 %v1687
        %v2579 = vunpack.c.h.b16 %v1687
        %v2580 = vunpack.c.l.b16 %v1688
        %v2581 = vunpack.c.h.b16 %v1688
        %v2582 = vunpack.c.l.b16 %v1689
        %v2583 = vunpack.c.h.b16 %v1689
        %v2584 = vunpack.c.l.b16 %v1690
        %v2585 = vunpack.c.h.b16 %v1690
        %v2586 = vunpack.c.l.b16 %v1691
        %v2587 = vunpack.c.h.b16 %v1691
        %v2588 = vunpack.c.l.b16 %v1692
        %v2589 = vunpack.c.h.b16 %v1692
        %v2590 = vunpack.c.l.b16 %v1693
        %v2591 = vunpack.c.h.b16 %v1693
        %v2592 = vunpack.c.l.b16 %v1694
        %v2593 = vunpack.c.h.b16 %v1694
        %v2594 = vunpack.c.l.b16 %v1695
        %v2595 = vunpack.c.h.b16 %v1695
        %v2596 = vunpack.c.l.b16 %v1696
        %v2597 = vunpack.c.h.b16 %v1696
        %v2598 = vunpack.c.l.b16 %v1697
        %v2599 = vunpack.c.h.b16 %v1697
        %v2600 = vunpack.c.l.b16 %v1698
        %v2601 = vunpack.c.h.b16 %v1698
        %v2602 = vunpack.c.l.b16 %v1699
        %v2603 = vunpack.c.h.b16 %v1699
        %v2604 = vunpack.c.l.b16 %v1700
        %v2605 = vunpack.c.h.b16 %v1700
        %v2606 = vunpack.c.l.b16 %v1701
        %v2607 = vunpack.c.h.b16 %v1701
        %v2608 = vunpack.c.l.b16 %v1702
        %v2609 = vunpack.c.h.b16 %v1702
        %v2610 = vunpack.c.l.b16 %v1703
        %v2611 = vunpack.c.h.b16 %v1703
        %v2612 = vunpack.c.l.b16 %v1704
        %v2613 = vunpack.c.h.b16 %v1704
        %v2614 = vunpack.c.l.b16 %v1705
        %v2615 = vunpack.c.h.b16 %v1705
        %v2616 = vunpack.c.l.b16 %v1706
        %v2617 = vunpack.c.h.b16 %v1706
        %v2618 = vunpack.c.l.b16 %v1707
        %v2619 = vunpack.c.h.b16 %v1707
        %v2620 = vunpack.c.l.b16 %v1708
        %v2621 = vunpack.c.h.b16 %v1708
        %v2622 = vunpack.c.l.b16 %v1709
        %v2623 = vunpack.c.h.b16 %v1709
        %v2624 = vunpack.c.l.b16 %v1710
        %v2625 = vunpack.c.h.b16 %v1710
        %v2626 = vunpack.c.l.b16 %v1711
        %v2627 = vunpack.c.h.b16 %v1711
        %v2628 = vunpack.c.l.b16 %v1712
        %v2629 = vunpack.c.h.b16 %v1712
        %v2630 = vunpack.c.l.b16 %v1713
        %v2631 = vunpack.c.h.b16 %v1713
        %v2632 = vunpack.c.l.b16 %v1714
        %v2633 = vunpack.c.h.b16 %v1714
        %v2634 = vunpack.c.l.b16 %v1715
        %v2635 = vunpack.c.h.b16 %v1715
        %v2636 = vunpack.c.l.b16 %v1716
        %v2637 = vunpack.c.h.b16 %v1716
        %v2638 = vunpack.c.l.b16 %v1717
        %v2639 = vunpack.c.h.b16 %v1717
        %v2640 = vunpack.c.l.b16 %v1718
        %v2641 = vunpack.c.h.b16 %v1718
        %v2642 = vunpack.c.l.b16 %v1719
        %v2643 = vunpack.c.h.b16 %v1719
        %v2644 = vunpack.c.l.b16 %v1720
        %v2645 = vunpack.c.h.b16 %v1720
        %v2646 = vunpack.c.l.b16 %v1721
        %v2647 = vunpack.c.h.b16 %v1721
        %v2648 = vunpack.c.l.b16 %v1722
        %v2649 = vunpack.c.h.b16 %v1722
        %v2650 = vunpack.c.l.b16 %v1723
        %v2651 = vunpack.c.h.b16 %v1723
        %v2652 = vunpack.c.l.b16 %v1724
        %v2653 = vunpack.c.h.b16 %v1724
        %v2654 = vunpack.c.l.b16 %v1725
        %v2655 = vunpack.c.h.b16 %v1725
        %v2656 = vunpack.c.l.b16 %v1726
        %v2657 = vunpack.c.h.b16 %v1726
        %v2658 = vunpack.c.l.b16 %v1727
        %v2659 = vunpack.c.h.b16 %v1727
        %v2660 = vunpack.c.l.b16 %v1728
        %v2661 = vunpack.c.h.b16 %v1728
        %v2662 = vunpack.c.l.b16 %v1729
        %v2663 = vunpack.c.h.b16 %v1729
        %v2664 = vunpack.c.l.b16 %v1730
        %v2665 = vunpack.c.h.b16 %v1730
        %v2666 = vunpack.c.l.b16 %v1731
        %v2667 = vunpack.c.h.b16 %v1731
        %v2668 = vunpack.c.l.b16 %v1732
        %v2669 = vunpack.c.h.b16 %v1732
        %v2670 = vunpack.c.l.b16 %v1733
        %v2671 = vunpack.c.h.b16 %v1733
        %v2672 = vunpack.c.l.b16 %v1734
        %v2673 = vunpack.c.h.b16 %v1734
        %v2674 = vunpack.c.l.b16 %v1735
        %v2675 = vunpack.c.h.b16 %v1735
        %v2676 = vunpack.c.l.b16 %v1736
        %v2677 = vunpack.c.h.b16 %v1736
        %v2678 = vunpack.c.l.b16 %v1737
        %v2679 = vunpack.c.h.b16 %v1737
        %v2680 = vunpack.c.l.b16 %v1738
        %v2681 = vunpack.c.h.b16 %v1738
        %v2682 = vunpack.c.l.b16 %v1739
        %v2683 = vunpack.c.h.b16 %v1739
        %v2684 = vunpack.c.l.b16 %v1740
        %v2685 = vunpack.c.h.b16 %v1740
        %v2686 = vunpack.c.l.b16 %v1741
        %v2687 = vunpack.c.h.b16 %v1741
        %v2688 = vunpack.c.l.b16 %v1742
        %v2689 = vunpack.c.h.b16 %v1742
        %v2690 = vunpack.c.l.b16 %v1743
        %v2691 = vunpack.c.h.b16 %v1743
        %v2692 = vunpack.c.l.b16 %v1744
        %v2693 = vunpack.c.h.b16 %v1744
        %v2694 = vunpack.c.l.b16 %v1745
        %v2695 = vunpack.c.h.b16 %v1745
        %v2696 = vunpack.c.l.b16 %v1746
        %v2697 = vunpack.c.h.b16 %v1746
        %v2698 = vunpack.c.l.b16 %v1747
        %v2699 = vunpack.c.h.b16 %v1747
        %v2700 = vunpack.c.l.b16 %v1748
        %v2701 = vunpack.c.h.b16 %v1748
        %v2702 = vunpack.c.l.b16 %v1749
        %v2703 = vunpack.c.h.b16 %v1749
        %v2704 = vunpack.c.l.b16 %v1750
        %v2705 = vunpack.c.h.b16 %v1750
        %v2706 = vunpack.c.l.b16 %v1751
        %v2707 = vunpack.c.h.b16 %v1751
        %v2708 = vunpack.c.l.b16 %v1752
        %v2709 = vunpack.c.h.b16 %v1752
        %v2710 = vunpack.c.l.b16 %v1753
        %v2711 = vunpack.c.h.b16 %v1753
        %v2712 = vunpack.c.l.b16 %v1754
        %v2713 = vunpack.c.h.b16 %v1754
        %v2714 = vunpack.c.l.b16 %v1755
        %v2715 = vunpack.c.h.b16 %v1755
        %v2716 = vunpack.c.l.b16 %v1756
        %v2717 = vunpack.c.h.b16 %v1756
        %v2718 = vunpack.c.l.b16 %v1757
        %v2719 = vunpack.c.h.b16 %v1757
        %v2720 = vunpack.c.l.b16 %v1758
        %v2721 = vunpack.c.h.b16 %v1758
        %v2722 = vunpack.c.l.b16 %v1759
        %v2723 = vunpack.c.h.b16 %v1759
        %v2724 = vunpack.c.l.b16 %v1760
        %v2725 = vunpack.c.h.b16 %v1760
        %v2726 = vunpack.c.l.b16 %v1761
        %v2727 = vunpack.c.h.b16 %v1761
        %v2728 = vunpack.c.l.b16 %v1762
        %v2729 = vunpack.c.h.b16 %v1762
        %v2730 = vunpack.c.l.b16 %v1763
        %v2731 = vunpack.c.h.b16 %v1763
        %v2732 = vunpack.c.l.b16 %v1764
        %v2733 = vunpack.c.h.b16 %v1764
        %v2734 = vunpack.c.l.b16 %v1765
        %v2735 = vunpack.c.h.b16 %v1765
        %v2736 = vunpack.c.l.b16 %v1766
        %v2737 = vunpack.c.h.b16 %v1766
        %v2738 = vunpack.c.l.b16 %v1767
        %v2739 = vunpack.c.h.b16 %v1767
        %v2740 = vunpack.c.l.b16 %v1768
        %v2741 = vunpack.c.h.b16 %v1768
        %v2742 = vunpack.c.l.b16 %v1769
        %v2743 = vunpack.c.h.b16 %v1769
        %v2744 = vunpack.c.l.b16 %v1770
        %v2745 = vunpack.c.h.b16 %v1770
        %v2746 = vunpack.c.l.b16 %v1771
        %v2747 = vunpack.c.h.b16 %v1771
        %v2748 = vunpack.c.l.b16 %v1772
        %v2749 = vunpack.c.h.b16 %v1772
        %v2750 = vunpack.c.l.b16 %v1773
        %v2751 = vunpack.c.h.b16 %v1773
        %v2752 = vunpack.c.l.b16 %v1774
        %v2753 = vunpack.c.h.b16 %v1774
        %v2754 = vunpack.c.l.b16 %v1775
        %v2755 = vunpack.c.h.b16 %v1775
        %v2756 = vunpack.c.l.b16 %v1776
        %v2757 = vunpack.c.h.b16 %v1776
        %v2758 = vunpack.c.l.b16 %v1777
        %v2759 = vunpack.c.h.b16 %v1777
        %v2760 = vunpack.c.l.b16 %v1778
        %v2761 = vunpack.c.h.b16 %v1778
        %v2762 = vunpack.c.l.b16 %v1779
        %v2763 = vunpack.c.h.b16 %v1779
        %v2764 = vunpack.c.l.b16 %v1780
        %v2765 = vunpack.c.h.b16 %v1780
        %v2766 = vunpack.c.l.b16 %v1781
        %v2767 = vunpack.c.h.b16 %v1781
        %v2768 = vunpack.c.l.b16 %v1782
        %v2769 = vunpack.c.h.b16 %v1782
        %v2770 = vunpack.c.l.b16 %v1783
        %v2771 = vunpack.c.h.b16 %v1783
        %v2772 = vunpack.c.l.b16 %v1784
        %v2773 = vunpack.c.h.b16 %v1784
        %v2774 = vunpack.c.l.b16 %v1785
        %v2775 = vunpack.c.h.b16 %v1785
        %v2776 = vunpack.c.l.b16 %v1786
        %v2777 = vunpack.c.h.b16 %v1786
        %v2778 = vunpack.c.l.b16 %v1787
        %v2779 = vunpack.c.h.b16 %v1787
        %v2780 = vunpack.c.l.b16 %v1788
        %v2781 = vunpack.c.h.b16 %v1788
        %v2782 = vunpack.c.l.b16 %v1789
        %v2783 = vunpack.c.h.b16 %v1789
        %v2784 = vunpack.c.l.b16 %v1790
        %v2785 = vunpack.c.h.b16 %v1790
        %v2786 = vunpack.c.l.b16 %v1791
        %v2787 = vunpack.c.h.b16 %v1791
        %v2788 = vunpack.c.l.b16 %v1792
        %v2789 = vunpack.c.h.b16 %v1792
        %v2790 = vunpack.c.l.b16 %v1793
        %v2791 = vunpack.c.h.b16 %v1793
        %v2792 = vunpack.c.l.b16 %v1794
        %v2793 = vunpack.c.h.b16 %v1794
        %v2794 = vunpack.c.l.b16 %v1795
        %v2795 = vunpack.c.h.b16 %v1795
        %v2796 = vunpack.c.l.b16 %v1796
        %v2797 = vunpack.c.h.b16 %v1796
        %v2798 = vunpack.c.l.b16 %v1797
        %v2799 = vunpack.c.h.b16 %v1797
        %v2800 = vunpack.c.l.b16 %v1798
        %v2801 = vunpack.c.h.b16 %v1798
        %v2802 = vunpack.c.l.b16 %v1799
        %v2803 = vunpack.c.h.b16 %v1799
        %v2804 = vunpack.c.l.b16 %v1800
        %v2805 = vunpack.c.h.b16 %v1800
        %v2806 = vunpack.c.l.b16 %v1801
        %v2807 = vunpack.c.h.b16 %v1801
        %v2808 = vunpack.c.l.b16 %v1802
        %v2809 = vunpack.c.h.b16 %v1802
        %v2810 = vunpack.c.l.b16 %v1803
        %v2811 = vunpack.c.h.b16 %v1803
        %v2812 = vunpack.c.l.b16 %v1804
        %v2813 = vunpack.c.h.b16 %v1804
        %v2814 = vunpack.c.l.b16 %v1805
        %v2815 = vunpack.c.h.b16 %v1805
        %v2816 = vunpack.c.l.b16 %v1806
        %v2817 = vunpack.c.h.b16 %v1806
        %v2818 = vunpack.c.l.b16 %v1807
        %v2819 = vunpack.c.h.b16 %v1807
        %v2820 = vunpack.c.l.b16 %v1808
        %v2821 = vunpack.c.h.b16 %v1808
        %v2822 = vunpack.c.l.b16 %v1809
        %v2823 = vunpack.c.h.b16 %v1809
        %v2824 = vunpack.c.l.b16 %v1810
        %v2825 = vunpack.c.h.b16 %v1810
        %v2826 = vunpack.c.l.b16 %v1811
        %v2827 = vunpack.c.h.b16 %v1811
        %v2828 = vunpack.c.l.b16 %v1812
        %v2829 = vunpack.c.h.b16 %v1812
        %v2830 = vunpack.c.l.b16 %v1813
        %v2831 = vunpack.c.h.b16 %v1813
        %v2832 = vunpack.c.l.b16 %v1814
        %v2833 = vunpack.c.h.b16 %v1814
        %v2834 = vunpack.c.l.b16 %v1815
        %v2835 = vunpack.c.h.b16 %v1815
        %v2836 = vunpack.c.l.b16 %v1816
        %v2837 = vunpack.c.h.b16 %v1816
        %v2838 = vunpack.c.l.b16 %v1817
        %v2839 = vunpack.c.h.b16 %v1817
        %v2840 = vunpack.c.l.b16 %v1818
        %v2841 = vunpack.c.h.b16 %v1818
        %v2842 = vunpack.c.l.b16 %v1819
        %v2843 = vunpack.c.h.b16 %v1819
        %v2844 = vunpack.c.l.b16 %v1820
        %v2845 = vunpack.c.h.b16 %v1820
        %v2846 = vunpack.c.l.b16 %v1821
        %v2847 = vunpack.c.h.b16 %v1821
        %v2848 = vunpack.c.l.b16 %v1822
        %v2849 = vunpack.c.h.b16 %v1822
        %v2850 = vunpack.c.l.b16 %v1823
        %v2851 = vunpack.c.h.b16 %v1823
        %v2852 = vunpack.c.l.b16 %v1824
        %v2853 = vunpack.c.h.b16 %v1824
        %v2854 = vunpack.c.l.b16 %v1825
        %v2855 = vunpack.c.h.b16 %v1825
        %v2856 = vunpack.c.l.b16 %v1826
        %v2857 = vunpack.c.h.b16 %v1826
        %v2858 = vunpack.c.l.b16 %v1827
        %v2859 = vunpack.c.h.b16 %v1827
        %v2860 = vunpack.c.l.b16 %v1828
        %v2861 = vunpack.c.h.b16 %v1828
        %v2862 = vunpack.c.l.b16 %v1829
        %v2863 = vunpack.c.h.b16 %v1829
        %v2864 = vunpack.c.l.b16 %v1830
        %v2865 = vunpack.c.h.b16 %v1830
        %v2866 = vunpack.c.l.b16 %v1831
        %v2867 = vunpack.c.h.b16 %v1831
        %v2868 = vunpack.c.l.b16 %v1832
        %v2869 = vunpack.c.h.b16 %v1832
        %v2870 = vunpack.c.l.b16 %v1833
        %v2871 = vunpack.c.h.b16 %v1833
        %v2872 = vunpack.c.l.b16 %v1834
        %v2873 = vunpack.c.h.b16 %v1834
        %v2874 = vunpack.c.l.b16 %v1835
        %v2875 = vunpack.c.h.b16 %v1835
        %v2876 = vunpack.c.l.b16 %v1836
        %v2877 = vunpack.c.h.b16 %v1836
        %v2878 = vunpack.c.l.b16 %v1837
        %v2879 = vunpack.c.h.b16 %v1837
        %v2880 = vunpack.c.l.b16 %v1838
        %v2881 = vunpack.c.h.b16 %v1838
        %v2882 = vunpack.c.l.b16 %v1839
        %v2883 = vunpack.c.h.b16 %v1839
        %v2884 = vunpack.c.l.b16 %v1840
        %v2885 = vunpack.c.h.b16 %v1840
        %v2886 = vunpack.c.l.b16 %v1841
        %v2887 = vunpack.c.h.b16 %v1841
        %v2888 = vunpack.c.l.b16 %v1842
        %v2889 = vunpack.c.h.b16 %v1842
        %v2890 = vunpack.c.l.b16 %v1843
        %v2891 = vunpack.c.h.b16 %v1843
        %v2892 = vunpack.c.l.b16 %v1844
        %v2893 = vunpack.c.h.b16 %v1844
        %v2894 = vunpack.c.l.b16 %v1845
        %v2895 = vunpack.c.h.b16 %v1845
        %v2896 = vunpack.c.l.b16 %v1846
        %v2897 = vunpack.c.h.b16 %v1846
        %v2898 = vunpack.c.l.b16 %v1847
        %v2899 = vunpack.c.h.b16 %v1847
        %v2900 = vunpack.c.l.b16 %v1848
        %v2901 = vunpack.c.h.b16 %v1848
        %v2902 = vunpack.c.l.b16 %v1849
        %v2903 = vunpack.c.h.b16 %v1849
        %v2904 = vunpack.c.l.b16 %v1850
        %v2905 = vunpack.c.h.b16 %v1850
        %v2906 = vunpack.c.l.b16 %v1851
        %v2907 = vunpack.c.h.b16 %v1851
        %v2908 = vunpack.c.l.b16 %v1852
        %v2909 = vunpack.c.h.b16 %v1852
        %v2910 = vunpack.c.l.b16 %v1853
        %v2911 = vunpack.c.h.b16 %v1853
        %v2912 = vunpack.c.l.b16 %v1854
        %v2913 = vunpack.c.h.b16 %v1854
        %v2914 = vunpack.c.l.b16 %v1855
        %v2915 = vunpack.c.h.b16 %v1855
        %v2916 = vunpack.c.l.b16 %v1856
        %v2917 = vunpack.c.h.b16 %v1856
        %v2918 = vunpack.c.l.b16 %v1857
        %v2919 = vunpack.c.h.b16 %v1857
        %v2920 = vunpack.c.l.b16 %v1858
        %v2921 = vunpack.c.h.b16 %v1858
        %v2922 = vunpack.c.l.b16 %v1859
        %v2923 = vunpack.c.h.b16 %v1859
        %v2924 = vunpack.c.l.b16 %v1860
        %v2925 = vunpack.c.h.b16 %v1860
        %v2926 = vunpack.c.l.b16 %v1861
        %v2927 = vunpack.c.h.b16 %v1861
        %v2928 = vunpack.c.l.b16 %v1862
        %v2929 = vunpack.c.h.b16 %v1862
        %v2930 = vunpack.c.l.b16 %v1863
        %v2931 = vunpack.c.h.b16 %v1863
        %v2932 = vunpack.c.l.b16 %v1864
        %v2933 = vunpack.c.h.b16 %v1864
        %v2934 = vunpack.c.l.b16 %v1865
        %v2935 = vunpack.c.h.b16 %v1865
        %v2936 = vunpack.c.l.b16 %v1866
        %v2937 = vunpack.c.h.b16 %v1866
        %v2938 = vunpack.c.l.b16 %v1867
        %v2939 = vunpack.c.h.b16 %v1867
        %v2940 = vunpack.c.l.b16 %v1868
        %v2941 = vunpack.c.h.b16 %v1868
        %v2942 = vunpack.c.l.b16 %v1869
        %v2943 = vunpack.c.h.b16 %v1869
        %v2944 = vunpack.c.l.b16 %v1870
        %v2945 = vunpack.c.h.b16 %v1870
        %v2946 = vunpack.c.l.b16 %v1871
        %v2947 = vunpack.c.h.b16 %v1871
        %v2948 = vunpack.c.l.b16 %v1872
        %v2949 = vunpack.c.h.b16 %v1872
        %v2950 = vunpack.c.l.b16 %v1873
        %v2951 = vunpack.c.h.b16 %v1873
        %v2952 = vunpack.c.l.b16 %v1874
        %v2953 = vunpack.c.h.b16 %v1874
        %v2954 = vunpack.c.l.b16 %v1875
        %v2955 = vunpack.c.h.b16 %v1875
        %v2956 = vpack.c.b16 %v2272, %v2236
        %v2957 = vpack.c.b16 %v2273, %v2237
        %v2958 = vpack.c.b16 %v2274, %v2238
        %v2959 = vpack.c.b16 %v2275, %v2239
        %v2960 = vpack.c.b16 %v2276, %v2240
        %v2961 = vpack.c.b16 %v2277, %v2241
        %v2962 = vpack.c.b16 %v2278, %v2242
        %v2963 = vpack.c.b16 %v2279, %v2243
        %v2964 = vpack.c.b16 %v2280, %v2244
        %v2965 = vpack.c.b16 %v2281, %v2245
        %v2966 = vpack.c.b16 %v2282, %v2246
        %v2967 = vpack.c.b16 %v2283, %v2247
        %v2968 = vpack.c.b16 %v2284, %v2248
        %v2969 = vpack.c.b16 %v2285, %v2249
        %v2970 = vpack.c.b16 %v2286, %v2250
        %v2971 = vpack.c.b16 %v2287, %v2251
        %v2972 = vpack.c.b16 %v2288, %v2252
        %v2973 = vpack.c.b16 %v2289, %v2253
        %v2974 = vpack.c.b16 %v2290, %v2254
        %v2975 = vpack.c.b16 %v2291, %v2255
        %v2976 = vpack.c.b16 %v2292, %v2256
        %v2977 = vpack.c.b16 %v2293, %v2257
        %v2978 = vpack.c.b16 %v2294, %v2258
        %v2979 = vpack.c.b16 %v2295, %v2259
        %v2980 = vpack.c.b16 %v2296, %v2260
        %v2981 = vpack.c.b16 %v2297, %v2261
        %v2982 = vpack.c.b16 %v2298, %v2262
        %v2983 = vpack.c.b16 %v2299, %v2263
        %v2984 = vpack.c.b16 %v2300, %v2264
        %v2985 = vpack.c.b16 %v2301, %v2265
        %v2986 = vpack.c.b16 %v2302, %v2266
        %v2987 = vpack.c.b16 %v2303, %v2267
        %v2988 = vpack.c.b16 %v2304, %v2268
        %v2989 = vpack.c.b16 %v2305, %v2269
        %v2990 = vpack.c.b16 %v2306, %v2270
        %v2991 = vpack.c.b16 %v2307, %v2271
        %v2992 = vpack.c.b16 %v2344, %v2308
        %v2993 = vpack.c.b16 %v2345, %v2309
        %v2994 = vpack.c.b16 %v2346, %v2310
        %v2995 = vpack.c.b16 %v2347, %v2311
        %v2996 = vpack.c.b16 %v2348, %v2312
        %v2997 = vpack.c.b16 %v2349, %v2313
        %v2998 = vpack.c.b16 %v2350, %v2314
        %v2999 = vpack.c.b16 %v2351, %v2315
        %v3000 = vpack.c.b16 %v2352, %v2316
        %v3001 = vpack.c.b16 %v2353, %v2317
        %v3002 = vpack.c.b16 %v2354, %v2318
        %v3003 = vpack.c.b16 %v2355, %v2319
        %v3004 = vpack.c.b16 %v2356, %v2320
        %v3005 = vpack.c.b16 %v2357, %v2321
        %v3006 = vpack.c.b16 %v2358, %v2322
        %v3007 = vpack.c.b16 %v2359, %v2323
        %v3008 = vpack.c.b16 %v2360, %v2324
        %v3009 = vpack.c.b16 %v2361, %v2325
        %v3010 = vpack.c.b16 %v2362, %v2326
        %v3011 = vpack.c.b16 %v2363, %v2327
        %v3012 = vpack.c.b16 %v2364, %v2328
        %v3013 = vpack.c.b16 %v2365, %v2329
        %v3014 = vpack.c.b16 %v2366, %v2330
        %v3015 = vpack.c.b16 %v2367, %v2331
        %v3016 = vpack.c.b16 %v2368, %v2332
        %v3017 = vpack.c.b16 %v2369, %v2333
        %v3018 = vpack.c.b16 %v2370, %v2334
        %v3019 = vpack.c.b16 %v2371, %v2335
        %v3020 = vpack.c.b16 %v2372, %v2336
        %v3021 = vpack.c.b16 %v2373, %v2337
        %v3022 = vpack.c.b16 %v2374, %v2338
        %v3023 = vpack.c.b16 %v2375, %v2339
        %v3024 = vpack.c.b16 %v2376, %v2340
        %v3025 = vpack.c.b16 %v2377, %v2341
        %v3026 = vpack.c.b16 %v2378, %v2342
        %v3027 = vpack.c.b16 %v2379, %v2343
        %v3028 = vpack.c.b16 %v2416, %v2380
        %v3029 = vpack.c.b16 %v2417, %v2381
        %v3030 = vpack.c.b16 %v2418, %v2382
        %v3031 = vpack.c.b16 %v2419, %v2383
        %v3032 = vpack.c.b16 %v2420, %v2384
        %v3033 = vpack.c.b16 %v2421, %v2385
        %v3034 = vpack.c.b16 %v2422, %v2386
        %v3035 = vpack.c.b16 %v2423, %v2387
        %v3036 = vpack.c.b16 %v2424, %v2388
        %v3037 = vpack.c.b16 %v2425, %v2389
        %v3038 = vpack.c.b16 %v2426, %v2390
        %v3039 = vpack.c.b16 %v2427, %v2391
        %v3040 = vpack.c.b16 %v2428, %v2392
        %v3041 = vpack.c.b16 %v2429, %v2393
        %v3042 = vpack.c.b16 %v2430, %v2394
        %v3043 = vpack.c.b16 %v2431, %v2395
        %v3044 = vpack.c.b16 %v2432, %v2396
        %v3045 = vpack.c.b16 %v2433, %v2397
        %v3046 = vpack.c.b16 %v2434, %v2398
        %v3047 = vpack.c.b16 %v2435, %v2399
        %v3048 = vpack.c.b16 %v2436, %v2400
        %v3049 = vpack.c.b16 %v2437, %v2401
        %v3050 = vpack.c.b16 %v2438, %v2402
        %v3051 = vpack.c.b16 %v2439, %v2403
        %v3052 = vpack.c.b16 %v2440, %v2404
        %v3053 = vpack.c.b16 %v2441, %v2405
        %v3054 = vpack.c.b16 %v2442, %v2406
        %v3055 = vpack.c.b16 %v2443, %v2407
        %v3056 = vpack.c.b16 %v2444, %v2408
        %v3057 = vpack.c.b16 %v2445, %v2409
        %v3058 = vpack.c.b16 %v2446, %v2410
        %v3059 = vpack.c.b16 %v2447, %v2411
        %v3060 = vpack.c.b16 %v2448, %v2412
        %v3061 = vpack.c.b16 %v2449, %v2413
        %v3062 = vpack.c.b16 %v2450, %v2414
        %v3063 = vpack.c.b16 %v2451, %v2415
        %v3064 = vpack.c.b16 %v2488, %v2452
        %v3065 = vpack.c.b16 %v2489, %v2453
        %v3066 = vpack.c.b16 %v2490, %v2454
        %v3067 = vpack.c.b16 %v2491, %v2455
        %v3068 = vpack.c.b16 %v2492, %v2456
        %v3069 = vpack.c.b16 %v2493, %v2457
        %v3070 = vpack.c.b16 %v2494, %v2458
        %v3071 = vpack.c.b16 %v2495, %v2459
        %v3072 = vpack.c.b16 %v2496, %v2460
        %v3073 = vpack.c.b16 %v2497, %v2461
        %v3074 = vpack.c.b16 %v2498, %v2462
        %v3075 = vpack.c.b16 %v2499, %v2463
        %v3076 = vpack.c.b16 %v2500, %v2464
        %v3077 = vpack.c.b16 %v2501, %v2465
        %v3078 = vpack.c.b16 %v2502, %v2466
        %v3079 = vpack.c.b16 %v2503, %v2467
        %v3080 = vpack.c.b16 %v2504, %v2468
        %v3081 = vpack.c.b16 %v2505, %v2469
        %v3082 = vpack.c.b16 %v2506, %v2470
        %v3083 = vpack.c.b16 %v2507, %v2471
        %v3084 = vpack.c.b16 %v2508, %v2472
        %v3085 = vpack.c.b16 %v2509, %v2473
        %v3086 = vpack.c.b16 %v2510, %v2474
        %v3087 = vpack.c.b16 %v2511, %v2475
        %v3088 = vpack.c.b16 %v2512, %v2476
        %v3089 = vpack.c.b16 %v2513, %v2477
        %v3090 = vpack.c.b16 %v2514, %v2478
        %v3091 = vpack.c.b16 %v2515, %v2479
        %v3092 = vpack.c.b16 %v2516, %v2480
        %v3093 = vpack.c.b16 %v2517, %v2481
        %v3094 = vpack.c.b16 %v2518, %v2482
        %v3095 = vpack.c.b16 %v2519, %v2483
        %v3096 = vpack.c.b16 %v2520, %v2484
        %v3097 = vpack.c.b16 %v2521, %v2485
        %v3098 = vpack.c.b16 %v2522, %v2486
        %v3099 = vpack.c.b16 %v2523, %v2487
        %v3100 = vpack.c.b16 %v2560, %v2524
        %v3101 = vpack.c.b16 %v2561, %v2525
        %v3102 = vpack.c.b16 %v2562, %v2526
        %v3103 = vpack.c.b16 %v2563, %v2527
        %v3104 = vpack.c.b16 %v2564, %v2528
        %v3105 = vpack.c.b16 %v2565, %v2529
        %v3106 = vpack.c.b16 %v2566, %v2530
        %v3107 = vpack.c.b16 %v2567, %v2531
        %v3108 = vpack.c.b16 %v2568, %v2532
        %v3109 = vpack.c.b16 %v2569, %v2533
        %v3110 = vpack.c.b16 %v2570, %v2534
        %v3111 = vpack.c.b16 %v2571, %v2535
        %v3112 = vpack.c.b16 %v2572, %v2536
        %v3113 = vpack.c.b16 %v2573, %v2537
        %v3114 = vpack.c.b16 %v2574, %v2538
        %v3115 = vpack.c.b16 %v2575, %v2539
        %v3116 = vpack.c.b16 %v2576, %v2540
        %v3117 = vpack.c.b16 %v2577, %v2541
        %v3118 = vpack.c.b16 %v2578, %v2542
        %v3119 = vpack.c.b16 %v2579, %v2543
        %v3120 = vpack.c.b16 %v2580, %v2544
        %v3121 = vpack.c.b16 %v2581, %v2545
        %v3122 = vpack.c.b16 %v2582, %v2546
        %v3123 = vpack.c.b16 %v2583, %v2547
        %v3124 = vpack.c.b16 %v2584, %v2548
        %v3125 = vpack.c.b16 %v2585, %v2549
        %v3126 = vpack.c.b16 %v2586, %v2550
        %v3127 = vpack.c.b16 %v2587, %v2551
        %v3128 = vpack.c.b16 %v2588, %v2552
        %v3129 = vpack.c.b16 %v2589, %v2553
        %v3130 = vpack.c.b16 %v2590, %v2554
        %v3131 = vpack.c.b16 %v2591, %v2555
        %v3132 = vpack.c.b16 %v2592, %v2556
        %v3133 = vpack.c.b16 %v2593, %v2557
        %v3134 = vpack.c.b16 %v2594, %v2558
        %v3135 = vpack.c.b16 %v2595, %v2559
        %v3136 = vpack.c.b16 %v2632, %v2596
        %v3137 = vpack.c.b16 %v2633, %v2597
        %v3138 = vpack.c.b16 %v2634, %v2598
        %v3139 = vpack.c.b16 %v2635, %v2599
        %v3140 = vpack.c.b16 %v2636, %v2600
        %v3141 = vpack.c.b16 %v2637, %v2601
        %v3142 = vpack.c.b16 %v2638, %v2602
        %v3143 = vpack.c.b16 %v2639, %v2603
        %v3144 = vpack.c.b16 %v2640, %v2604
        %v3145 = vpack.c.b16 %v2641, %v2605
        %v3146 = vpack.c.b16 %v2642, %v2606
        %v3147 = vpack.c.b16 %v2643, %v2607
        %v3148 = vpack.c.b16 %v2644, %v2608
        %v3149 = vpack.c.b16 %v2645, %v2609
        %v3150 = vpack.c.b16 %v2646, %v2610
        %v3151 = vpack.c.b16 %v2647, %v2611
        %v3152 = vpack.c.b16 %v2648, %v2612
        %v3153 = vpack.c.b16 %v2649, %v2613
        %v3154 = vpack.c.b16 %v2650, %v2614
        %v3155 = vpack.c.b16 %v2651, %v2615
        %v3156 = vpack.c.b16 %v2652, %v2616
        %v3157 = vpack.c.b16 %v2653, %v2617
        %v3158 = vpack.c.b16 %v2654, %v2618
        %v3159 = vpack.c.b16 %v2655, %v2619
        %v3160 = vpack.c.b16 %v2656, %v2620
        %v3161 = vpack.c.b16 %v2657, %v2621
        %v3162 = vpack.c.b16 %v2658, %v2622
        %v3163 = vpack.c.b16 %v2659, %v2623
        %v3164 = vpack.c.b16 %v2660, %v2624
        %v3165 = vpack.c.b16 %v2661, %v2625
        %v3166 = vpack.c.b16 %v2662, %v2626
        %v3167 = vpack.c.b16 %v2663, %v2627
        %v3168 = vpack.c.b16 %v2664, %v2628
        %v3169 = vpack.c.b16 %v2665, %v2629
        %v3170 = vpack.c.b16 %v2666, %v2630
        %v3171 = vpack.c.b16 %v2667, %v2631
        %v3172 = vpack.c.b16 %v2704, %v2668
        %v3173 = vpack.c.b16 %v2705, %v2669
        %v3174 = vpack.c.b16 %v2706, %v2670
        %v3175 = vpack.c.b16 %v2707, %v2671
        %v3176 = vpack.c.b16 %v2708, %v2672
        %v3177 = vpack.c.b16 %v2709, %v2673
        %v3178 = vpack.c.b16 %v2710, %v2674
        %v3179 = vpack.c.b16 %v2711, %v2675
        %v3180 = vpack.c.b16 %v2712, %v2676
        %v3181 = vpack.c.b16 %v2713, %v2677
        %v3182 = vpack.c.b16 %v2714, %v2678
        %v3183 = vpack.c.b16 %v2715, %v2679
        %v3184 = vpack.c.b16 %v2716, %v2680
        %v3185 = vpack.c.b16 %v2717, %v2681
        %v3186 = vpack.c.b16 %v2718, %v2682
        %v3187 = vpack.c.b16 %v2719, %v2683
        %v3188 = vpack.c.b16 %v2720, %v2684
        %v3189 = vpack.c.b16 %v2721, %v2685
        %v3190 = vpack.c.b16 %v2722, %v2686
        %v3191 = vpack.c.b16 %v2723, %v2687
        %v3192 = vpack.c.b16 %v2724, %v2688
        %v3193 = vpack.c.b16 %v2725, %v2689
        %v3194 = vpack.c.b16 %v2726, %v2690
        %v3195 = vpack.c.b16 %v2727, %v2691
        %v3196 = vpack.c.b16 %v2728, %v2692
        %v3197 = vpack.c.b16 %v2729, %v2693
        %v3198 = vpack.c.b16 %v2730, %v2694
        %v3199 = vpack.c.b16 %v2731, %v2695
        %v3200 = vpack.c.b16 %v2732, %v2696
        %v3201 = vpack.c.b16 %v2733, %v2697
        %v3202 = vpack.c.b16 %v2734, %v2698
        %v3203 = vpack.c.b16 %v2735, %v2699
        %v3204 = vpack.c.b16 %v2736, %v2700
        %v3205 = vpack.c.b16 %v2737, %v2701
        %v3206 = vpack.c.b16 %v2738, %v2702
        %v3207 = vpack.c.b16 %v2739, %v2703
        %v3208 = vpack.c.b16 %v2776, %v2740
        %v3209 = vpack.c.b16 %v2777, %v2741
        %v3210 = vpack.c.b16 %v2778, %v2742
        %v3211 = vpack.c.b16 %v2779, %v2743
        %v3212 = vpack.c.b16 %v2780, %v2744
        %v3213 = vpack.c.b16 %v2781, %v2745
        %v3214 = vpack.c.b16 %v2782, %v2746
        %v3215 = vpack.c.b16 %v2783, %v2747
        %v3216 = vpack.c.b16 %v2784, %v2748
        %v3217 = vpack.c.b16 %v2785, %v2749
        %v3218 = vpack.c.b16 %v2786, %v2750
        %v3219 = vpack.c.b16 %v2787, %v2751
        %v3220 = vpack.c.b16 %v2788, %v2752
        %v3221 = vpack.c.b16 %v2789, %v2753
        %v3222 = vpack.c.b16 %v2790, %v2754
        %v3223 = vpack.c.b16 %v2791, %v2755
        %v3224 = vpack.c.b16 %v2792, %v2756
        %v3225 = vpack.c.b16 %v2793, %v2757
        %v3226 = vpack.c.b16 %v2794, %v2758
        %v3227 = vpack.c.b16 %v2795, %v2759
        %v3228 = vpack.c.b16 %v2796, %v2760
        %v3229 = vpack.c.b16 %v2797, %v2761
        %v3230 = vpack.c.b16 %v2798, %v2762
        %v3231 = vpack.c.b16 %v2799, %v2763
        %v3232 = vpack.c.b16 %v2800, %v2764
        %v3233 = vpack.c.b16 %v2801, %v2765
        %v3234 = vpack.c.b16 %v2802, %v2766
        %v3235 = vpack.c.b16 %v2803, %v2767
        %v3236 = vpack.c.b16 %v2804, %v2768
        %v3237 = vpack.c.b16 %v2805, %v2769
        %v3238 = vpack.c.b16 %v2806, %v2770
        %v3239 = vpack.c.b16 %v2807, %v2771
        %v3240 = vpack.c.b16 %v2808, %v2772
        %v3241 = vpack.c.b16 %v2809, %v2773
        %v3242 = vpack.c.b16 %v2810, %v2774
        %v3243 = vpack.c.b16 %v2811, %v2775
        %v3244 = vpack.c.b16 %v2848, %v2812
        %v3245 = vpack.c.b16 %v2849, %v2813
        %v3246 = vpack.c.b16 %v2850, %v2814
        %v3247 = vpack.c.b16 %v2851, %v2815
        %v3248 = vpack.c.b16 %v2852, %v2816
        %v3249 = vpack.c.b16 %v2853, %v2817
        %v3250 = vpack.c.b16 %v2854, %v2818
        %v3251 = vpack.c.b16 %v2855, %v2819
        %v3252 = vpack.c.b16 %v2856, %v2820
        %v3253 = vpack.c.b16 %v2857, %v2821
        %v3254 = vpack.c.b16 %v2858, %v2822
        %v3255 = vpack.c.b16 %v2859, %v2823
        %v3256 = vpack.c.b16 %v2860, %v2824
        %v3257 = vpack.c.b16 %v2861, %v2825
        %v3258 = vpack.c.b16 %v2862, %v2826
        %v3259 = vpack.c.b16 %v2863, %v2827
        %v3260 = vpack.c.b16 %v2864, %v2828
        %v3261 = vpack.c.b16 %v2865, %v2829
        %v3262 = vpack.c.b16 %v2866, %v2830
        %v3263 = vpack.c.b16 %v2867, %v2831
        %v3264 = vpack.c.b16 %v2868, %v2832
        %v3265 = vpack.c.b16 %v2869, %v2833
        %v3266 = vpack.c.b16 %v2870, %v2834
        %v3267 = vpack.c.b16 %v2871, %v2835
        %v3268 = vpack.c.b16 %v2872, %v2836
        %v3269 = vpack.c.b16 %v2873, %v2837
        %v3270 = vpack.c.b16 %v2874, %v2838
        %v3271 = vpack.c.b16 %v2875, %v2839
        %v3272 = vpack.c.b16 %v2876, %v2840
        %v3273 = vpack.c.b16 %v2877, %v2841
        %v3274 = vpack.c.b16 %v2878, %v2842
        %v3275 = vpack.c.b16 %v2879, %v2843
        %v3276 = vpack.c.b16 %v2880, %v2844
        %v3277 = vpack.c.b16 %v2881, %v2845
        %v3278 = vpack.c.b16 %v2882, %v2846
        %v3279 = vpack.c.b16 %v2883, %v2847
        %v3280 = vpack.c.b16 %v2920, %v2884
        %v3281 = vpack.c.b16 %v2921, %v2885
        %v3282 = vpack.c.b16 %v2922, %v2886
        %v3283 = vpack.c.b16 %v2923, %v2887
        %v3284 = vpack.c.b16 %v2924, %v2888
        %v3285 = vpack.c.b16 %v2925, %v2889
        %v3286 = vpack.c.b16 %v2926, %v2890
        %v3287 = vpack.c.b16 %v2927, %v2891
        %v3288 = vpack.c.b16 %v2928, %v2892
        %v3289 = vpack.c.b16 %v2929, %v2893
        %v3290 = vpack.c.b16 %v2930, %v2894
        %v3291 = vpack.c.b16 %v2931, %v2895
        %v3292 = vpack.c.b16 %v2932, %v2896
        %v3293 = vpack.c.b16 %v2933, %v2897
        %v3294 = vpack.c.b16 %v2934, %v2898
        %v3295 = vpack.c.b16 %v2935, %v2899
        %v3296 = vpack.c.b16 %v2936, %v2900
        %v3297 = vpack.c.b16 %v2937, %v2901
        %v3298 = vpack.c.b16 %v2938, %v2902
        %v3299 = vpack.c.b16 %v2939, %v2903
        %v3300 = vpack.c.b16 %v2940, %v2904
        %v3301 = vpack.c.b16 %v2941, %v2905
        %v3302 = vpack.c.b16 %v2942, %v2906
        %v3303 = vpack.c.b16 %v2943, %v2907
        %v3304 = vpack.c.b16 %v2944, %v2908
        %v3305 = vpack.c.b16 %v2945, %v2909
        %v3306 = vpack.c.b16 %v2946, %v2910
        %v3307 = vpack.c.b16 %v2947, %v2911
        %v3308 = vpack.c.b16 %v2948, %v2912
        %v3309 = vpack.c.b16 %v2949, %v2913
        %v3310 = vpack.c.b16 %v2950, %v2914
        %v3311 = vpack.c.b16 %v2951, %v2915
        %v3312 = vpack.c.b16 %v2952, %v2916
        %v3313 = vpack.c.b16 %v2953, %v2917
        %v3314 = vpack.c.b16 %v2954, %v2918
        %v3315 = vpack.c.b16 %v2955, %v2919
        %3676 = vmatprep.subr.bf16.mxu0 %v2957
        %3677 = vmatpush1.bf16.xpose.msra.mxu0 %v2956
        %3678 = vmatprep.subr.bf16.mxu0 %v2993
        %3679 = vmatpush1.bf16.xpose.msra.mxu0 %v2992
        %3680 = vmatprep.subr.bf16.mxu0 %v3029
        %3681 = vmatpush1.bf16.xpose.msra.mxu0 %v3028
        %3682 = vmatprep.subr.bf16.mxu0 %v3065
        %3683 = vmatpush1.bf16.xpose.msra.mxu0 %v3064
        %3684 = vmatprep.subr.bf16.mxu0 %v3101
        %3685 = vmatpush1.bf16.xpose.msra.mxu0 %v3100
        %3686 = vmatprep.subr.bf16.mxu0 %v3137
        %3687 = vmatpush1.bf16.xpose.msra.mxu0 %v3136
        %3688 = vmatprep.subr.bf16.mxu0 %v3173
        %3689 = vmatpush1.bf16.xpose.msra.mxu0 %v3172
        %3690 = vmatprep.subr.bf16.mxu0 %v3209
        %3691 = vmatpush1.bf16.xpose.msra.mxu0 %v3208
        %3692 = vmatprep.subr.bf16.mxu0 %v3245
        %3693 = vmatpush1.bf16.xpose.msra.mxu0 %v3244
        %3694 = vmatprep.subr.bf16.mxu0 %v3281
        %3695 = vmatpush1.bf16.xpose.msra.mxu0 %v3280
        %3696 = vmatprep.subr.bf16.mxu0 0
        %3697 = vmatpush1.bf16.xpose.msra.mxu0 0
        %3698 = vmatprep.subr.bf16.mxu0 0
        %3699 = vmatpush1.bf16.xpose.msra.mxu0 0
        %3700 = vmatprep.subr.bf16.mxu0 0
        %3701 = vmatpush1.bf16.xpose.msra.mxu0 0
        %3702 = vmatprep.subr.bf16.mxu0 0
        %3703 = vmatpush1.bf16.xpose.msra.mxu0 0
        %3704 = vmatprep.subr.bf16.mxu0 0
        %3705 = vmatpush1.bf16.xpose.msra.mxu0 0
        %3706 = vmatprep.subr.bf16.mxu0 0
        %3707 = vmatpush1.bf16.xpose.msra.mxu0 0
        %3708 = vmatprep.mubr.bf16.mxu0 %v1445
        %3709 = vmatmul.mubr.bf16.gmra.mrb[0].mxu0 %v1444
        %v3710 = vpop.f32.mrb[0].mxu0
        %v3711 = vadd.f32 0.0, %v3710
        %v3712 = vpop.f32.mrb[0].mxu0
        %v3713 = vadd.f32 0.0, %v3712
        %v3714 = vpop.f32.mrb[0].mxu0
        %v3715 = vadd.f32 0.0, %v3714
        %v3716 = vpop.f32.mrb[0].mxu0
        %v3717 = vadd.f32 0.0, %v3716
        %3718 = vmatprep.mubr.bf16.mxu0 %v1481
        %3719 = vmatmul.mubr.bf16.gmra.mrb[0].mxu0 %v1480
        %v3720 = vpop.f32.mrb[0].mxu0
        %v3721 = vadd.f32 0.0, %v3720
        %v3722 = vpop.f32.mrb[0].mxu0
        %v3723 = vadd.f32 0.0, %v3722
        %v3724 = vpop.f32.mrb[0].mxu0
        %v3725 = vadd.f32 0.0, %v3724
        %v3726 = vpop.f32.mrb[0].mxu0
        %v3727 = vadd.f32 0.0, %v3726
        %3728 = vdwg.mxu0
        %3729 = vmatprep.subr.bf16.mxu0 %v2959
        %3730 = vmatpush1.bf16.xpose.msra.mxu0 %v2958
        %3731 = vmatprep.subr.bf16.mxu0 %v2995
        %3732 = vmatpush1.bf16.xpose.msra.mxu0 %v2994
        %3733 = vmatprep.subr.bf16.mxu0 %v3031
        %3734 = vmatpush1.bf16.xpose.msra.mxu0 %v3030
        %3735 = vmatprep.subr.bf16.mxu0 %v3067
        %3736 = vmatpush1.bf16.xpose.msra.mxu0 %v3066
        %3737 = vmatprep.subr.bf16.mxu0 %v3103
        %3738 = vmatpush1.bf16.xpose.msra.mxu0 %v3102
        %3739 = vmatprep.subr.bf16.mxu0 %v3139
        %3740 = vmatpush1.bf16.xpose.msra.mxu0 %v3138
        %3741 = vmatprep.subr.bf16.mxu0 %v3175
        %3742 = vmatpush1.bf16.xpose.msra.mxu0 %v3174
        %3743 = vmatprep.subr.bf16.mxu0 %v3211
        %3744 = vmatpush1.bf16.xpose.msra.mxu0 %v3210
        %3745 = vmatprep.subr.bf16.mxu0 %v3247
        %3746 = vmatpush1.bf16.xpose.msra.mxu0 %v3246
        %3747 = vmatprep.subr.bf16.mxu0 %v3283
        %3748 = vmatpush1.bf16.xpose.msra.mxu0 %v3282
        %3749 = vmatprep.subr.bf16.mxu0 0
        %3750 = vmatpush1.bf16.xpose.msra.mxu0 0
        %3751 = vmatprep.subr.bf16.mxu0 0
        %3752 = vmatpush1.bf16.xpose.msra.mxu0 0
        %3753 = vmatprep.subr.bf16.mxu0 0
        %3754 = vmatpush1.bf16.xpose.msra.mxu0 0
        %3755 = vmatprep.subr.bf16.mxu0 0
        %3756 = vmatpush1.bf16.xpose.msra.mxu0 0
        %3757 = vmatprep.subr.bf16.mxu0 0
        %3758 = vmatpush1.bf16.xpose.msra.mxu0 0
        %3759 = vmatprep.subr.bf16.mxu0 0
        %3760 = vmatpush1.bf16.xpose.msra.mxu0 0
        %3761 = vmatprep.mubr.bf16.mxu0 %v1447
        %3762 = vmatmul.mubr.bf16.gmra.mrb[0].mxu0 %v1446
        %v3763 = vpop.f32.mrb[0].mxu0
        %v3764 = vadd.f32 %v3711, %v3763
        %v3765 = vpop.f32.mrb[0].mxu0
        %v3766 = vadd.f32 %v3713, %v3765
        %v3767 = vpop.f32.mrb[0].mxu0
        %v3768 = vadd.f32 %v3715, %v3767
        %v3769 = vpop.f32.mrb[0].mxu0
        %v3770 = vadd.f32 %v3717, %v3769
        %3771 = vmatprep.mubr.bf16.mxu0 %v1483
        %3772 = vmatmul.mubr.bf16.gmra.mrb[0].mxu0 %v1482
        %v3773 = vpop.f32.mrb[0].mxu0
        %v3774 = vadd.f32 %v3721, %v3773
        %v3775 = vpop.f32.mrb[0].mxu0
        %v3776 = vadd.f32 %v3723, %v3775
        %v3777 = vpop.f32.mrb[0].mxu0
        %v3778 = vadd.f32 %v3725, %v3777
        %v3779 = vpop.f32.mrb[0].mxu0
        %v3780 = vadd.f32 %v3727, %v3779
        %3781 = vdwg.mxu0
        %3782 = vmatprep.subr.bf16.mxu0 %v2961
        %3783 = vmatpush1.bf16.xpose.msra.mxu0 %v2960
        %3784 = vmatprep.subr.bf16.mxu0 %v2997
        %3785 = vmatpush1.bf16.xpose.msra.mxu0 %v2996
        %3786 = vmatprep.subr.bf16.mxu0 %v3033
        %3787 = vmatpush1.bf16.xpose.msra.mxu0 %v3032
        %3788 = vmatprep.subr.bf16.mxu0 %v3069
        %3789 = vmatpush1.bf16.xpose.msra.mxu0 %v3068
        %3790 = vmatprep.subr.bf16.mxu0 %v3105
        %3791 = vmatpush1.bf16.xpose.msra.mxu0 %v3104
        %3792 = vmatprep.subr.bf16.mxu0 %v3141
        %3793 = vmatpush1.bf16.xpose.msra.mxu0 %v3140
        %3794 = vmatprep.subr.bf16.mxu0 %v3177
        %3795 = vmatpush1.bf16.xpose.msra.mxu0 %v3176
        %3796 = vmatprep.subr.bf16.mxu0 %v3213
        %3797 = vmatpush1.bf16.xpose.msra.mxu0 %v3212
        %3798 = vmatprep.subr.bf16.mxu0 %v3249
        %3799 = vmatpush1.bf16.xpose.msra.mxu0 %v3248
        %3800 = vmatprep.subr.bf16.mxu0 %v3285
        %3801 = vmatpush1.bf16.xpose.msra.mxu0 %v3284
        %3802 = vmatprep.subr.bf16.mxu0 0
        %3803 = vmatpush1.bf16.xpose.msra.mxu0 0
        %3804 = vmatprep.subr.bf16.mxu0 0
        %3805 = vmatpush1.bf16.xpose.msra.mxu0 0
        %3806 = vmatprep.subr.bf16.mxu0 0
        %3807 = vmatpush1.bf16.xpose.msra.mxu0 0
        %3808 = vmatprep.subr.bf16.mxu0 0
        %3809 = vmatpush1.bf16.xpose.msra.mxu0 0
        %3810 = vmatprep.subr.bf16.mxu0 0
        %3811 = vmatpush1.bf16.xpose.msra.mxu0 0
        %3812 = vmatprep.subr.bf16.mxu0 0
        %3813 = vmatpush1.bf16.xpose.msra.mxu0 0
        %3814 = vmatprep.mubr.bf16.mxu0 %v1449
        %3815 = vmatmul.mubr.bf16.gmra.mrb[0].mxu0 %v1448
        %v3816 = vpop.f32.mrb[0].mxu0
        %v3817 = vadd.f32 %v3764, %v3816
        %v3818 = vpop.f32.mrb[0].mxu0
        %v3819 = vadd.f32 %v3766, %v3818
        %v3820 = vpop.f32.mrb[0].mxu0
        %v3821 = vadd.f32 %v3768, %v3820
        %v3822 = vpop.f32.mrb[0].mxu0
        %v3823 = vadd.f32 %v3770, %v3822
        %3824 = vmatprep.mubr.bf16.mxu0 %v1485
        %3825 = vmatmul.mubr.bf16.gmra.mrb[0].mxu0 %v1484
        %v3826 = vpop.f32.mrb[0].mxu0
        %v3827 = vadd.f32 %v3774, %v3826
        %v3828 = vpop.f32.mrb[0].mxu0
        %v3829 = vadd.f32 %v3776, %v3828
        %v3830 = vpop.f32.mrb[0].mxu0
        %v3831 = vadd.f32 %v3778, %v3830
        %v3832 = vpop.f32.mrb[0].mxu0
        %v3833 = vadd.f32 %v3780, %v3832
        %3834 = vdwg.mxu0
        %3835 = vmatprep.subr.bf16.mxu0 %v2963
        %3836 = vmatpush1.bf16.xpose.msra.mxu0 %v2962
        %3837 = vmatprep.subr.bf16.mxu0 %v2999
        %3838 = vmatpush1.bf16.xpose.msra.mxu0 %v2998
        %3839 = vmatprep.subr.bf16.mxu0 %v3035
        %3840 = vmatpush1.bf16.xpose.msra.mxu0 %v3034
        %3841 = vmatprep.subr.bf16.mxu0 %v3071
        %3842 = vmatpush1.bf16.xpose.msra.mxu0 %v3070
        %3843 = vmatprep.subr.bf16.mxu0 %v3107
        %3844 = vmatpush1.bf16.xpose.msra.mxu0 %v3106
        %3845 = vmatprep.subr.bf16.mxu0 %v3143
        %3846 = vmatpush1.bf16.xpose.msra.mxu0 %v3142
        %3847 = vmatprep.subr.bf16.mxu0 %v3179
        %3848 = vmatpush1.bf16.xpose.msra.mxu0 %v3178
        %3849 = vmatprep.subr.bf16.mxu0 %v3215
        %3850 = vmatpush1.bf16.xpose.msra.mxu0 %v3214
        %3851 = vmatprep.subr.bf16.mxu0 %v3251
        %3852 = vmatpush1.bf16.xpose.msra.mxu0 %v3250
        %3853 = vmatprep.subr.bf16.mxu0 %v3287
        %3854 = vmatpush1.bf16.xpose.msra.mxu0 %v3286
        %3855 = vmatprep.subr.bf16.mxu0 0
        %3856 = vmatpush1.bf16.xpose.msra.mxu0 0
        %3857 = vmatprep.subr.bf16.mxu0 0
        %3858 = vmatpush1.bf16.xpose.msra.mxu0 0
        %3859 = vmatprep.subr.bf16.mxu0 0
        %3860 = vmatpush1.bf16.xpose.msra.mxu0 0
        %3861 = vmatprep.subr.bf16.mxu0 0
        %3862 = vmatpush1.bf16.xpose.msra.mxu0 0
        %3863 = vmatprep.subr.bf16.mxu0 0
        %3864 = vmatpush1.bf16.xpose.msra.mxu0 0
        %3865 = vmatprep.subr.bf16.mxu0 0
        %3866 = vmatpush1.bf16.xpose.msra.mxu0 0
        %3867 = vmatprep.mubr.bf16.mxu0 %v1451
        %3868 = vmatmul.mubr.bf16.gmra.mrb[0].mxu0 %v1450
        %v3869 = vpop.f32.mrb[0].mxu0
        %v3870 = vadd.f32 %v3817, %v3869
        %v3871 = vpop.f32.mrb[0].mxu0
        %v3872 = vadd.f32 %v3819, %v3871
        %v3873 = vpop.f32.mrb[0].mxu0
        %v3874 = vadd.f32 %v3821, %v3873
        %v3875 = vpop.f32.mrb[0].mxu0
        %v3876 = vadd.f32 %v3823, %v3875
        %3877 = vmatprep.mubr.bf16.mxu0 %v1487
        %3878 = vmatmul.mubr.bf16.gmra.mrb[0].mxu0 %v1486
        %v3879 = vpop.f32.mrb[0].mxu0
        %v3880 = vadd.f32 %v3827, %v3879
        %v3881 = vpop.f32.mrb[0].mxu0
        %v3882 = vadd.f32 %v3829, %v3881
        %v3883 = vpop.f32.mrb[0].mxu0
        %v3884 = vadd.f32 %v3831, %v3883
        %v3885 = vpop.f32.mrb[0].mxu0
        %v3886 = vadd.f32 %v3833, %v3885
        %3887 = vdwg.mxu0
        %3888 = vmatprep.subr.bf16.mxu0 %v2965
        %3889 = vmatpush1.bf16.xpose.msra.mxu0 %v2964
        %3890 = vmatprep.subr.bf16.mxu0 %v3001
        %3891 = vmatpush1.bf16.xpose.msra.mxu0 %v3000
        %3892 = vmatprep.subr.bf16.mxu0 %v3037
        %3893 = vmatpush1.bf16.xpose.msra.mxu0 %v3036
        %3894 = vmatprep.subr.bf16.mxu0 %v3073
        %3895 = vmatpush1.bf16.xpose.msra.mxu0 %v3072
        %3896 = vmatprep.subr.bf16.mxu0 %v3109
        %3897 = vmatpush1.bf16.xpose.msra.mxu0 %v3108
        %3898 = vmatprep.subr.bf16.mxu0 %v3145
        %3899 = vmatpush1.bf16.xpose.msra.mxu0 %v3144
        %3900 = vmatprep.subr.bf16.mxu0 %v3181
        %3901 = vmatpush1.bf16.xpose.msra.mxu0 %v3180
        %3902 = vmatprep.subr.bf16.mxu0 %v3217
        %3903 = vmatpush1.bf16.xpose.msra.mxu0 %v3216
        %3904 = vmatprep.subr.bf16.mxu0 %v3253
        %3905 = vmatpush1.bf16.xpose.msra.mxu0 %v3252
        %3906 = vmatprep.subr.bf16.mxu0 %v3289
        %3907 = vmatpush1.bf16.xpose.msra.mxu0 %v3288
        %3908 = vmatprep.subr.bf16.mxu0 0
        %3909 = vmatpush1.bf16.xpose.msra.mxu0 0
        %3910 = vmatprep.subr.bf16.mxu0 0
        %3911 = vmatpush1.bf16.xpose.msra.mxu0 0
        %3912 = vmatprep.subr.bf16.mxu0 0
        %3913 = vmatpush1.bf16.xpose.msra.mxu0 0
        %3914 = vmatprep.subr.bf16.mxu0 0
        %3915 = vmatpush1.bf16.xpose.msra.mxu0 0
        %3916 = vmatprep.subr.bf16.mxu0 0
        %3917 = vmatpush1.bf16.xpose.msra.mxu0 0
        %3918 = vmatprep.subr.bf16.mxu0 0
        %3919 = vmatpush1.bf16.xpose.msra.mxu0 0
        %3920 = vmatprep.mubr.bf16.mxu0 %v1453
        %3921 = vmatmul.mubr.bf16.gmra.mrb[0].mxu0 %v1452
        %v3922 = vpop.f32.mrb[0].mxu0
        %v3923 = vadd.f32 %v3870, %v3922
        %v3924 = vpop.f32.mrb[0].mxu0
        %v3925 = vadd.f32 %v3872, %v3924
        %v3926 = vpop.f32.mrb[0].mxu0
        %v3927 = vadd.f32 %v3874, %v3926
        %v3928 = vpop.f32.mrb[0].mxu0
        %v3929 = vadd.f32 %v3876, %v3928
        %3930 = vmatprep.mubr.bf16.mxu0 %v1489
        %3931 = vmatmul.mubr.bf16.gmra.mrb[0].mxu0 %v1488
        %v3932 = vpop.f32.mrb[0].mxu0
        %v3933 = vadd.f32 %v3880, %v3932
        %v3934 = vpop.f32.mrb[0].mxu0
        %v3935 = vadd.f32 %v3882, %v3934
        %v3936 = vpop.f32.mrb[0].mxu0
        %v3937 = vadd.f32 %v3884, %v3936
        %v3938 = vpop.f32.mrb[0].mxu0
        %v3939 = vadd.f32 %v3886, %v3938
        %3940 = vdwg.mxu0
        %3941 = vmatprep.subr.bf16.mxu0 %v2967
        %3942 = vmatpush1.bf16.xpose.msra.mxu0 %v2966
        %3943 = vmatprep.subr.bf16.mxu0 %v3003
        %3944 = vmatpush1.bf16.xpose.msra.mxu0 %v3002
        %3945 = vmatprep.subr.bf16.mxu0 %v3039
        %3946 = vmatpush1.bf16.xpose.msra.mxu0 %v3038
        %3947 = vmatprep.subr.bf16.mxu0 %v3075
        %3948 = vmatpush1.bf16.xpose.msra.mxu0 %v3074
        %3949 = vmatprep.subr.bf16.mxu0 %v3111
        %3950 = vmatpush1.bf16.xpose.msra.mxu0 %v3110
        %3951 = vmatprep.subr.bf16.mxu0 %v3147
        %3952 = vmatpush1.bf16.xpose.msra.mxu0 %v3146
        %3953 = vmatprep.subr.bf16.mxu0 %v3183
        %3954 = vmatpush1.bf16.xpose.msra.mxu0 %v3182
        %3955 = vmatprep.subr.bf16.mxu0 %v3219
        %3956 = vmatpush1.bf16.xpose.msra.mxu0 %v3218
        %3957 = vmatprep.subr.bf16.mxu0 %v3255
        %3958 = vmatpush1.bf16.xpose.msra.mxu0 %v3254
        %3959 = vmatprep.subr.bf16.mxu0 %v3291
        %3960 = vmatpush1.bf16.xpose.msra.mxu0 %v3290
        %3961 = vmatprep.subr.bf16.mxu0 0
        %3962 = vmatpush1.bf16.xpose.msra.mxu0 0
        %3963 = vmatprep.subr.bf16.mxu0 0
        %3964 = vmatpush1.bf16.xpose.msra.mxu0 0
        %3965 = vmatprep.subr.bf16.mxu0 0
        %3966 = vmatpush1.bf16.xpose.msra.mxu0 0
        %3967 = vmatprep.subr.bf16.mxu0 0
        %3968 = vmatpush1.bf16.xpose.msra.mxu0 0
        %3969 = vmatprep.subr.bf16.mxu0 0
        %3970 = vmatpush1.bf16.xpose.msra.mxu0 0
        %3971 = vmatprep.subr.bf16.mxu0 0
        %3972 = vmatpush1.bf16.xpose.msra.mxu0 0
        %3973 = vmatprep.mubr.bf16.mxu0 %v1455
        %3974 = vmatmul.mubr.bf16.gmra.mrb[0].mxu0 %v1454
        %v3975 = vpop.f32.mrb[0].mxu0
        %v3976 = vadd.f32 %v3923, %v3975
        %v3977 = vpop.f32.mrb[0].mxu0
        %v3978 = vadd.f32 %v3925, %v3977
        %v3979 = vpop.f32.mrb[0].mxu0
        %v3980 = vadd.f32 %v3927, %v3979
        %v3981 = vpop.f32.mrb[0].mxu0
        %v3982 = vadd.f32 %v3929, %v3981
        %3983 = vmatprep.mubr.bf16.mxu0 %v1491
        %3984 = vmatmul.mubr.bf16.gmra.mrb[0].mxu0 %v1490
        %v3985 = vpop.f32.mrb[0].mxu0
        %v3986 = vadd.f32 %v3933, %v3985
        %v3987 = vpop.f32.mrb[0].mxu0
        %v3988 = vadd.f32 %v3935, %v3987
        %v3989 = vpop.f32.mrb[0].mxu0
        %v3990 = vadd.f32 %v3937, %v3989
        %v3991 = vpop.f32.mrb[0].mxu0
        %v3992 = vadd.f32 %v3939, %v3991
        %3993 = vdwg.mxu0
        %3994 = vmatprep.subr.bf16.mxu0 %v2969
        %3995 = vmatpush1.bf16.xpose.msra.mxu0 %v2968
        %3996 = vmatprep.subr.bf16.mxu0 %v3005
        %3997 = vmatpush1.bf16.xpose.msra.mxu0 %v3004
        %3998 = vmatprep.subr.bf16.mxu0 %v3041
        %3999 = vmatpush1.bf16.xpose.msra.mxu0 %v3040
        %4000 = vmatprep.subr.bf16.mxu0 %v3077
        %4001 = vmatpush1.bf16.xpose.msra.mxu0 %v3076
        %4002 = vmatprep.subr.bf16.mxu0 %v3113
        %4003 = vmatpush1.bf16.xpose.msra.mxu0 %v3112
        %4004 = vmatprep.subr.bf16.mxu0 %v3149
        %4005 = vmatpush1.bf16.xpose.msra.mxu0 %v3148
        %4006 = vmatprep.subr.bf16.mxu0 %v3185
        %4007 = vmatpush1.bf16.xpose.msra.mxu0 %v3184
        %4008 = vmatprep.subr.bf16.mxu0 %v3221
        %4009 = vmatpush1.bf16.xpose.msra.mxu0 %v3220
        %4010 = vmatprep.subr.bf16.mxu0 %v3257
        %4011 = vmatpush1.bf16.xpose.msra.mxu0 %v3256
        %4012 = vmatprep.subr.bf16.mxu0 %v3293
        %4013 = vmatpush1.bf16.xpose.msra.mxu0 %v3292
        %4014 = vmatprep.subr.bf16.mxu0 0
        %4015 = vmatpush1.bf16.xpose.msra.mxu0 0
        %4016 = vmatprep.subr.bf16.mxu0 0
        %4017 = vmatpush1.bf16.xpose.msra.mxu0 0
        %4018 = vmatprep.subr.bf16.mxu0 0
        %4019 = vmatpush1.bf16.xpose.msra.mxu0 0
        %4020 = vmatprep.subr.bf16.mxu0 0
        %4021 = vmatpush1.bf16.xpose.msra.mxu0 0
        %4022 = vmatprep.subr.bf16.mxu0 0
        %4023 = vmatpush1.bf16.xpose.msra.mxu0 0
        %4024 = vmatprep.subr.bf16.mxu0 0
        %4025 = vmatpush1.bf16.xpose.msra.mxu0 0
        %4026 = vmatprep.mubr.bf16.mxu0 %v1457
        %4027 = vmatmul.mubr.bf16.gmra.mrb[0].mxu0 %v1456
        %v4028 = vpop.f32.mrb[0].mxu0
        %v4029 = vadd.f32 %v3976, %v4028
        %v4030 = vpop.f32.mrb[0].mxu0
        %v4031 = vadd.f32 %v3978, %v4030
        %v4032 = vpop.f32.mrb[0].mxu0
        %v4033 = vadd.f32 %v3980, %v4032
        %v4034 = vpop.f32.mrb[0].mxu0
        %v4035 = vadd.f32 %v3982, %v4034
        %4036 = vmatprep.mubr.bf16.mxu0 %v1493
        %4037 = vmatmul.mubr.bf16.gmra.mrb[0].mxu0 %v1492
        %v4038 = vpop.f32.mrb[0].mxu0
        %v4039 = vadd.f32 %v3986, %v4038
        %v4040 = vpop.f32.mrb[0].mxu0
        %v4041 = vadd.f32 %v3988, %v4040
        %v4042 = vpop.f32.mrb[0].mxu0
        %v4043 = vadd.f32 %v3990, %v4042
        %v4044 = vpop.f32.mrb[0].mxu0
        %v4045 = vadd.f32 %v3992, %v4044
        %4046 = vdwg.mxu0
        %4047 = vmatprep.subr.bf16.mxu0 %v2971
        %4048 = vmatpush1.bf16.xpose.msra.mxu0 %v2970
        %4049 = vmatprep.subr.bf16.mxu0 %v3007
        %4050 = vmatpush1.bf16.xpose.msra.mxu0 %v3006
        %4051 = vmatprep.subr.bf16.mxu0 %v3043
        %4052 = vmatpush1.bf16.xpose.msra.mxu0 %v3042
        %4053 = vmatprep.subr.bf16.mxu0 %v3079
        %4054 = vmatpush1.bf16.xpose.msra.mxu0 %v3078
        %4055 = vmatprep.subr.bf16.mxu0 %v3115
        %4056 = vmatpush1.bf16.xpose.msra.mxu0 %v3114
        %4057 = vmatprep.subr.bf16.mxu0 %v3151
        %4058 = vmatpush1.bf16.xpose.msra.mxu0 %v3150
        %4059 = vmatprep.subr.bf16.mxu0 %v3187
        %4060 = vmatpush1.bf16.xpose.msra.mxu0 %v3186
        %4061 = vmatprep.subr.bf16.mxu0 %v3223
        %4062 = vmatpush1.bf16.xpose.msra.mxu0 %v3222
        %4063 = vmatprep.subr.bf16.mxu0 %v3259
        %4064 = vmatpush1.bf16.xpose.msra.mxu0 %v3258
        %4065 = vmatprep.subr.bf16.mxu0 %v3295
        %4066 = vmatpush1.bf16.xpose.msra.mxu0 %v3294
        %4067 = vmatprep.subr.bf16.mxu0 0
        %4068 = vmatpush1.bf16.xpose.msra.mxu0 0
        %4069 = vmatprep.subr.bf16.mxu0 0
        %4070 = vmatpush1.bf16.xpose.msra.mxu0 0
        %4071 = vmatprep.subr.bf16.mxu0 0
        %4072 = vmatpush1.bf16.xpose.msra.mxu0 0
        %4073 = vmatprep.subr.bf16.mxu0 0
        %4074 = vmatpush1.bf16.xpose.msra.mxu0 0
        %4075 = vmatprep.subr.bf16.mxu0 0
        %4076 = vmatpush1.bf16.xpose.msra.mxu0 0
        %4077 = vmatprep.subr.bf16.mxu0 0
        %4078 = vmatpush1.bf16.xpose.msra.mxu0 0
        %4079 = vmatprep.mubr.bf16.mxu0 %v1459
        %4080 = vmatmul.mubr.bf16.gmra.mrb[0].mxu0 %v1458
        %v4081 = vpop.f32.mrb[0].mxu0
        %v4082 = vadd.f32 %v4029, %v4081
        %v4083 = vpop.f32.mrb[0].mxu0
        %v4084 = vadd.f32 %v4031, %v4083
        %v4085 = vpop.f32.mrb[0].mxu0
        %v4086 = vadd.f32 %v4033, %v4085
        %v4087 = vpop.f32.mrb[0].mxu0
        %v4088 = vadd.f32 %v4035, %v4087
        %4089 = vmatprep.mubr.bf16.mxu0 %v1495
        %4090 = vmatmul.mubr.bf16.gmra.mrb[0].mxu0 %v1494
        %v4091 = vpop.f32.mrb[0].mxu0
        %v4092 = vadd.f32 %v4039, %v4091
        %v4093 = vpop.f32.mrb[0].mxu0
        %v4094 = vadd.f32 %v4041, %v4093
        %v4095 = vpop.f32.mrb[0].mxu0
        %v4096 = vadd.f32 %v4043, %v4095
        %v4097 = vpop.f32.mrb[0].mxu0
        %v4098 = vadd.f32 %v4045, %v4097
        %4099 = vdwg.mxu0
        %4100 = vmatprep.subr.bf16.mxu0 %v2973
        %4101 = vmatpush1.bf16.xpose.msra.mxu0 %v2972
        %4102 = vmatprep.subr.bf16.mxu0 %v3009
        %4103 = vmatpush1.bf16.xpose.msra.mxu0 %v3008
        %4104 = vmatprep.subr.bf16.mxu0 %v3045
        %4105 = vmatpush1.bf16.xpose.msra.mxu0 %v3044
        %4106 = vmatprep.subr.bf16.mxu0 %v3081
        %4107 = vmatpush1.bf16.xpose.msra.mxu0 %v3080
        %4108 = vmatprep.subr.bf16.mxu0 %v3117
        %4109 = vmatpush1.bf16.xpose.msra.mxu0 %v3116
        %4110 = vmatprep.subr.bf16.mxu0 %v3153
        %4111 = vmatpush1.bf16.xpose.msra.mxu0 %v3152
        %4112 = vmatprep.subr.bf16.mxu0 %v3189
        %4113 = vmatpush1.bf16.xpose.msra.mxu0 %v3188
        %4114 = vmatprep.subr.bf16.mxu0 %v3225
        %4115 = vmatpush1.bf16.xpose.msra.mxu0 %v3224
        %4116 = vmatprep.subr.bf16.mxu0 %v3261
        %4117 = vmatpush1.bf16.xpose.msra.mxu0 %v3260
        %4118 = vmatprep.subr.bf16.mxu0 %v3297
        %4119 = vmatpush1.bf16.xpose.msra.mxu0 %v3296
        %4120 = vmatprep.subr.bf16.mxu0 0
        %4121 = vmatpush1.bf16.xpose.msra.mxu0 0
        %4122 = vmatprep.subr.bf16.mxu0 0
        %4123 = vmatpush1.bf16.xpose.msra.mxu0 0
        %4124 = vmatprep.subr.bf16.mxu0 0
        %4125 = vmatpush1.bf16.xpose.msra.mxu0 0
        %4126 = vmatprep.subr.bf16.mxu0 0
        %4127 = vmatpush1.bf16.xpose.msra.mxu0 0
        %4128 = vmatprep.subr.bf16.mxu0 0
        %4129 = vmatpush1.bf16.xpose.msra.mxu0 0
        %4130 = vmatprep.subr.bf16.mxu0 0
        %4131 = vmatpush1.bf16.xpose.msra.mxu0 0
        %4132 = vmatprep.mubr.bf16.mxu0 %v1461
        %4133 = vmatmul.mubr.bf16.gmra.mrb[0].mxu0 %v1460
        %v4134 = vpop.f32.mrb[0].mxu0
        %v4135 = vadd.f32 %v4082, %v4134
        %v4136 = vpop.f32.mrb[0].mxu0
        %v4137 = vadd.f32 %v4084, %v4136
        %v4138 = vpop.f32.mrb[0].mxu0
        %v4139 = vadd.f32 %v4086, %v4138
        %v4140 = vpop.f32.mrb[0].mxu0
        %v4141 = vadd.f32 %v4088, %v4140
        %4142 = vmatprep.mubr.bf16.mxu0 %v1497
        %4143 = vmatmul.mubr.bf16.gmra.mrb[0].mxu0 %v1496
        %v4144 = vpop.f32.mrb[0].mxu0
        %v4145 = vadd.f32 %v4092, %v4144
        %v4146 = vpop.f32.mrb[0].mxu0
        %v4147 = vadd.f32 %v4094, %v4146
        %v4148 = vpop.f32.mrb[0].mxu0
        %v4149 = vadd.f32 %v4096, %v4148
        %v4150 = vpop.f32.mrb[0].mxu0
        %v4151 = vadd.f32 %v4098, %v4150
        %4152 = vdwg.mxu0
        %4153 = vmatprep.subr.bf16.mxu0 %v2975
        %4154 = vmatpush1.bf16.xpose.msra.mxu0 %v2974
        %4155 = vmatprep.subr.bf16.mxu0 %v3011
        %4156 = vmatpush1.bf16.xpose.msra.mxu0 %v3010
        %4157 = vmatprep.subr.bf16.mxu0 %v3047
        %4158 = vmatpush1.bf16.xpose.msra.mxu0 %v3046
        %4159 = vmatprep.subr.bf16.mxu0 %v3083
        %4160 = vmatpush1.bf16.xpose.msra.mxu0 %v3082
        %4161 = vmatprep.subr.bf16.mxu0 %v3119
        %4162 = vmatpush1.bf16.xpose.msra.mxu0 %v3118
        %4163 = vmatprep.subr.bf16.mxu0 %v3155
        %4164 = vmatpush1.bf16.xpose.msra.mxu0 %v3154
        %4165 = vmatprep.subr.bf16.mxu0 %v3191
        %4166 = vmatpush1.bf16.xpose.msra.mxu0 %v3190
        %4167 = vmatprep.subr.bf16.mxu0 %v3227
        %4168 = vmatpush1.bf16.xpose.msra.mxu0 %v3226
        %4169 = vmatprep.subr.bf16.mxu0 %v3263
        %4170 = vmatpush1.bf16.xpose.msra.mxu0 %v3262
        %4171 = vmatprep.subr.bf16.mxu0 %v3299
        %4172 = vmatpush1.bf16.xpose.msra.mxu0 %v3298
        %4173 = vmatprep.subr.bf16.mxu0 0
        %4174 = vmatpush1.bf16.xpose.msra.mxu0 0
        %4175 = vmatprep.subr.bf16.mxu0 0
        %4176 = vmatpush1.bf16.xpose.msra.mxu0 0
        %4177 = vmatprep.subr.bf16.mxu0 0
        %4178 = vmatpush1.bf16.xpose.msra.mxu0 0
        %4179 = vmatprep.subr.bf16.mxu0 0
        %4180 = vmatpush1.bf16.xpose.msra.mxu0 0
        %4181 = vmatprep.subr.bf16.mxu0 0
        %4182 = vmatpush1.bf16.xpose.msra.mxu0 0
        %4183 = vmatprep.subr.bf16.mxu0 0
        %4184 = vmatpush1.bf16.xpose.msra.mxu0 0
        %4185 = vmatprep.mubr.bf16.mxu0 %v1463
        %4186 = vmatmul.mubr.bf16.gmra.mrb[0].mxu0 %v1462
        %v4187 = vpop.f32.mrb[0].mxu0
        %v4188 = vadd.f32 %v4135, %v4187
        %v4189 = vpop.f32.mrb[0].mxu0
        %v4190 = vadd.f32 %v4137, %v4189
        %v4191 = vpop.f32.mrb[0].mxu0
        %v4192 = vadd.f32 %v4139, %v4191
        %v4193 = vpop.f32.mrb[0].mxu0
        %v4194 = vadd.f32 %v4141, %v4193
        %4195 = vmatprep.mubr.bf16.mxu0 %v1499
        %4196 = vmatmul.mubr.bf16.gmra.mrb[0].mxu0 %v1498
        %v4197 = vpop.f32.mrb[0].mxu0
        %v4198 = vadd.f32 %v4145, %v4197
        %v4199 = vpop.f32.mrb[0].mxu0
        %v4200 = vadd.f32 %v4147, %v4199
        %v4201 = vpop.f32.mrb[0].mxu0
        %v4202 = vadd.f32 %v4149, %v4201
        %v4203 = vpop.f32.mrb[0].mxu0
        %v4204 = vadd.f32 %v4151, %v4203
        %4205 = vdwg.mxu0
        %4206 = vmatprep.subr.bf16.mxu0 %v2977
        %4207 = vmatpush1.bf16.xpose.msra.mxu0 %v2976
        %4208 = vmatprep.subr.bf16.mxu0 %v3013
        %4209 = vmatpush1.bf16.xpose.msra.mxu0 %v3012
        %4210 = vmatprep.subr.bf16.mxu0 %v3049
        %4211 = vmatpush1.bf16.xpose.msra.mxu0 %v3048
        %4212 = vmatprep.subr.bf16.mxu0 %v3085
        %4213 = vmatpush1.bf16.xpose.msra.mxu0 %v3084
        %4214 = vmatprep.subr.bf16.mxu0 %v3121
        %4215 = vmatpush1.bf16.xpose.msra.mxu0 %v3120
        %4216 = vmatprep.subr.bf16.mxu0 %v3157
        %4217 = vmatpush1.bf16.xpose.msra.mxu0 %v3156
        %4218 = vmatprep.subr.bf16.mxu0 %v3193
        %4219 = vmatpush1.bf16.xpose.msra.mxu0 %v3192
        %4220 = vmatprep.subr.bf16.mxu0 %v3229
        %4221 = vmatpush1.bf16.xpose.msra.mxu0 %v3228
        %4222 = vmatprep.subr.bf16.mxu0 %v3265
        %4223 = vmatpush1.bf16.xpose.msra.mxu0 %v3264
        %4224 = vmatprep.subr.bf16.mxu0 %v3301
        %4225 = vmatpush1.bf16.xpose.msra.mxu0 %v3300
        %4226 = vmatprep.subr.bf16.mxu0 0
        %4227 = vmatpush1.bf16.xpose.msra.mxu0 0
        %4228 = vmatprep.subr.bf16.mxu0 0
        %4229 = vmatpush1.bf16.xpose.msra.mxu0 0
        %4230 = vmatprep.subr.bf16.mxu0 0
        %4231 = vmatpush1.bf16.xpose.msra.mxu0 0
        %4232 = vmatprep.subr.bf16.mxu0 0
        %4233 = vmatpush1.bf16.xpose.msra.mxu0 0
        %4234 = vmatprep.subr.bf16.mxu0 0
        %4235 = vmatpush1.bf16.xpose.msra.mxu0 0
        %4236 = vmatprep.subr.bf16.mxu0 0
        %4237 = vmatpush1.bf16.xpose.msra.mxu0 0
        %4238 = vmatprep.mubr.bf16.mxu0 %v1465
        %4239 = vmatmul.mubr.bf16.gmra.mrb[0].mxu0 %v1464
        %v4240 = vpop.f32.mrb[0].mxu0
        %v4241 = vadd.f32 %v4188, %v4240
        %v4242 = vpop.f32.mrb[0].mxu0
        %v4243 = vadd.f32 %v4190, %v4242
        %v4244 = vpop.f32.mrb[0].mxu0
        %v4245 = vadd.f32 %v4192, %v4244
        %v4246 = vpop.f32.mrb[0].mxu0
        %v4247 = vadd.f32 %v4194, %v4246
        %4248 = vmatprep.mubr.bf16.mxu0 %v1501
        %4249 = vmatmul.mubr.bf16.gmra.mrb[0].mxu0 %v1500
        %v4250 = vpop.f32.mrb[0].mxu0
        %v4251 = vadd.f32 %v4198, %v4250
        %v4252 = vpop.f32.mrb[0].mxu0
        %v4253 = vadd.f32 %v4200, %v4252
        %v4254 = vpop.f32.mrb[0].mxu0
        %v4255 = vadd.f32 %v4202, %v4254
        %v4256 = vpop.f32.mrb[0].mxu0
        %v4257 = vadd.f32 %v4204, %v4256
        %4258 = vdwg.mxu0
        %4259 = vmatprep.subr.bf16.mxu0 %v2979
        %4260 = vmatpush1.bf16.xpose.msra.mxu0 %v2978
        %4261 = vmatprep.subr.bf16.mxu0 %v3015
        %4262 = vmatpush1.bf16.xpose.msra.mxu0 %v3014
        %4263 = vmatprep.subr.bf16.mxu0 %v3051
        %4264 = vmatpush1.bf16.xpose.msra.mxu0 %v3050
        %4265 = vmatprep.subr.bf16.mxu0 %v3087
        %4266 = vmatpush1.bf16.xpose.msra.mxu0 %v3086
        %4267 = vmatprep.subr.bf16.mxu0 %v3123
        %4268 = vmatpush1.bf16.xpose.msra.mxu0 %v3122
        %4269 = vmatprep.subr.bf16.mxu0 %v3159
        %4270 = vmatpush1.bf16.xpose.msra.mxu0 %v3158
        %4271 = vmatprep.subr.bf16.mxu0 %v3195
        %4272 = vmatpush1.bf16.xpose.msra.mxu0 %v3194
        %4273 = vmatprep.subr.bf16.mxu0 %v3231
        %4274 = vmatpush1.bf16.xpose.msra.mxu0 %v3230
        %4275 = vmatprep.subr.bf16.mxu0 %v3267
        %4276 = vmatpush1.bf16.xpose.msra.mxu0 %v3266
        %4277 = vmatprep.subr.bf16.mxu0 %v3303
        %4278 = vmatpush1.bf16.xpose.msra.mxu0 %v3302
        %4279 = vmatprep.subr.bf16.mxu0 0
        %4280 = vmatpush1.bf16.xpose.msra.mxu0 0
        %4281 = vmatprep.subr.bf16.mxu0 0
        %4282 = vmatpush1.bf16.xpose.msra.mxu0 0
        %4283 = vmatprep.subr.bf16.mxu0 0
        %4284 = vmatpush1.bf16.xpose.msra.mxu0 0
        %4285 = vmatprep.subr.bf16.mxu0 0
        %4286 = vmatpush1.bf16.xpose.msra.mxu0 0
        %4287 = vmatprep.subr.bf16.mxu0 0
        %4288 = vmatpush1.bf16.xpose.msra.mxu0 0
        %4289 = vmatprep.subr.bf16.mxu0 0
        %4290 = vmatpush1.bf16.xpose.msra.mxu0 0
        %4291 = vmatprep.mubr.bf16.mxu0 %v1467
        %4292 = vmatmul.mubr.bf16.gmra.mrb[0].mxu0 %v1466
        %v4293 = vpop.f32.mrb[0].mxu0
        %v4294 = vadd.f32 %v4241, %v4293
        %v4295 = vpop.f32.mrb[0].mxu0
        %v4296 = vadd.f32 %v4243, %v4295
        %v4297 = vpop.f32.mrb[0].mxu0
        %v4298 = vadd.f32 %v4245, %v4297
        %v4299 = vpop.f32.mrb[0].mxu0
        %v4300 = vadd.f32 %v4247, %v4299
        %4301 = vmatprep.mubr.bf16.mxu0 %v1503
        %4302 = vmatmul.mubr.bf16.gmra.mrb[0].mxu0 %v1502
        %v4303 = vpop.f32.mrb[0].mxu0
        %v4304 = vadd.f32 %v4251, %v4303
        %v4305 = vpop.f32.mrb[0].mxu0
        %v4306 = vadd.f32 %v4253, %v4305
        %v4307 = vpop.f32.mrb[0].mxu0
        %v4308 = vadd.f32 %v4255, %v4307
        %v4309 = vpop.f32.mrb[0].mxu0
        %v4310 = vadd.f32 %v4257, %v4309
        %4311 = vdwg.mxu0
        %4312 = vmatprep.subr.bf16.mxu0 %v2981
        %4313 = vmatpush1.bf16.xpose.msra.mxu0 %v2980
        %4314 = vmatprep.subr.bf16.mxu0 %v3017
        %4315 = vmatpush1.bf16.xpose.msra.mxu0 %v3016
        %4316 = vmatprep.subr.bf16.mxu0 %v3053
        %4317 = vmatpush1.bf16.xpose.msra.mxu0 %v3052
        %4318 = vmatprep.subr.bf16.mxu0 %v3089
        %4319 = vmatpush1.bf16.xpose.msra.mxu0 %v3088
        %4320 = vmatprep.subr.bf16.mxu0 %v3125
        %4321 = vmatpush1.bf16.xpose.msra.mxu0 %v3124
        %4322 = vmatprep.subr.bf16.mxu0 %v3161
        %4323 = vmatpush1.bf16.xpose.msra.mxu0 %v3160
        %4324 = vmatprep.subr.bf16.mxu0 %v3197
        %4325 = vmatpush1.bf16.xpose.msra.mxu0 %v3196
        %4326 = vmatprep.subr.bf16.mxu0 %v3233
        %4327 = vmatpush1.bf16.xpose.msra.mxu0 %v3232
        %4328 = vmatprep.subr.bf16.mxu0 %v3269
        %4329 = vmatpush1.bf16.xpose.msra.mxu0 %v3268
        %4330 = vmatprep.subr.bf16.mxu0 %v3305
        %4331 = vmatpush1.bf16.xpose.msra.mxu0 %v3304
        %4332 = vmatprep.subr.bf16.mxu0 0
        %4333 = vmatpush1.bf16.xpose.msra.mxu0 0
        %4334 = vmatprep.subr.bf16.mxu0 0
        %4335 = vmatpush1.bf16.xpose.msra.mxu0 0
        %4336 = vmatprep.subr.bf16.mxu0 0
        %4337 = vmatpush1.bf16.xpose.msra.mxu0 0
        %4338 = vmatprep.subr.bf16.mxu0 0
        %4339 = vmatpush1.bf16.xpose.msra.mxu0 0
        %4340 = vmatprep.subr.bf16.mxu0 0
        %4341 = vmatpush1.bf16.xpose.msra.mxu0 0
        %4342 = vmatprep.subr.bf16.mxu0 0
        %4343 = vmatpush1.bf16.xpose.msra.mxu0 0
        %4344 = vmatprep.mubr.bf16.mxu0 %v1469
        %4345 = vmatmul.mubr.bf16.gmra.mrb[0].mxu0 %v1468
        %v4346 = vpop.f32.mrb[0].mxu0
        %v4347 = vadd.f32 %v4294, %v4346
        %v4348 = vpop.f32.mrb[0].mxu0
        %v4349 = vadd.f32 %v4296, %v4348
        %v4350 = vpop.f32.mrb[0].mxu0
        %v4351 = vadd.f32 %v4298, %v4350
        %v4352 = vpop.f32.mrb[0].mxu0
        %v4353 = vadd.f32 %v4300, %v4352
        %4354 = vmatprep.mubr.bf16.mxu0 %v1505
        %4355 = vmatmul.mubr.bf16.gmra.mrb[0].mxu0 %v1504
        %v4356 = vpop.f32.mrb[0].mxu0
        %v4357 = vadd.f32 %v4304, %v4356
        %v4358 = vpop.f32.mrb[0].mxu0
        %v4359 = vadd.f32 %v4306, %v4358
        %v4360 = vpop.f32.mrb[0].mxu0
        %v4361 = vadd.f32 %v4308, %v4360
        %v4362 = vpop.f32.mrb[0].mxu0
        %v4363 = vadd.f32 %v4310, %v4362
        %4364 = vdwg.mxu0
        %4365 = vmatprep.subr.bf16.mxu0 %v2983
        %4366 = vmatpush1.bf16.xpose.msra.mxu0 %v2982
        %4367 = vmatprep.subr.bf16.mxu0 %v3019
        %4368 = vmatpush1.bf16.xpose.msra.mxu0 %v3018
        %4369 = vmatprep.subr.bf16.mxu0 %v3055
        %4370 = vmatpush1.bf16.xpose.msra.mxu0 %v3054
        %4371 = vmatprep.subr.bf16.mxu0 %v3091
        %4372 = vmatpush1.bf16.xpose.msra.mxu0 %v3090
        %4373 = vmatprep.subr.bf16.mxu0 %v3127
        %4374 = vmatpush1.bf16.xpose.msra.mxu0 %v3126
        %4375 = vmatprep.subr.bf16.mxu0 %v3163
        %4376 = vmatpush1.bf16.xpose.msra.mxu0 %v3162
        %4377 = vmatprep.subr.bf16.mxu0 %v3199
        %4378 = vmatpush1.bf16.xpose.msra.mxu0 %v3198
        %4379 = vmatprep.subr.bf16.mxu0 %v3235
        %4380 = vmatpush1.bf16.xpose.msra.mxu0 %v3234
        %4381 = vmatprep.subr.bf16.mxu0 %v3271
        %4382 = vmatpush1.bf16.xpose.msra.mxu0 %v3270
        %4383 = vmatprep.subr.bf16.mxu0 %v3307
        %4384 = vmatpush1.bf16.xpose.msra.mxu0 %v3306
        %4385 = vmatprep.subr.bf16.mxu0 0
        %4386 = vmatpush1.bf16.xpose.msra.mxu0 0
        %4387 = vmatprep.subr.bf16.mxu0 0
        %4388 = vmatpush1.bf16.xpose.msra.mxu0 0
        %4389 = vmatprep.subr.bf16.mxu0 0
        %4390 = vmatpush1.bf16.xpose.msra.mxu0 0
        %4391 = vmatprep.subr.bf16.mxu0 0
        %4392 = vmatpush1.bf16.xpose.msra.mxu0 0
        %4393 = vmatprep.subr.bf16.mxu0 0
        %4394 = vmatpush1.bf16.xpose.msra.mxu0 0
        %4395 = vmatprep.subr.bf16.mxu0 0
        %4396 = vmatpush1.bf16.xpose.msra.mxu0 0
        %4397 = vmatprep.mubr.bf16.mxu0 %v1471
        %4398 = vmatmul.mubr.bf16.gmra.mrb[0].mxu0 %v1470
        %v4399 = vpop.f32.mrb[0].mxu0
        %v4400 = vadd.f32 %v4347, %v4399
        %v4401 = vpop.f32.mrb[0].mxu0
        %v4402 = vadd.f32 %v4349, %v4401
        %v4403 = vpop.f32.mrb[0].mxu0
        %v4404 = vadd.f32 %v4351, %v4403
        %v4405 = vpop.f32.mrb[0].mxu0
        %v4406 = vadd.f32 %v4353, %v4405
        %4407 = vmatprep.mubr.bf16.mxu0 %v1507
        %4408 = vmatmul.mubr.bf16.gmra.mrb[0].mxu0 %v1506
        %v4409 = vpop.f32.mrb[0].mxu0
        %v4410 = vadd.f32 %v4357, %v4409
        %v4411 = vpop.f32.mrb[0].mxu0
        %v4412 = vadd.f32 %v4359, %v4411
        %v4413 = vpop.f32.mrb[0].mxu0
        %v4414 = vadd.f32 %v4361, %v4413
        %v4415 = vpop.f32.mrb[0].mxu0
        %v4416 = vadd.f32 %v4363, %v4415
        %4417 = vdwg.mxu0
        %4418 = vmatprep.subr.bf16.mxu0 %v2985
        %4419 = vmatpush1.bf16.xpose.msra.mxu0 %v2984
        %4420 = vmatprep.subr.bf16.mxu0 %v3021
        %4421 = vmatpush1.bf16.xpose.msra.mxu0 %v3020
        %4422 = vmatprep.subr.bf16.mxu0 %v3057
        %4423 = vmatpush1.bf16.xpose.msra.mxu0 %v3056
        %4424 = vmatprep.subr.bf16.mxu0 %v3093
        %4425 = vmatpush1.bf16.xpose.msra.mxu0 %v3092
        %4426 = vmatprep.subr.bf16.mxu0 %v3129
        %4427 = vmatpush1.bf16.xpose.msra.mxu0 %v3128
        %4428 = vmatprep.subr.bf16.mxu0 %v3165
        %4429 = vmatpush1.bf16.xpose.msra.mxu0 %v3164
        %4430 = vmatprep.subr.bf16.mxu0 %v3201
        %4431 = vmatpush1.bf16.xpose.msra.mxu0 %v3200
        %4432 = vmatprep.subr.bf16.mxu0 %v3237
        %4433 = vmatpush1.bf16.xpose.msra.mxu0 %v3236
        %4434 = vmatprep.subr.bf16.mxu0 %v3273
        %4435 = vmatpush1.bf16.xpose.msra.mxu0 %v3272
        %4436 = vmatprep.subr.bf16.mxu0 %v3309
        %4437 = vmatpush1.bf16.xpose.msra.mxu0 %v3308
        %4438 = vmatprep.subr.bf16.mxu0 0
        %4439 = vmatpush1.bf16.xpose.msra.mxu0 0
        %4440 = vmatprep.subr.bf16.mxu0 0
        %4441 = vmatpush1.bf16.xpose.msra.mxu0 0
        %4442 = vmatprep.subr.bf16.mxu0 0
        %4443 = vmatpush1.bf16.xpose.msra.mxu0 0
        %4444 = vmatprep.subr.bf16.mxu0 0
        %4445 = vmatpush1.bf16.xpose.msra.mxu0 0
        %4446 = vmatprep.subr.bf16.mxu0 0
        %4447 = vmatpush1.bf16.xpose.msra.mxu0 0
        %4448 = vmatprep.subr.bf16.mxu0 0
        %4449 = vmatpush1.bf16.xpose.msra.mxu0 0
        %4450 = vmatprep.mubr.bf16.mxu0 %v1473
        %4451 = vmatmul.mubr.bf16.gmra.mrb[0].mxu0 %v1472
        %v4452 = vpop.f32.mrb[0].mxu0
        %v4453 = vadd.f32 %v4400, %v4452
        %v4454 = vpop.f32.mrb[0].mxu0
        %v4455 = vadd.f32 %v4402, %v4454
        %v4456 = vpop.f32.mrb[0].mxu0
        %v4457 = vadd.f32 %v4404, %v4456
        %v4458 = vpop.f32.mrb[0].mxu0
        %v4459 = vadd.f32 %v4406, %v4458
        %4460 = vmatprep.mubr.bf16.mxu0 %v1509
        %4461 = vmatmul.mubr.bf16.gmra.mrb[0].mxu0 %v1508
        %v4462 = vpop.f32.mrb[0].mxu0
        %v4463 = vadd.f32 %v4410, %v4462
        %v4464 = vpop.f32.mrb[0].mxu0
        %v4465 = vadd.f32 %v4412, %v4464
        %v4466 = vpop.f32.mrb[0].mxu0
        %v4467 = vadd.f32 %v4414, %v4466
        %v4468 = vpop.f32.mrb[0].mxu0
        %v4469 = vadd.f32 %v4416, %v4468
        %4470 = vdwg.mxu0
        %4471 = vmatprep.subr.bf16.mxu0 %v2987
        %4472 = vmatpush1.bf16.xpose.msra.mxu0 %v2986
        %4473 = vmatprep.subr.bf16.mxu0 %v3023
        %4474 = vmatpush1.bf16.xpose.msra.mxu0 %v3022
        %4475 = vmatprep.subr.bf16.mxu0 %v3059
        %4476 = vmatpush1.bf16.xpose.msra.mxu0 %v3058
        %4477 = vmatprep.subr.bf16.mxu0 %v3095
        %4478 = vmatpush1.bf16.xpose.msra.mxu0 %v3094
        %4479 = vmatprep.subr.bf16.mxu0 %v3131
        %4480 = vmatpush1.bf16.xpose.msra.mxu0 %v3130
        %4481 = vmatprep.subr.bf16.mxu0 %v3167
        %4482 = vmatpush1.bf16.xpose.msra.mxu0 %v3166
        %4483 = vmatprep.subr.bf16.mxu0 %v3203
        %4484 = vmatpush1.bf16.xpose.msra.mxu0 %v3202
        %4485 = vmatprep.subr.bf16.mxu0 %v3239
        %4486 = vmatpush1.bf16.xpose.msra.mxu0 %v3238
        %4487 = vmatprep.subr.bf16.mxu0 %v3275
        %4488 = vmatpush1.bf16.xpose.msra.mxu0 %v3274
        %4489 = vmatprep.subr.bf16.mxu0 %v3311
        %4490 = vmatpush1.bf16.xpose.msra.mxu0 %v3310
        %4491 = vmatprep.subr.bf16.mxu0 0
        %4492 = vmatpush1.bf16.xpose.msra.mxu0 0
        %4493 = vmatprep.subr.bf16.mxu0 0
        %4494 = vmatpush1.bf16.xpose.msra.mxu0 0
        %4495 = vmatprep.subr.bf16.mxu0 0
        %4496 = vmatpush1.bf16.xpose.msra.mxu0 0
        %4497 = vmatprep.subr.bf16.mxu0 0
        %4498 = vmatpush1.bf16.xpose.msra.mxu0 0
        %4499 = vmatprep.subr.bf16.mxu0 0
        %4500 = vmatpush1.bf16.xpose.msra.mxu0 0
        %4501 = vmatprep.subr.bf16.mxu0 0
        %4502 = vmatpush1.bf16.xpose.msra.mxu0 0
        %4503 = vmatprep.mubr.bf16.mxu0 %v1475
        %4504 = vmatmul.mubr.bf16.gmra.mrb[0].mxu0 %v1474
        %v4505 = vpop.f32.mrb[0].mxu0
        %v4506 = vadd.f32 %v4453, %v4505
        %v4507 = vpop.f32.mrb[0].mxu0
        %v4508 = vadd.f32 %v4455, %v4507
        %v4509 = vpop.f32.mrb[0].mxu0
        %v4510 = vadd.f32 %v4457, %v4509
        %v4511 = vpop.f32.mrb[0].mxu0
        %v4512 = vadd.f32 %v4459, %v4511
        %4513 = vmatprep.mubr.bf16.mxu0 %v1511
        %4514 = vmatmul.mubr.bf16.gmra.mrb[0].mxu0 %v1510
        %v4515 = vpop.f32.mrb[0].mxu0
        %v4516 = vadd.f32 %v4463, %v4515
        %v4517 = vpop.f32.mrb[0].mxu0
        %v4518 = vadd.f32 %v4465, %v4517
        %v4519 = vpop.f32.mrb[0].mxu0
        %v4520 = vadd.f32 %v4467, %v4519
        %v4521 = vpop.f32.mrb[0].mxu0
        %v4522 = vadd.f32 %v4469, %v4521
        %4523 = vdwg.mxu0
        %4524 = vmatprep.subr.bf16.mxu0 %v2989
        %4525 = vmatpush1.bf16.xpose.msra.mxu0 %v2988
        %4526 = vmatprep.subr.bf16.mxu0 %v3025
        %4527 = vmatpush1.bf16.xpose.msra.mxu0 %v3024
        %4528 = vmatprep.subr.bf16.mxu0 %v3061
        %4529 = vmatpush1.bf16.xpose.msra.mxu0 %v3060
        %4530 = vmatprep.subr.bf16.mxu0 %v3097
        %4531 = vmatpush1.bf16.xpose.msra.mxu0 %v3096
        %4532 = vmatprep.subr.bf16.mxu0 %v3133
        %4533 = vmatpush1.bf16.xpose.msra.mxu0 %v3132
        %4534 = vmatprep.subr.bf16.mxu0 %v3169
        %4535 = vmatpush1.bf16.xpose.msra.mxu0 %v3168
        %4536 = vmatprep.subr.bf16.mxu0 %v3205
        %4537 = vmatpush1.bf16.xpose.msra.mxu0 %v3204
        %4538 = vmatprep.subr.bf16.mxu0 %v3241
        %4539 = vmatpush1.bf16.xpose.msra.mxu0 %v3240
        %4540 = vmatprep.subr.bf16.mxu0 %v3277
        %4541 = vmatpush1.bf16.xpose.msra.mxu0 %v3276
        %4542 = vmatprep.subr.bf16.mxu0 %v3313
        %4543 = vmatpush1.bf16.xpose.msra.mxu0 %v3312
        %4544 = vmatprep.subr.bf16.mxu0 0
        %4545 = vmatpush1.bf16.xpose.msra.mxu0 0
        %4546 = vmatprep.subr.bf16.mxu0 0
        %4547 = vmatpush1.bf16.xpose.msra.mxu0 0
        %4548 = vmatprep.subr.bf16.mxu0 0
        %4549 = vmatpush1.bf16.xpose.msra.mxu0 0
        %4550 = vmatprep.subr.bf16.mxu0 0
        %4551 = vmatpush1.bf16.xpose.msra.mxu0 0
        %4552 = vmatprep.subr.bf16.mxu0 0
        %4553 = vmatpush1.bf16.xpose.msra.mxu0 0
        %4554 = vmatprep.subr.bf16.mxu0 0
        %4555 = vmatpush1.bf16.xpose.msra.mxu0 0
        %4556 = vmatprep.mubr.bf16.mxu0 %v1477
        %4557 = vmatmul.mubr.bf16.gmra.mrb[0].mxu0 %v1476
        %v4558 = vpop.f32.mrb[0].mxu0
        %v4559 = vadd.f32 %v4506, %v4558
        %v4560 = vpop.f32.mrb[0].mxu0
        %v4561 = vadd.f32 %v4508, %v4560
        %v4562 = vpop.f32.mrb[0].mxu0
        %v4563 = vadd.f32 %v4510, %v4562
        %v4564 = vpop.f32.mrb[0].mxu0
        %v4565 = vadd.f32 %v4512, %v4564
        %4566 = vmatprep.mubr.bf16.mxu0 %v1513
        %4567 = vmatmul.mubr.bf16.gmra.mrb[0].mxu0 %v1512
        %v4568 = vpop.f32.mrb[0].mxu0
        %v4569 = vadd.f32 %v4516, %v4568
        %v4570 = vpop.f32.mrb[0].mxu0
        %v4571 = vadd.f32 %v4518, %v4570
        %v4572 = vpop.f32.mrb[0].mxu0
        %v4573 = vadd.f32 %v4520, %v4572
        %v4574 = vpop.f32.mrb[0].mxu0
        %v4575 = vadd.f32 %v4522, %v4574
        %4576 = vdwg.mxu0
        %4577 = vmatprep.subr.bf16.mxu0 %v2991
        %4578 = vmatpush1.bf16.xpose.msra.mxu0 %v2990
        %4579 = vmatprep.subr.bf16.mxu0 %v3027
        %4580 = vmatpush1.bf16.xpose.msra.mxu0 %v3026
        %4581 = vmatprep.subr.bf16.mxu0 %v3063
        %4582 = vmatpush1.bf16.xpose.msra.mxu0 %v3062
        %4583 = vmatprep.subr.bf16.mxu0 %v3099
        %4584 = vmatpush1.bf16.xpose.msra.mxu0 %v3098
        %4585 = vmatprep.subr.bf16.mxu0 %v3135
        %4586 = vmatpush1.bf16.xpose.msra.mxu0 %v3134
        %4587 = vmatprep.subr.bf16.mxu0 %v3171
        %4588 = vmatpush1.bf16.xpose.msra.mxu0 %v3170
        %4589 = vmatprep.subr.bf16.mxu0 %v3207
        %4590 = vmatpush1.bf16.xpose.msra.mxu0 %v3206
        %4591 = vmatprep.subr.bf16.mxu0 %v3243
        %4592 = vmatpush1.bf16.xpose.msra.mxu0 %v3242
        %4593 = vmatprep.subr.bf16.mxu0 %v3279
        %4594 = vmatpush1.bf16.xpose.msra.mxu0 %v3278
        %4595 = vmatprep.subr.bf16.mxu0 %v3315
        %4596 = vmatpush1.bf16.xpose.msra.mxu0 %v3314
        %4597 = vmatprep.subr.bf16.mxu0 0
        %4598 = vmatpush1.bf16.xpose.msra.mxu0 0
        %4599 = vmatprep.subr.bf16.mxu0 0
        %4600 = vmatpush1.bf16.xpose.msra.mxu0 0
        %4601 = vmatprep.subr.bf16.mxu0 0
        %4602 = vmatpush1.bf16.xpose.msra.mxu0 0
        %4603 = vmatprep.subr.bf16.mxu0 0
        %4604 = vmatpush1.bf16.xpose.msra.mxu0 0
        %4605 = vmatprep.subr.bf16.mxu0 0
        %4606 = vmatpush1.bf16.xpose.msra.mxu0 0
        %4607 = vmatprep.subr.bf16.mxu0 0
        %4608 = vmatpush1.bf16.xpose.msra.mxu0 0
        %4609 = vmatprep.mubr.bf16.mxu0 %v1479
        %4610 = vmatmul.mubr.bf16.gmra.mrb[0].mxu0 %v1478
        %v4611 = vpop.f32.mrb[0].mxu0
        %v4612 = vadd.f32 %v4559, %v4611
        %v4613 = vpop.f32.mrb[0].mxu0
        %v4614 = vadd.f32 %v4561, %v4613
        %v4615 = vpop.f32.mrb[0].mxu0
        %v4616 = vadd.f32 %v4563, %v4615
        %v4617 = vpop.f32.mrb[0].mxu0
        %v4618 = vadd.f32 %v4565, %v4617
        %4619 = vmatprep.mubr.bf16.mxu0 %v1515
        %4620 = vmatmul.mubr.bf16.gmra.mrb[0].mxu0 %v1514
        %v4621 = vpop.f32.mrb[0].mxu0
        %v4622 = vadd.f32 %v4569, %v4621
        %v4623 = vpop.f32.mrb[0].mxu0
        %v4624 = vadd.f32 %v4571, %v4623
        %v4625 = vpop.f32.mrb[0].mxu0
        %v4626 = vadd.f32 %v4573, %v4625
        %v4627 = vpop.f32.mrb[0].mxu0
        %v4628 = vadd.f32 %v4575, %v4627
        %4629 = vdwg.mxu0
        %v4630 = vadd.f32 %v1292, %v4612
        %v4631 = vadd.f32 %v1293, %v4614
        %v4632 = vadd.f32 %v1294, %v4616
        %v4633 = vadd.f32 %v1295, %v4618
        %v4634 = vadd.f32 %v1296, %v4622
        %v4635 = vadd.f32 %v1297, %v4624
        %v4636 = vadd.f32 %v1298, %v4626
        %v4637 = vadd.f32 %v1299, %v4628
        %4638 = vst [vmem:[#allocation2] sm:$0xff] %v4630
        %vm4639 = vcmask 261120
        %4640 = vst.msk [vmem:[#allocation2 + $0x8] sm:$0xff] %vm4639, %v4631
        %4641 = vst [vmem:[#allocation2 + $0x10] sm:$0xff] %v4632
        %4642 = vst.msk [vmem:[#allocation2 + $0x18] sm:$0xff] %vm4639, %v4633
        %4643 = vst [vmem:[#allocation2 + $0x20] sm:$0xff] %v4634
        %4644 = vst.msk [vmem:[#allocation2 + $0x28] sm:$0xff] %vm4639, %v4635
        %4645 = vst [vmem:[#allocation2 + $0x30] sm:$0xff] %v4636
        %4646 = vst.msk [vmem:[#allocation2 + $0x38] sm:$0xff] %vm4639, %v4637
        %p4647 = scmp.eq.s32.totalorder %s21, 1
        // Predicated region
        $region87: #{robustness_loss_pallas.1} parent=73 // pred_check
          %p4648 = pneg %p4647
        $region88: #{robustness_loss_pallas.1} parent=73 // pred_check_branch
          %4650 = sbr.rel (%p4648) target = $region90
        $region89: #{robustness_loss_pallas.1} parent=73 // pred_region
          %v4651 = vld [vmem:[#allocation2] sm:$0xff]
          %v4652 = vld [vmem:[#allocation2 + $0x8] sm:$0xff]
          %v4653 = vld [vmem:[#allocation2 + $0x10] sm:$0xff]
          %v4654 = vld [vmem:[#allocation2 + $0x18] sm:$0xff]
          %v4655 = vld [vmem:[#allocation2 + $0x20] sm:$0xff]
          %v4656 = vld [vmem:[#allocation2 + $0x28] sm:$0xff]
          %v4657 = vld [vmem:[#allocation2 + $0x30] sm:$0xff]
          %v4658 = vld [vmem:[#allocation2 + $0x38] sm:$0xff]
          %v4659 = vlaneseq
          %v4660 = vshrl.u32 %v4659, 7
          %v4661 = vadd.s32 %v4660, 8
          %v4662 = vadd.s32 %v4660, 16
          %v4663 = vadd.s32 %v4660, 24
          %v4664 = vlaneseq
          %v4665 = vand.u32 %v4664, 127
          %v4666 = vadd.s32 %v4665, 128
          %v4667 = vand.u32 %v4660, 15
          %v4668 = vand.u32 %v4661, 15
          %v4669 = vand.u32 %v4662, 15
          %v4670 = vand.u32 %v4663, 15
          %v4671 = vand.u32 %v4665, 15
          %v4672 = vand.u32 %v4666, 15
          %vm4673 = vcmp.eq.s32.totalorder %v4667, %v4671
          %vm4674 = vcmp.eq.s32.totalorder %v4667, %v4672
          %vm4675 = vcmp.eq.s32.totalorder %v4668, %v4671
          %vm4676 = vcmp.eq.s32.totalorder %v4668, %v4672
          %vm4677 = vcmp.eq.s32.totalorder %v4669, %v4671
          %vm4678 = vcmp.eq.s32.totalorder %v4669, %v4672
          %vm4679 = vcmp.eq.s32.totalorder %v4670, %v4671
          %vm4680 = vcmp.eq.s32.totalorder %v4670, %v4672
          %v4681 = vsel %vm4673, %v4651, 0.0
          %v4682 = vsel %vm4674, %v4652, 0.0
          %v4683 = vsel %vm4675, %v4653, 0.0
          %v4684 = vsel %vm4676, %v4654, 0.0
          %v4685 = vsel %vm4677, %v4655, 0.0
          %v4686 = vsel %vm4678, %v4656, 0.0
          %v4687 = vsel %vm4679, %v4657, 0.0
          %v4688 = vsel %vm4680, %v4658, 0.0
          %v4689 = vadd.s32 %v4660, 32
          %v4690 = vadd.s32 %v4660, 40
          %v4691 = vadd.s32 %v4660, 48
          %v4692 = vadd.s32 %v4660, 56
          %v4693 = vadd.s32 %v4660, 64
          %v4694 = vadd.s32 %v4660, 72
          %v4695 = vadd.s32 %v4660, 80
          %v4696 = vadd.s32 %v4660, 88
          %v4697 = vadd.s32 %v4660, 96
          %v4698 = vadd.s32 %v4660, 104
          %v4699 = vadd.s32 %v4660, 112
          %v4700 = vadd.s32 %v4660, 120
          %v4701 = vadd.s32 %v4660, 128
          %v4702 = vadd.s32 %v4660, 136
          %v4703 = vadd.s32 %v4660, 144
          %v4704 = vadd.s32 %v4660, 152
          %v4705 = vshra.s32 %v4660, 4
          %v4706 = vshra.s32 %v4661, 4
          %v4707 = vshra.s32 %v4662, 4
          %v4708 = vshra.s32 %v4663, 4
          %v4709 = vshra.s32 %v4689, 4
          %v4710 = vshra.s32 %v4690, 4
          %v4711 = vshra.s32 %v4691, 4
          %v4712 = vshra.s32 %v4692, 4
          %v4713 = vshra.s32 %v4693, 4
          %v4714 = vshra.s32 %v4694, 4
          %v4715 = vshra.s32 %v4695, 4
          %v4716 = vshra.s32 %v4696, 4
          %v4717 = vshra.s32 %v4697, 4
          %v4718 = vshra.s32 %v4698, 4
          %v4719 = vshra.s32 %v4699, 4
          %v4720 = vshra.s32 %v4700, 4
          %v4721 = vshra.s32 %v4701, 4
          %v4722 = vshra.s32 %v4702, 4
          %v4723 = vshra.s32 %v4703, 4
          %v4724 = vshra.s32 %v4704, 4
          %vm4725 = vcmp.eq.s32.totalorder %v4705, %v4665
          %vm4726 = vcmp.eq.s32.totalorder %v4706, %v4665
          %vm4727 = vcmp.eq.s32.totalorder %v4707, %v4665
          %vm4728 = vcmp.eq.s32.totalorder %v4708, %v4665
          %vm4729 = vcmp.eq.s32.totalorder %v4709, %v4665
          %vm4730 = vcmp.eq.s32.totalorder %v4710, %v4665
          %vm4731 = vcmp.eq.s32.totalorder %v4711, %v4665
          %vm4732 = vcmp.eq.s32.totalorder %v4712, %v4665
          %vm4733 = vcmp.eq.s32.totalorder %v4713, %v4665
          %vm4734 = vcmp.eq.s32.totalorder %v4714, %v4665
          %vm4735 = vcmp.eq.s32.totalorder %v4715, %v4665
          %vm4736 = vcmp.eq.s32.totalorder %v4716, %v4665
          %vm4737 = vcmp.eq.s32.totalorder %v4717, %v4665
          %vm4738 = vcmp.eq.s32.totalorder %v4718, %v4665
          %vm4739 = vcmp.eq.s32.totalorder %v4719, %v4665
          %vm4740 = vcmp.eq.s32.totalorder %v4720, %v4665
          %vm4741 = vcmp.eq.s32.totalorder %v4721, %v4665
          %vm4742 = vcmp.eq.s32.totalorder %v4722, %v4665
          %vm4743 = vcmp.eq.s32.totalorder %v4723, %v4665
          %vm4744 = vcmp.eq.s32.totalorder %v4724, %v4665
          %v4745 = vsel %vm4725, 1, 0
          %v4746 = vsel %vm4726, 1, 0
          %v4747 = vsel %vm4727, 1, 0
          %v4748 = vsel %vm4728, 1, 0
          %v4749 = vsel %vm4729, 1, 0
          %v4750 = vsel %vm4730, 1, 0
          %v4751 = vsel %vm4731, 1, 0
          %v4752 = vsel %vm4732, 1, 0
          %v4753 = vsel %vm4733, 1, 0
          %v4754 = vsel %vm4734, 1, 0
          %v4755 = vsel %vm4735, 1, 0
          %v4756 = vsel %vm4736, 1, 0
          %v4757 = vsel %vm4737, 1, 0
          %v4758 = vsel %vm4738, 1, 0
          %v4759 = vsel %vm4739, 1, 0
          %v4760 = vsel %vm4740, 1, 0
          %v4761 = vsel %vm4741, 1, 0
          %v4762 = vsel %vm4742, 1, 0
          %v4763 = vsel %vm4743, 1, 0
          %v4764 = vsel %vm4744, 1, 0
          %v4765 = vcvt.s32.f32 %v4745
          %v4766 = vcvt.s32.f32 %v4746
          %v4767 = vcvt.s32.f32 %v4747
          %v4768 = vcvt.s32.f32 %v4748
          %v4769 = vcvt.s32.f32 %v4749
          %v4770 = vcvt.s32.f32 %v4750
          %v4771 = vcvt.s32.f32 %v4751
          %v4772 = vcvt.s32.f32 %v4752
          %v4773 = vcvt.s32.f32 %v4753
          %v4774 = vcvt.s32.f32 %v4754
          %v4775 = vcvt.s32.f32 %v4755
          %v4776 = vcvt.s32.f32 %v4756
          %v4777 = vcvt.s32.f32 %v4757
          %v4778 = vcvt.s32.f32 %v4758
          %v4779 = vcvt.s32.f32 %v4759
          %v4780 = vcvt.s32.f32 %v4760
          %v4781 = vcvt.s32.f32 %v4761
          %v4782 = vcvt.s32.f32 %v4762
          %v4783 = vcvt.s32.f32 %v4763
          %v4784 = vcvt.s32.f32 %v4764
          %v4785 = vshra.s32 %v4665, 4
          %vm4786 = vcmp.eq.s32.totalorder %v4660, %v4785
          %v4787 = vsel %vm4786, 1, 0
          %v4788 = vcvt.s32.f32 %v4787
          %v4790 = vsel %vm4639, %v4682, 0
          %v4793 = vsel %vm4639, %v4684, 0
          %v4796 = vsel %vm4639, %v4686, 0
          %v4799 = vsel %vm4639, %v4688, 0
          %4801 = vmatprep.subr.mxu0 0.0
          %4802 = vmatpush1.msra.mxu0 %v4765
          %4803 = vmatprep.subr.mxu0 0.0
          %4804 = vmatpush1.msra.mxu0 %v4766
          %4805 = vmatprep.subr.mxu0 0.0
          %4806 = vmatpush1.msra.mxu0 %v4767
          %4807 = vmatprep.subr.mxu0 0.0
          %4808 = vmatpush1.msra.mxu0 %v4768
          %4809 = vmatprep.subr.mxu0 0.0
          %4810 = vmatpush1.msra.mxu0 %v4769
          %4811 = vmatprep.subr.mxu0 0.0
          %4812 = vmatpush1.msra.mxu0 %v4770
          %4813 = vmatprep.subr.mxu0 0.0
          %4814 = vmatpush1.msra.mxu0 %v4771
          %4815 = vmatprep.subr.mxu0 0.0
          %4816 = vmatpush1.msra.mxu0 %v4772
          %4817 = vmatprep.subr.mxu0 0.0
          %4818 = vmatpush1.msra.mxu0 %v4773
          %4819 = vmatprep.subr.mxu0 0.0
          %4820 = vmatpush1.msra.mxu0 %v4774
          %4821 = vmatprep.subr.mxu0 0.0
          %4822 = vmatpush1.msra.mxu0 %v4775
          %4823 = vmatprep.subr.mxu0 0.0
          %4824 = vmatpush1.msra.mxu0 %v4776
          %4825 = vmatprep.subr.mxu0 0.0
          %4826 = vmatpush1.msra.mxu0 %v4777
          %4827 = vmatprep.subr.mxu0 0.0
          %4828 = vmatpush1.msra.mxu0 %v4778
          %4829 = vmatprep.subr.mxu0 0.0
          %4830 = vmatpush1.msra.mxu0 %v4779
          %4831 = vmatprep.subr.mxu0 0.0
          %4832 = vmatpush1.msra.mxu0 %v4780
          %4833 = vmatprep.subr.mxu0 0.0
          %4834 = vmatpush1.msra.mxu0 %v4781
          %4835 = vmatprep.subr.mxu0 0.0
          %4836 = vmatpush1.msra.mxu0 %v4782
          %4837 = vmatprep.subr.mxu0 0.0
          %4838 = vmatpush1.msra.mxu0 %v4783
          %4839 = vmatprep.subr.mxu0 0.0
          %4840 = vmatpush1.msra.mxu0 %v4784
          %4841 = vmatprep.subr.mxu0 0.0
          %4842 = vmatpush1.msra.mxu0 0.0
          %4843 = vmatprep.subr.mxu0 0.0
          %4844 = vmatpush1.msra.mxu0 0.0
          %4845 = vmatprep.subr.mxu0 0.0
          %4846 = vmatpush1.msra.mxu0 0.0
          %4847 = vmatprep.subr.mxu0 0.0
          %4848 = vmatpush1.msra.mxu0 0.0
          %4849 = vmatprep.subr.mxu0 0.0
          %4850 = vmatpush1.msra.mxu0 0.0
          %4851 = vmatprep.subr.mxu0 0.0
          %4852 = vmatpush1.msra.mxu0 0.0
          %4853 = vmatprep.subr.mxu0 0.0
          %4854 = vmatpush1.msra.mxu0 0.0
          %4855 = vmatprep.subr.mxu0 0.0
          %4856 = vmatpush1.msra.mxu0 0.0
          %4857 = vmatprep.subr.mxu0 0.0
          %4858 = vmatpush1.msra.mxu0 0.0
          %4859 = vmatprep.subr.mxu0 0.0
          %4860 = vmatpush1.msra.mxu0 0.0
          %4861 = vmatprep.subr.mxu0 0.0
          %4862 = vmatpush1.msra.mxu0 0.0
          %4863 = vmatprep.subr.mxu0 0.0
          %4864 = vmatpush1.msra.mxu0 0.0
          %4865 = vmatprep.mubr.f32.mxu0 %v4790
          %4866 = vmatmul.mubr.f32.gmra.mrb[0].mxu0 %v4681
          %v4867 = vpop.f32.mrb[0].mxu0
          %v4868 = vadd.f32 0.0, %v4867
          %v4869 = vpop.f32.mrb[0].mxu0
          %4870 = vmatprep.mubr.f32.mxu0 %v4793
          %4871 = vmatmul.mubr.f32.gmra.mrb[0].mxu0 %v4683
          %v4872 = vpop.f32.mrb[0].mxu0
          %v4873 = vadd.f32 0.0, %v4872
          %v4874 = vpop.f32.mrb[0].mxu0
          %4875 = vmatprep.mubr.f32.mxu0 %v4796
          %4876 = vmatmul.mubr.f32.gmra.mrb[0].mxu0 %v4685
          %v4877 = vpop.f32.mrb[0].mxu0
          %v4878 = vadd.f32 0.0, %v4877
          %v4879 = vpop.f32.mrb[0].mxu0
          %4880 = vmatprep.mubr.f32.mxu0 %v4799
          %4881 = vmatmul.mubr.f32.gmra.mrb[0].mxu0 %v4687
          %v4882 = vpop.f32.mrb[0].mxu0
          %v4883 = vadd.f32 0.0, %v4882
          %v4884 = vpop.f32.mrb[0].mxu0
          %4885 = vdwg.mxu0
          %v4886 = vld [vmem:[%s2] sm:$0x1]
          %v4888 = vlaneseq
          %v4889 = vshrl.u32 %v4888, 7
          %v4890 = vsub.s32 0, %v4889
          %v4891 = vrot.slane %v4886, %v4890
          %v4894 = vsel %vm4639, %v4788, 0
          %4896 = vmatprep.subr.mxu0 0.0
          %4897 = vmatpush1.msra.mxu0 %v4868
          %4898 = vmatprep.subr.mxu0 0.0
          %4899 = vmatpush1.msra.mxu0 %v4873
          %4900 = vmatprep.subr.mxu0 0.0
          %4901 = vmatpush1.msra.mxu0 %v4878
          %4902 = vmatprep.subr.mxu0 0.0
          %4903 = vmatpush1.msra.mxu0 %v4883
          %4904 = vmatprep.subr.mxu0 0.0
          %4905 = vmatpush1.msra.mxu0 0.0
          %4906 = vmatprep.subr.mxu0 0.0
          %4907 = vmatpush1.msra.mxu0 0.0
          %4908 = vmatprep.subr.mxu0 0.0
          %4909 = vmatpush1.msra.mxu0 0.0
          %4910 = vmatprep.subr.mxu0 0.0
          %4911 = vmatpush1.msra.mxu0 0.0
          %4912 = vmatprep.subr.mxu0 0.0
          %4913 = vmatpush1.msra.mxu0 0.0
          %4914 = vmatprep.subr.mxu0 0.0
          %4915 = vmatpush1.msra.mxu0 0.0
          %4916 = vmatprep.subr.mxu0 0.0
          %4917 = vmatpush1.msra.mxu0 0.0
          %4918 = vmatprep.subr.mxu0 0.0
          %4919 = vmatpush1.msra.mxu0 0.0
          %4920 = vmatprep.subr.mxu0 0.0
          %4921 = vmatpush1.msra.mxu0 0.0
          %4922 = vmatprep.subr.mxu0 0.0
          %4923 = vmatpush1.msra.mxu0 0.0
          %4924 = vmatprep.subr.mxu0 0.0
          %4925 = vmatpush1.msra.mxu0 0.0
          %4926 = vmatprep.subr.mxu0 0.0
          %4927 = vmatpush1.msra.mxu0 0.0
          %4928 = vmatprep.subr.mxu0 0.0
          %4929 = vmatpush1.msra.mxu0 0.0
          %4930 = vmatprep.subr.mxu0 0.0
          %4931 = vmatpush1.msra.mxu0 0.0
          %4932 = vmatprep.subr.mxu0 0.0
          %4933 = vmatpush1.msra.mxu0 0.0
          %4934 = vmatprep.subr.mxu0 0.0
          %4935 = vmatpush1.msra.mxu0 0.0
          %4936 = vmatprep.subr.mxu0 0.0
          %4937 = vmatpush1.msra.mxu0 0.0
          %4938 = vmatprep.subr.mxu0 0.0
          %4939 = vmatpush1.msra.mxu0 0.0
          %4940 = vmatprep.subr.mxu0 0.0
          %4941 = vmatpush1.msra.mxu0 0.0
          %4942 = vmatprep.subr.mxu0 0.0
          %4943 = vmatpush1.msra.mxu0 0.0
          %4944 = vmatprep.subr.mxu0 0.0
          %4945 = vmatpush1.msra.mxu0 0.0
          %4946 = vmatprep.subr.mxu0 0.0
          %4947 = vmatpush1.msra.mxu0 0.0
          %4948 = vmatprep.subr.mxu0 0.0
          %4949 = vmatpush1.msra.mxu0 0.0
          %4950 = vmatprep.subr.mxu0 0.0
          %4951 = vmatpush1.msra.mxu0 0.0
          %4952 = vmatprep.subr.mxu0 0.0
          %4953 = vmatpush1.msra.mxu0 0.0
          %4954 = vmatprep.subr.mxu0 0.0
          %4955 = vmatpush1.msra.mxu0 0.0
          %4956 = vmatprep.subr.mxu0 0.0
          %4957 = vmatpush1.msra.mxu0 0.0
          %4958 = vmatprep.subr.mxu0 0.0
          %4959 = vmatpush1.msra.mxu0 0.0
          %4960 = vmatprep.mubr.f32.mxu0 0.0
          %4961 = vmatmul.mubr.f32.gmra.mrb[0].mxu0 %v4894
          %v4962 = vpop.f32.mrb[0].mxu0
          %v4963 = vadd.f32 %v4891, %v4962
          %v4964 = vpop.f32.mrb[0].mxu0
          %4965 = vdwg.mxu0
          %v4966 = vld [vmem:[%s3] sm:$0x3]
          %v4967 = vsub.f32 %v4963, %v4966
          %v4968 = vmul.f32 %v4967, %v4967
          %vm4969 = vcmask 74752
          %v4970 = vsel %vm4969, %v4968, 0.0
          %4971 = vadd.xlane.f32.xlu0 %v4970
          %v4972 = vpop.xlane.xlu0 %4971
          %vm4973 = vcmask 1041408
          %v4974 = vsel %vm4973, %v4972, 0.0
          %v4975 = vrot.slane %v4974, 4
          %v4976 = vadd.f32 %v4974, %v4975
          %v4977 = vrot.slane %v4976, 2
          %v4978 = vadd.f32 %v4976, %v4977
          %v4979 = vrot.slane %v4978, 1
          %v4980 = vadd.f32 %v4978, %v4979
          %vm4981 = vcmask 0
          %4982 = vst.msk [vmem:[#allocation5] sm:$0x1] %vm4981, %v4980
        $region90: #{robustness_loss_pallas.1} parent=73 // pred_fallthru
          _
        // Predicated region
        $region91: #{robustness_loss_pallas.1} parent=73 // pred_check
          %p4983 = pneg %p143
        $region92: #{robustness_loss_pallas.1} parent=73 // pred_check_branch
          %4985 = sbr.rel (%p4983) target = $region94
        $region93: #{robustness_loss_pallas.1} parent=73 // pred_region
          %s4987 = ssub.s32 16, 16
          %4988 = vsyncadd [#allocation6], %s4987
          %s4990 = sshll.u32 [#allocation5], 4
          %s4991 = int_to_ptr.vmem [resolvable:$true] %s4990
          %4993 = dma.vmem_to_hbm [thread:$0]  %s4991, 16, %s4, [#allocation6]
        $region94: #{robustness_loss_pallas.1} parent=73 // pred_fallthru
          _
        // Predicated region
        $region95: #{robustness_loss_pallas.1} parent=73 // pred_check
          %p4994 = pneg %p143
        $region96: #{robustness_loss_pallas.1} parent=73 // pred_check_branch
          %4996 = sbr.rel (%p4994) target = $region98
        $region97: #{robustness_loss_pallas.1} parent=73 // pred_region
          %4997 = dma.done [#allocation6], 16
        $region98: #{robustness_loss_pallas.1} parent=73 // pred_fallthru
          _
      $region74: #{robustness_loss_pallas.1} parent=5 // pred_fallthru
        _
      %p4998 = scmp.le.s32.totalorder 2, %s11
      // Predicated region
      $region99: #{robustness_loss_pallas.1} parent=5 // pred_check
        %p4999 = pneg %p4998
      $region100: #{robustness_loss_pallas.1} parent=5 // pred_check_branch
        %5001 = sbr.rel (%p4999) target = $region102
      $region101: #{robustness_loss_pallas.1} parent=5 // pred_region
        %s5002 = ssub.s32 %s11, 2
      $region102: #{robustness_loss_pallas.1} parent=5 // pred_fallthru
        _
    $region6: #{robustness_loss_pallas.1} parent=1 // loop_footer
      %s15 = sadd.s32 1, %s11
    $region7: #{robustness_loss_pallas.1} parent=1 // loop_footer_branch
      %10 = sbr.rel target = $region3
    $region8: #{robustness_loss_pallas.1} parent=1 // loop_exit
      _
    %5003 = vsyncpa [#allocation6], 1
    %s5004 = scalar_lea.sflag [#allocation6], 1
    %5005 = vsyncpa %s5004, 1

</llo_original>
